<compile_context>
chip_gen: v7x
topology: tpu7x:2x2x1
jax: 0.10.0
libtpu: 0.0.40
codegen_flags: <defaults>
</compile_context>

<pallas_src>
import jax
import jax.numpy as jnp
from jax import lax
from jax.experimental import pallas as pl
from jax.experimental.pallas import tpu as pltpu

KSIZE = 7                 # AttentionGate conv kernel
PAD = (KSIZE - 1) // 2    # = 3
BN_EPS = 1e-5


def _interactive_attention_kernel(w2d_ref, w1d_ref, bn_ref, x_ref, o_ref):
    TB, C, H, W = x_ref.shape

    # One full-block load; all internal compute in f32.
    xb = x_ref[...].astype(jnp.float32)                      # (TB, C, H, W)

    # ---- ZPool over H (the "channel" axis of the permuted tensor) -----------
    mx = jnp.max(xb, axis=2, keepdims=True)                  # (TB, C, 1, W)
    sum_h = jnp.sum(xb, axis=2, keepdims=True)               # (TB, C, 1, W)
    mean_h = sum_h * (1.0 / H)

    # ---- 7x7 conv (2 in-ch -> 1 out-ch), zero padding 3, over (C, W) --------
    def pad_cw(p):                                           # -> (TB, C+6, 1, W+6)
        zc = jnp.zeros((TB, PAD, 1, W), jnp.float32)
        p = jnp.concatenate([zc, p, zc], axis=1)             # pad along C (major)
        zw = jnp.zeros((TB, C + 2 * PAD, 1, PAD), jnp.float32)
        return jnp.concatenate([zw, p, zw], axis=3)          # pad along W (lanes)

    p_max = pad_cw(mx)
    p_mean = pad_cw(mean_h)

    acc = jnp.zeros((TB, C, 1, W), jnp.float32)
    for ic, plane in enumerate((p_max, p_mean)):             # ZPool order: [max, mean]
        for kh in range(KSIZE):
            rows = plane[:, kh:kh + C]                       # (TB, C, 1, W+6), major slice
            for kw in range(KSIZE):
                wgt = w2d_ref[ic * KSIZE * KSIZE + kh * KSIZE + kw]   # SMEM scalar
                acc = acc + wgt * rows[:, :, :, kw:kw + W]   # lane-shifted slice

    # ---- BatchNorm2d(1) (inference, folded) + sigmoid -> (C, W) gate --------
    gate_cw = jax.nn.sigmoid(acc * bn_ref[0] + bn_ref[1])    # (TB, C, 1, W)

    # ---- ECAttention global average pool, fused with the gate algebraically -
    ch_mean = jnp.sum(gate_cw * sum_h, axis=3, keepdims=True) * (1.0 / (H * W))  # (TB, C, 1, 1)

    # ---- 1-D conv (k=3, pad=1, no bias) along the channel axis + sigmoid ----
    zc1 = jnp.zeros((TB, 1, 1, 1), jnp.float32)
    yp = jnp.concatenate([zc1, ch_mean, zc1], axis=1)        # (TB, C+2, 1, 1)
    z = (w1d_ref[0] * yp[:, 0:C]
         + w1d_ref[1] * yp[:, 1:C + 1]
         + w1d_ref[2] * yp[:, 2:C + 2])                      # (TB, C, 1, 1)
    gate_c = jax.nn.sigmoid(z)

    # ---- combined gate, single fused multiply + one dense full-block store --
    gate = gate_cw * gate_c                                  # (TB, C, 1, W)
    o_ref[...] = (x_ref[...].astype(jnp.float32) * gate).astype(o_ref.dtype)


def _pick_tb(n, bytes_per_sample, block_budget_bytes=512 * 1024):
    """Samples per grid step: largest divisor of n whose input block stays
    within the VMEM budget (keeps double-buffered in+out well under the v5e
    16 MiB scoped default), preferring >= 2 grid steps so both v7x
    TensorCores get work."""
    max_tb = max(1, min(n, block_budget_bytes // max(1, bytes_per_sample)))
    divs = [d for d in range(1, n + 1) if n % d == 0 and d <= max_tb]
    if not divs:
        return 1
    pref = [d for d in divs if n // d >= 2]
    return max(pref) if pref else max(divs)


def interactive_attention(x, w2d, w1d, bn_gamma, bn_beta, bn_mean, bn_var):
    """x: (N, C, H, W); w2d: (1,2,7,7); w1d: (1,1,3); bn_*: (1,).
    Output has the same dtype as x; internal compute is f32."""
    N, C, H, W = x.shape
    w2d_flat = w2d.reshape(-1).astype(jnp.float32)           # (98,)
    w1d_flat = w1d.reshape(-1).astype(jnp.float32)           # (3,)
    g32 = bn_gamma.astype(jnp.float32)
    inv_std = 1.0 / jnp.sqrt(bn_var.astype(jnp.float32) + BN_EPS)
    bn_scale = (g32 * inv_std).reshape(())
    bn_shift = (bn_beta.astype(jnp.float32)
                - bn_mean.astype(jnp.float32) * g32 * inv_std).reshape(())
    bn_params = jnp.stack([bn_scale, bn_shift]).astype(jnp.float32)   # (2,)

    bytes_per_sample = C * H * W * jnp.dtype(x.dtype).itemsize
    tb = _pick_tb(N, bytes_per_sample)
    grid = (N // tb,)

    smem_spec = pl.BlockSpec(memory_space=pltpu.MemorySpace.SMEM)
    return pl.pallas_call(
        _interactive_attention_kernel,
        out_shape=jax.ShapeDtypeStruct((N, C, H, W), x.dtype),
        grid=grid,
        in_specs=[
            smem_spec,                                        # conv2d weights
            smem_spec,                                        # conv1d weights
            smem_spec,                                        # folded BN scale/shift
            pl.BlockSpec((tb, C, H, W), lambda b: (b, 0, 0, 0)),
        ],
        out_specs=pl.BlockSpec((tb, C, H, W), lambda b: (b, 0, 0, 0)),
        compiler_params=pltpu.CompilerParams(
            dimension_semantics=("parallel",)),
    )(w2d_flat, w1d_flat, bn_params, x)


# ------------------------- pure-JAX reference -------------------------------
def reference(x, w2d, w1d, bn_gamma, bn_beta, bn_mean, bn_var):
    xp = jnp.transpose(x, (0, 2, 1, 3))                      # (N, H, C, W)
    zc = jnp.concatenate(
        [jnp.max(xp, axis=1, keepdims=True), jnp.mean(xp, axis=1, keepdims=True)],
        axis=1)                                              # (N, 2, C, W)
    conv = lax.conv_general_dilated(
        zc, w2d, window_strides=(1, 1), padding=[(PAD, PAD), (PAD, PAD)],
        dimension_numbers=("NCHW", "OIHW", "NCHW"))          # (N, 1, C, W)
    bn = (conv - bn_mean) / jnp.sqrt(bn_var + BN_EPS) * bn_gamma + bn_beta
    scale = jax.nn.sigmoid(bn)
    xo11 = jnp.transpose(xp * scale, (0, 2, 1, 3))           # (N, C, H, W)
    y = jnp.mean(xo11, axis=(2, 3))                          # (N, C)
    ypad = jnp.pad(y, ((0, 0), (1, 1)))
    k = w1d.reshape(-1)
    z = k[0] * ypad[:, :-2] + k[1] * ypad[:, 1:-1] + k[2] * ypad[:, 2:]
    s = jax.nn.sigmoid(z)[:, :, None, None]
    return xo11 * s


if __name__ == "__main__":
    key = jax.random.PRNGKey(0)
    kx, kw2, kw1 = jax.random.split(key, 3)
    N, C, H, W = 2, 8, 16, 16

    x = jax.random.normal(kx, (N, C, H, W), jnp.float32)
    # Deterministic synthetic parameters (shapes from the module __init__).
    w2d = jax.random.normal(kw2, (1, 2, 7, 7), jnp.float32) * 0.1   # Conv2d(2,1,7)
    w1d = jax.random.normal(kw1, (1, 1, 3), jnp.float32) * 0.5      # Conv1d(1,1,3)
    bn_gamma = jnp.ones((1,), jnp.float32)                          # BatchNorm2d(1) defaults
    bn_beta = jnp.zeros((1,), jnp.float32)
    bn_mean = jnp.zeros((1,), jnp.float32)                          # inference running stats
    bn_var = jnp.ones((1,), jnp.float32)
    # TODO(synk): training-mode BatchNorm (batch statistics) is not modeled;
    # the kernel folds inference-mode running stats into a scale/shift.

    out = jax.block_until_ready(
        interactive_attention(x, w2d, w1d, bn_gamma, bn_beta, bn_mean, bn_var))

    ref = reference(x, w2d, w1d, bn_gamma, bn_beta, bn_mean, bn_var)
    err = float(jnp.max(jnp.abs(out - ref)))
    assert jnp.allclose(out, ref, atol=1e-4, rtol=1e-4), f"max abs err {err}"
    print("KERNEL_OK")
</pallas_src>

<mosaic_0001>
module attributes {stable_mosaic.version = 11 : i64} {
  func.func @_interactive_attention_kernel(%arg0: i32, %arg1: memref<98xf32, #tpu.memory_space<smem>>, %arg2: memref<3xf32, #tpu.memory_space<smem>>, %arg3: memref<2xf32, #tpu.memory_space<smem>>, %arg4: memref<1x8x16x16xf32, #tpu.memory_space<vmem>>, %arg5: memref<1x8x16x16xf32, #tpu.memory_space<vmem>>) attributes {dimension_semantics = [#tpu.dimension_semantics<parallel>], iteration_bounds = array<i64: 2>, scalar_prefetch = 0 : i64, scratch_operands = 0 : i64, tpu.core_type = #tpu.core_type<tc>, window_params = [{transform_indices = @transform_0, window_bounds = array<i64: 98>}, {transform_indices = @transform_1, window_bounds = array<i64: 3>}, {transform_indices = @transform_2, window_bounds = array<i64: 2>}, {transform_indices = @transform_3, window_bounds = array<i64: 1, 8, 16, 16>}, {transform_indices = @transform_4, window_bounds = array<i64: 1, 8, 16, 16>}]} {
    %c0 = arith.constant 0 : index
    %c0_0 = arith.constant 0 : index
    %c0_1 = arith.constant 0 : index
    %c0_2 = arith.constant 0 : index
    %0 = vector.load %arg4[%c0, %c0_0, %c0_1, %c0_2] : memref<1x8x16x16xf32, #tpu.memory_space<vmem>>, vector<1x8x16x16xf32>
    %cst = arith.constant dense<0xFF800000> : vector<1x8x16xf32>
    %1 = vector.multi_reduction <maximumf>, %0, %cst [2] : vector<1x8x16x16xf32> to vector<1x8x16xf32>
    %2 = vector.shape_cast %1 : vector<1x8x16xf32> to vector<1x8x1x16xf32>
    %cst_3 = arith.constant dense<0.000000e+00> : vector<1x8x16xf32>
    %3 = vector.multi_reduction <add>, %0, %cst_3 [2] : vector<1x8x16x16xf32> to vector<1x8x16xf32>
    %4 = vector.shape_cast %3 : vector<1x8x16xf32> to vector<1x8x1x16xf32>
    %cst_4 = arith.constant 6.250000e-02 : f32
    %5 = vector.broadcast %cst_4 : f32 to vector<1x8x1x16xf32>
    %6 = arith.mulf %4, %5 : vector<1x8x1x16xf32>
    %cst_5 = arith.constant 0.000000e+00 : f32
    %7 = vector.broadcast %cst_5 : f32 to vector<1x3x1x16xf32>
    %8 = tpu.concatenate %7, %2, %7 in 1 : vector<1x3x1x16xf32>, vector<1x8x1x16xf32>, vector<1x3x1x16xf32> -> vector<1x14x1x16xf32>
    %cst_6 = arith.constant 0.000000e+00 : f32
    %9 = vector.broadcast %cst_6 : f32 to vector<1x14x1x3xf32>
    %10 = tpu.concatenate %9, %8, %9 in 3 : vector<1x14x1x3xf32>, vector<1x14x1x16xf32>, vector<1x14x1x3xf32> -> vector<1x14x1x22xf32>
    %cst_7 = arith.constant 0.000000e+00 : f32
    %11 = vector.broadcast %cst_7 : f32 to vector<1x3x1x16xf32>
    %12 = tpu.concatenate %11, %6, %11 in 1 : vector<1x3x1x16xf32>, vector<1x8x1x16xf32>, vector<1x3x1x16xf32> -> vector<1x14x1x16xf32>
    %cst_8 = arith.constant 0.000000e+00 : f32
    %13 = vector.broadcast %cst_8 : f32 to vector<1x14x1x3xf32>
    %14 = tpu.concatenate %13, %12, %13 in 3 : vector<1x14x1x3xf32>, vector<1x14x1x16xf32>, vector<1x14x1x3xf32> -> vector<1x14x1x22xf32>
    %cst_9 = arith.constant 0.000000e+00 : f32
    %15 = vector.broadcast %cst_9 : f32 to vector<1x8x1x16xf32>
    %16 = vector.extract_strided_slice %10 {offsets = [0, 0, 0, 0], sizes = [1, 8, 1, 22], strides = [1, 1, 1, 1]} : vector<1x14x1x22xf32> to vector<1x8x1x22xf32>
    %c0_10 = arith.constant 0 : index
    %17 = memref.load %arg1[%c0_10] : memref<98xf32, #tpu.memory_space<smem>>
    %18 = vector.extract_strided_slice %16 {offsets = [0, 0, 0, 0], sizes = [1, 8, 1, 16], strides = [1, 1, 1, 1]} : vector<1x8x1x22xf32> to vector<1x8x1x16xf32>
    %19 = vector.broadcast %17 : f32 to vector<1x8x1x16xf32>
    %20 = arith.mulf %19, %18 : vector<1x8x1x16xf32>
    %21 = arith.addf %15, %20 : vector<1x8x1x16xf32>
    %c1 = arith.constant 1 : index
    %22 = memref.load %arg1[%c1] : memref<98xf32, #tpu.memory_space<smem>>
    %23 = vector.extract_strided_slice %16 {offsets = [0, 0, 0, 1], sizes = [1, 8, 1, 16], strides = [1, 1, 1, 1]} : vector<1x8x1x22xf32> to vector<1x8x1x16xf32>
    %24 = vector.broadcast %22 : f32 to vector<1x8x1x16xf32>
    %25 = arith.mulf %24, %23 : vector<1x8x1x16xf32>
    %26 = arith.addf %21, %25 : vector<1x8x1x16xf32>
    %c2 = arith.constant 2 : index
    %27 = memref.load %arg1[%c2] : memref<98xf32, #tpu.memory_space<smem>>
    %28 = vector.extract_strided_slice %16 {offsets = [0, 0, 0, 2], sizes = [1, 8, 1, 16], strides = [1, 1, 1, 1]} : vector<1x8x1x22xf32> to vector<1x8x1x16xf32>
    %29 = vector.broadcast %27 : f32 to vector<1x8x1x16xf32>
    %30 = arith.mulf %29, %28 : vector<1x8x1x16xf32>
    %31 = arith.addf %26, %30 : vector<1x8x1x16xf32>
    %c3 = arith.constant 3 : index
    %32 = memref.load %arg1[%c3] : memref<98xf32, #tpu.memory_space<smem>>
    %33 = vector.extract_strided_slice %16 {offsets = [0, 0, 0, 3], sizes = [1, 8, 1, 16], strides = [1, 1, 1, 1]} : vector<1x8x1x22xf32> to vector<1x8x1x16xf32>
    %34 = vector.broadcast %32 : f32 to vector<1x8x1x16xf32>
    %35 = arith.mulf %34, %33 : vector<1x8x1x16xf32>
    %36 = arith.addf %31, %35 : vector<1x8x1x16xf32>
    %c4 = arith.constant 4 : index
    %37 = memref.load %arg1[%c4] : memref<98xf32, #tpu.memory_space<smem>>
    %38 = vector.extract_strided_slice %16 {offsets = [0, 0, 0, 4], sizes = [1, 8, 1, 16], strides = [1, 1, 1, 1]} : vector<1x8x1x22xf32> to vector<1x8x1x16xf32>
    %39 = vector.broadcast %37 : f32 to vector<1x8x1x16xf32>
    %40 = arith.mulf %39, %38 : vector<1x8x1x16xf32>
    %41 = arith.addf %36, %40 : vector<1x8x1x16xf32>
    %c5 = arith.constant 5 : index
    %42 = memref.load %arg1[%c5] : memref<98xf32, #tpu.memory_space<smem>>
    %43 = vector.extract_strided_slice %16 {offsets = [0, 0, 0, 5], sizes = [1, 8, 1, 16], strides = [1, 1, 1, 1]} : vector<1x8x1x22xf32> to vector<1x8x1x16xf32>
    %44 = vector.broadcast %42 : f32 to vector<1x8x1x16xf32>
    %45 = arith.mulf %44, %43 : vector<1x8x1x16xf32>
    %46 = arith.addf %41, %45 : vector<1x8x1x16xf32>
    %c6 = arith.constant 6 : index
    %47 = memref.load %arg1[%c6] : memref<98xf32, #tpu.memory_space<smem>>
    %48 = vector.extract_strided_slice %16 {offsets = [0, 0, 0, 6], sizes = [1, 8, 1, 16], strides = [1, 1, 1, 1]} : vector<1x8x1x22xf32> to vector<1x8x1x16xf32>
    %49 = vector.broadcast %47 : f32 to vector<1x8x1x16xf32>
    %50 = arith.mulf %49, %48 : vector<1x8x1x16xf32>
    %51 = arith.addf %46, %50 : vector<1x8x1x16xf32>
    %52 = vector.extract_strided_slice %10 {offsets = [0, 1, 0, 0], sizes = [1, 8, 1, 22], strides = [1, 1, 1, 1]} : vector<1x14x1x22xf32> to vector<1x8x1x22xf32>
    %c7 = arith.constant 7 : index
    %53 = memref.load %arg1[%c7] : memref<98xf32, #tpu.memory_space<smem>>
    %54 = vector.extract_strided_slice %52 {offsets = [0, 0, 0, 0], sizes = [1, 8, 1, 16], strides = [1, 1, 1, 1]} : vector<1x8x1x22xf32> to vector<1x8x1x16xf32>
    %55 = vector.broadcast %53 : f32 to vector<1x8x1x16xf32>
    %56 = arith.mulf %55, %54 : vector<1x8x1x16xf32>
    %57 = arith.addf %51, %56 : vector<1x8x1x16xf32>
    %c8 = arith.constant 8 : index
    %58 = memref.load %arg1[%c8] : memref<98xf32, #tpu.memory_space<smem>>
    %59 = vector.extract_strided_slice %52 {offsets = [0, 0, 0, 1], sizes = [1, 8, 1, 16], strides = [1, 1, 1, 1]} : vector<1x8x1x22xf32> to vector<1x8x1x16xf32>
    %60 = vector.broadcast %58 : f32 to vector<1x8x1x16xf32>
    %61 = arith.mulf %60, %59 : vector<1x8x1x16xf32>
    %62 = arith.addf %57, %61 : vector<1x8x1x16xf32>
    %c9 = arith.constant 9 : index
    %63 = memref.load %arg1[%c9] : memref<98xf32, #tpu.memory_space<smem>>
    %64 = vector.extract_strided_slice %52 {offsets = [0, 0, 0, 2], sizes = [1, 8, 1, 16], strides = [1, 1, 1, 1]} : vector<1x8x1x22xf32> to vector<1x8x1x16xf32>
    %65 = vector.broadcast %63 : f32 to vector<1x8x1x16xf32>
    %66 = arith.mulf %65, %64 : vector<1x8x1x16xf32>
    %67 = arith.addf %62, %66 : vector<1x8x1x16xf32>
    %c10 = arith.constant 10 : index
    %68 = memref.load %arg1[%c10] : memref<98xf32, #tpu.memory_space<smem>>
    %69 = vector.extract_strided_slice %52 {offsets = [0, 0, 0, 3], sizes = [1, 8, 1, 16], strides = [1, 1, 1, 1]} : vector<1x8x1x22xf32> to vector<1x8x1x16xf32>
    %70 = vector.broadcast %68 : f32 to vector<1x8x1x16xf32>
    %71 = arith.mulf %70, %69 : vector<1x8x1x16xf32>
    %72 = arith.addf %67, %71 : vector<1x8x1x16xf32>
    %c11 = arith.constant 11 : index
    %73 = memref.load %arg1[%c11] : memref<98xf32, #tpu.memory_space<smem>>
    %74 = vector.extract_strided_slice %52 {offsets = [0, 0, 0, 4], sizes = [1, 8, 1, 16], strides = [1, 1, 1, 1]} : vector<1x8x1x22xf32> to vector<1x8x1x16xf32>
    %75 = vector.broadcast %73 : f32 to vector<1x8x1x16xf32>
    %76 = arith.mulf %75, %74 : vector<1x8x1x16xf32>
    %77 = arith.addf %72, %76 : vector<1x8x1x16xf32>
    %c12 = arith.constant 12 : index
    %78 = memref.load %arg1[%c12] : memref<98xf32, #tpu.memory_space<smem>>
    %79 = vector.extract_strided_slice %52 {offsets = [0, 0, 0, 5], sizes = [1, 8, 1, 16], strides = [1, 1, 1, 1]} : vector<1x8x1x22xf32> to vector<1x8x1x16xf32>
    %80 = vector.broadcast %78 : f32 to vector<1x8x1x16xf32>
    %81 = arith.mulf %80, %79 : vector<1x8x1x16xf32>
    %82 = arith.addf %77, %81 : vector<1x8x1x16xf32>
    %c13 = arith.constant 13 : index
    %83 = memref.load %arg1[%c13] : memref<98xf32, #tpu.memory_space<smem>>
    %84 = vector.extract_strided_slice %52 {offsets = [0, 0, 0, 6], sizes = [1, 8, 1, 16], strides = [1, 1, 1, 1]} : vector<1x8x1x22xf32> to vector<1x8x1x16xf32>
    %85 = vector.broadcast %83 : f32 to vector<1x8x1x16xf32>
    %86 = arith.mulf %85, %84 : vector<1x8x1x16xf32>
    %87 = arith.addf %82, %86 : vector<1x8x1x16xf32>
    %88 = vector.extract_strided_slice %10 {offsets = [0, 2, 0, 0], sizes = [1, 8, 1, 22], strides = [1, 1, 1, 1]} : vector<1x14x1x22xf32> to vector<1x8x1x22xf32>
    %c14 = arith.constant 14 : index
    %89 = memref.load %arg1[%c14] : memref<98xf32, #tpu.memory_space<smem>>
    %90 = vector.extract_strided_slice %88 {offsets = [0, 0, 0, 0], sizes = [1, 8, 1, 16], strides = [1, 1, 1, 1]} : vector<1x8x1x22xf32> to vector<1x8x1x16xf32>
    %91 = vector.broadcast %89 : f32 to vector<1x8x1x16xf32>
    %92 = arith.mulf %91, %90 : vector<1x8x1x16xf32>
    %93 = arith.addf %87, %92 : vector<1x8x1x16xf32>
    %c15 = arith.constant 15 : index
    %94 = memref.load %arg1[%c15] : memref<98xf32, #tpu.memory_space<smem>>
    %95 = vector.extract_strided_slice %88 {offsets = [0, 0, 0, 1], sizes = [1, 8, 1, 16], strides = [1, 1, 1, 1]} : vector<1x8x1x22xf32> to vector<1x8x1x16xf32>
    %96 = vector.broadcast %94 : f32 to vector<1x8x1x16xf32>
    %97 = arith.mulf %96, %95 : vector<1x8x1x16xf32>
    %98 = arith.addf %93, %97 : vector<1x8x1x16xf32>
    %c16 = arith.constant 16 : index
    %99 = memref.load %arg1[%c16] : memref<98xf32, #tpu.memory_space<smem>>
    %100 = vector.extract_strided_slice %88 {offsets = [0, 0, 0, 2], sizes = [1, 8, 1, 16], strides = [1, 1, 1, 1]} : vector<1x8x1x22xf32> to vector<1x8x1x16xf32>
    %101 = vector.broadcast %99 : f32 to vector<1x8x1x16xf32>
    %102 = arith.mulf %101, %100 : vector<1x8x1x16xf32>
    %103 = arith.addf %98, %102 : vector<1x8x1x16xf32>
    %c17 = arith.constant 17 : index
    %104 = memref.load %arg1[%c17] : memref<98xf32, #tpu.memory_space<smem>>
    %105 = vector.extract_strided_slice %88 {offsets = [0, 0, 0, 3], sizes = [1, 8, 1, 16], strides = [1, 1, 1, 1]} : vector<1x8x1x22xf32> to vector<1x8x1x16xf32>
    %106 = vector.broadcast %104 : f32 to vector<1x8x1x16xf32>
    %107 = arith.mulf %106, %105 : vector<1x8x1x16xf32>
    %108 = arith.addf %103, %107 : vector<1x8x1x16xf32>
    %c18 = arith.constant 18 : index
    %109 = memref.load %arg1[%c18] : memref<98xf32, #tpu.memory_space<smem>>
    %110 = vector.extract_strided_slice %88 {offsets = [0, 0, 0, 4], sizes = [1, 8, 1, 16], strides = [1, 1, 1, 1]} : vector<1x8x1x22xf32> to vector<1x8x1x16xf32>
    %111 = vector.broadcast %109 : f32 to vector<1x8x1x16xf32>
    %112 = arith.mulf %111, %110 : vector<1x8x1x16xf32>
    %113 = arith.addf %108, %112 : vector<1x8x1x16xf32>
    %c19 = arith.constant 19 : index
    %114 = memref.load %arg1[%c19] : memref<98xf32, #tpu.memory_space<smem>>
    %115 = vector.extract_strided_slice %88 {offsets = [0, 0, 0, 5], sizes = [1, 8, 1, 16], strides = [1, 1, 1, 1]} : vector<1x8x1x22xf32> to vector<1x8x1x16xf32>
    %116 = vector.broadcast %114 : f32 to vector<1x8x1x16xf32>
    %117 = arith.mulf %116, %115 : vector<1x8x1x16xf32>
    %118 = arith.addf %113, %117 : vector<1x8x1x16xf32>
    %c20 = arith.constant 20 : index
    %119 = memref.load %arg1[%c20] : memref<98xf32, #tpu.memory_space<smem>>
    %120 = vector.extract_strided_slice %88 {offsets = [0, 0, 0, 6], sizes = [1, 8, 1, 16], strides = [1, 1, 1, 1]} : vector<1x8x1x22xf32> to vector<1x8x1x16xf32>
    %121 = vector.broadcast %119 : f32 to vector<1x8x1x16xf32>
    %122 = arith.mulf %121, %120 : vector<1x8x1x16xf32>
    %123 = arith.addf %118, %122 : vector<1x8x1x16xf32>
    %124 = vector.extract_strided_slice %10 {offsets = [0, 3, 0, 0], sizes = [1, 8, 1, 22], strides = [1, 1, 1, 1]} : vector<1x14x1x22xf32> to vector<1x8x1x22xf32>
    %c21 = arith.constant 21 : index
    %125 = memref.load %arg1[%c21] : memref<98xf32, #tpu.memory_space<smem>>
    %126 = vector.extract_strided_slice %124 {offsets = [0, 0, 0, 0], sizes = [1, 8, 1, 16], strides = [1, 1, 1, 1]} : vector<1x8x1x22xf32> to vector<1x8x1x16xf32>
    %127 = vector.broadcast %125 : f32 to vector<1x8x1x16xf32>
    %128 = arith.mulf %127, %126 : vector<1x8x1x16xf32>
    %129 = arith.addf %123, %128 : vector<1x8x1x16xf32>
    %c22 = arith.constant 22 : index
    %130 = memref.load %arg1[%c22] : memref<98xf32, #tpu.memory_space<smem>>
    %131 = vector.extract_strided_slice %124 {offsets = [0, 0, 0, 1], sizes = [1, 8, 1, 16], strides = [1, 1, 1, 1]} : vector<1x8x1x22xf32> to vector<1x8x1x16xf32>
    %132 = vector.broadcast %130 : f32 to vector<1x8x1x16xf32>
    %133 = arith.mulf %132, %131 : vector<1x8x1x16xf32>
    %134 = arith.addf %129, %133 : vector<1x8x1x16xf32>
    %c23 = arith.constant 23 : index
    %135 = memref.load %arg1[%c23] : memref<98xf32, #tpu.memory_space<smem>>
    %136 = vector.extract_strided_slice %124 {offsets = [0, 0, 0, 2], sizes = [1, 8, 1, 16], strides = [1, 1, 1, 1]} : vector<1x8x1x22xf32> to vector<1x8x1x16xf32>
    %137 = vector.broadcast %135 : f32 to vector<1x8x1x16xf32>
    %138 = arith.mulf %137, %136 : vector<1x8x1x16xf32>
    %139 = arith.addf %134, %138 : vector<1x8x1x16xf32>
    %c24 = arith.constant 24 : index
    %140 = memref.load %arg1[%c24] : memref<98xf32, #tpu.memory_space<smem>>
    %141 = vector.extract_strided_slice %124 {offsets = [0, 0, 0, 3], sizes = [1, 8, 1, 16], strides = [1, 1, 1, 1]} : vector<1x8x1x22xf32> to vector<1x8x1x16xf32>
    %142 = vector.broadcast %140 : f32 to vector<1x8x1x16xf32>
    %143 = arith.mulf %142, %141 : vector<1x8x1x16xf32>
    %144 = arith.addf %139, %143 : vector<1x8x1x16xf32>
    %c25 = arith.constant 25 : index
    %145 = memref.load %arg1[%c25] : memref<98xf32, #tpu.memory_space<smem>>
    %146 = vector.extract_strided_slice %124 {offsets = [0, 0, 0, 4], sizes = [1, 8, 1, 16], strides = [1, 1, 1, 1]} : vector<1x8x1x22xf32> to vector<1x8x1x16xf32>
    %147 = vector.broadcast %145 : f32 to vector<1x8x1x16xf32>
    %148 = arith.mulf %147, %146 : vector<1x8x1x16xf32>
    %149 = arith.addf %144, %148 : vector<1x8x1x16xf32>
    %c26 = arith.constant 26 : index
    %150 = memref.load %arg1[%c26] : memref<98xf32, #tpu.memory_space<smem>>
    %151 = vector.extract_strided_slice %124 {offsets = [0, 0, 0, 5], sizes = [1, 8, 1, 16], strides = [1, 1, 1, 1]} : vector<1x8x1x22xf32> to vector<1x8x1x16xf32>
    %152 = vector.broadcast %150 : f32 to vector<1x8x1x16xf32>
    %153 = arith.mulf %152, %151 : vector<1x8x1x16xf32>
    %154 = arith.addf %149, %153 : vector<1x8x1x16xf32>
    %c27 = arith.constant 27 : index
    %155 = memref.load %arg1[%c27] : memref<98xf32, #tpu.memory_space<smem>>
    %156 = vector.extract_strided_slice %124 {offsets = [0, 0, 0, 6], sizes = [1, 8, 1, 16], strides = [1, 1, 1, 1]} : vector<1x8x1x22xf32> to vector<1x8x1x16xf32>
    %157 = vector.broadcast %155 : f32 to vector<1x8x1x16xf32>
    %158 = arith.mulf %157, %156 : vector<1x8x1x16xf32>
    %159 = arith.addf %154, %158 : vector<1x8x1x16xf32>
    %160 = vector.extract_strided_slice %10 {offsets = [0, 4, 0, 0], sizes = [1, 8, 1, 22], strides = [1, 1, 1, 1]} : vector<1x14x1x22xf32> to vector<1x8x1x22xf32>
    %c28 = arith.constant 28 : index
    %161 = memref.load %arg1[%c28] : memref<98xf32, #tpu.memory_space<smem>>
    %162 = vector.extract_strided_slice %160 {offsets = [0, 0, 0, 0], sizes = [1, 8, 1, 16], strides = [1, 1, 1, 1]} : vector<1x8x1x22xf32> to vector<1x8x1x16xf32>
    %163 = vector.broadcast %161 : f32 to vector<1x8x1x16xf32>
    %164 = arith.mulf %163, %162 : vector<1x8x1x16xf32>
    %165 = arith.addf %159, %164 : vector<1x8x1x16xf32>
    %c29 = arith.constant 29 : index
    %166 = memref.load %arg1[%c29] : memref<98xf32, #tpu.memory_space<smem>>
    %167 = vector.extract_strided_slice %160 {offsets = [0, 0, 0, 1], sizes = [1, 8, 1, 16], strides = [1, 1, 1, 1]} : vector<1x8x1x22xf32> to vector<1x8x1x16xf32>
    %168 = vector.broadcast %166 : f32 to vector<1x8x1x16xf32>
    %169 = arith.mulf %168, %167 : vector<1x8x1x16xf32>
    %170 = arith.addf %165, %169 : vector<1x8x1x16xf32>
    %c30 = arith.constant 30 : index
    %171 = memref.load %arg1[%c30] : memref<98xf32, #tpu.memory_space<smem>>
    %172 = vector.extract_strided_slice %160 {offsets = [0, 0, 0, 2], sizes = [1, 8, 1, 16], strides = [1, 1, 1, 1]} : vector<1x8x1x22xf32> to vector<1x8x1x16xf32>
    %173 = vector.broadcast %171 : f32 to vector<1x8x1x16xf32>
    %174 = arith.mulf %173, %172 : vector<1x8x1x16xf32>
    %175 = arith.addf %170, %174 : vector<1x8x1x16xf32>
    %c31 = arith.constant 31 : index
    %176 = memref.load %arg1[%c31] : memref<98xf32, #tpu.memory_space<smem>>
    %177 = vector.extract_strided_slice %160 {offsets = [0, 0, 0, 3], sizes = [1, 8, 1, 16], strides = [1, 1, 1, 1]} : vector<1x8x1x22xf32> to vector<1x8x1x16xf32>
    %178 = vector.broadcast %176 : f32 to vector<1x8x1x16xf32>
    %179 = arith.mulf %178, %177 : vector<1x8x1x16xf32>
    %180 = arith.addf %175, %179 : vector<1x8x1x16xf32>
    %c32 = arith.constant 32 : index
    %181 = memref.load %arg1[%c32] : memref<98xf32, #tpu.memory_space<smem>>
    %182 = vector.extract_strided_slice %160 {offsets = [0, 0, 0, 4], sizes = [1, 8, 1, 16], strides = [1, 1, 1, 1]} : vector<1x8x1x22xf32> to vector<1x8x1x16xf32>
    %183 = vector.broadcast %181 : f32 to vector<1x8x1x16xf32>
    %184 = arith.mulf %183, %182 : vector<1x8x1x16xf32>
    %185 = arith.addf %180, %184 : vector<1x8x1x16xf32>
    %c33 = arith.constant 33 : index
    %186 = memref.load %arg1[%c33] : memref<98xf32, #tpu.memory_space<smem>>
    %187 = vector.extract_strided_slice %160 {offsets = [0, 0, 0, 5], sizes = [1, 8, 1, 16], strides = [1, 1, 1, 1]} : vector<1x8x1x22xf32> to vector<1x8x1x16xf32>
    %188 = vector.broadcast %186 : f32 to vector<1x8x1x16xf32>
    %189 = arith.mulf %188, %187 : vector<1x8x1x16xf32>
    %190 = arith.addf %185, %189 : vector<1x8x1x16xf32>
    %c34 = arith.constant 34 : index
    %191 = memref.load %arg1[%c34] : memref<98xf32, #tpu.memory_space<smem>>
    %192 = vector.extract_strided_slice %160 {offsets = [0, 0, 0, 6], sizes = [1, 8, 1, 16], strides = [1, 1, 1, 1]} : vector<1x8x1x22xf32> to vector<1x8x1x16xf32>
    %193 = vector.broadcast %191 : f32 to vector<1x8x1x16xf32>
    %194 = arith.mulf %193, %192 : vector<1x8x1x16xf32>
    %195 = arith.addf %190, %194 : vector<1x8x1x16xf32>
    %196 = vector.extract_strided_slice %10 {offsets = [0, 5, 0, 0], sizes = [1, 8, 1, 22], strides = [1, 1, 1, 1]} : vector<1x14x1x22xf32> to vector<1x8x1x22xf32>
    %c35 = arith.constant 35 : index
    %197 = memref.load %arg1[%c35] : memref<98xf32, #tpu.memory_space<smem>>
    %198 = vector.extract_strided_slice %196 {offsets = [0, 0, 0, 0], sizes = [1, 8, 1, 16], strides = [1, 1, 1, 1]} : vector<1x8x1x22xf32> to vector<1x8x1x16xf32>
    %199 = vector.broadcast %197 : f32 to vector<1x8x1x16xf32>
    %200 = arith.mulf %199, %198 : vector<1x8x1x16xf32>
    %201 = arith.addf %195, %200 : vector<1x8x1x16xf32>
    %c36 = arith.constant 36 : index
    %202 = memref.load %arg1[%c36] : memref<98xf32, #tpu.memory_space<smem>>
    %203 = vector.extract_strided_slice %196 {offsets = [0, 0, 0, 1], sizes = [1, 8, 1, 16], strides = [1, 1, 1, 1]} : vector<1x8x1x22xf32> to vector<1x8x1x16xf32>
    %204 = vector.broadcast %202 : f32 to vector<1x8x1x16xf32>
    %205 = arith.mulf %204, %203 : vector<1x8x1x16xf32>
    %206 = arith.addf %201, %205 : vector<1x8x1x16xf32>
    %c37 = arith.constant 37 : index
    %207 = memref.load %arg1[%c37] : memref<98xf32, #tpu.memory_space<smem>>
    %208 = vector.extract_strided_slice %196 {offsets = [0, 0, 0, 2], sizes = [1, 8, 1, 16], strides = [1, 1, 1, 1]} : vector<1x8x1x22xf32> to vector<1x8x1x16xf32>
    %209 = vector.broadcast %207 : f32 to vector<1x8x1x16xf32>
    %210 = arith.mulf %209, %208 : vector<1x8x1x16xf32>
    %211 = arith.addf %206, %210 : vector<1x8x1x16xf32>
    %c38 = arith.constant 38 : index
    %212 = memref.load %arg1[%c38] : memref<98xf32, #tpu.memory_space<smem>>
    %213 = vector.extract_strided_slice %196 {offsets = [0, 0, 0, 3], sizes = [1, 8, 1, 16], strides = [1, 1, 1, 1]} : vector<1x8x1x22xf32> to vector<1x8x1x16xf32>
    %214 = vector.broadcast %212 : f32 to vector<1x8x1x16xf32>
    %215 = arith.mulf %214, %213 : vector<1x8x1x16xf32>
    %216 = arith.addf %211, %215 : vector<1x8x1x16xf32>
    %c39 = arith.constant 39 : index
    %217 = memref.load %arg1[%c39] : memref<98xf32, #tpu.memory_space<smem>>
    %218 = vector.extract_strided_slice %196 {offsets = [0, 0, 0, 4], sizes = [1, 8, 1, 16], strides = [1, 1, 1, 1]} : vector<1x8x1x22xf32> to vector<1x8x1x16xf32>
    %219 = vector.broadcast %217 : f32 to vector<1x8x1x16xf32>
    %220 = arith.mulf %219, %218 : vector<1x8x1x16xf32>
    %221 = arith.addf %216, %220 : vector<1x8x1x16xf32>
    %c40 = arith.constant 40 : index
    %222 = memref.load %arg1[%c40] : memref<98xf32, #tpu.memory_space<smem>>
    %223 = vector.extract_strided_slice %196 {offsets = [0, 0, 0, 5], sizes = [1, 8, 1, 16], strides = [1, 1, 1, 1]} : vector<1x8x1x22xf32> to vector<1x8x1x16xf32>
    %224 = vector.broadcast %222 : f32 to vector<1x8x1x16xf32>
    %225 = arith.mulf %224, %223 : vector<1x8x1x16xf32>
    %226 = arith.addf %221, %225 : vector<1x8x1x16xf32>
    %c41 = arith.constant 41 : index
    %227 = memref.load %arg1[%c41] : memref<98xf32, #tpu.memory_space<smem>>
    %228 = vector.extract_strided_slice %196 {offsets = [0, 0, 0, 6], sizes = [1, 8, 1, 16], strides = [1, 1, 1, 1]} : vector<1x8x1x22xf32> to vector<1x8x1x16xf32>
    %229 = vector.broadcast %227 : f32 to vector<1x8x1x16xf32>
    %230 = arith.mulf %229, %228 : vector<1x8x1x16xf32>
    %231 = arith.addf %226, %230 : vector<1x8x1x16xf32>
    %232 = vector.extract_strided_slice %10 {offsets = [0, 6, 0, 0], sizes = [1, 8, 1, 22], strides = [1, 1, 1, 1]} : vector<1x14x1x22xf32> to vector<1x8x1x22xf32>
    %c42 = arith.constant 42 : index
    %233 = memref.load %arg1[%c42] : memref<98xf32, #tpu.memory_space<smem>>
    %234 = vector.extract_strided_slice %232 {offsets = [0, 0, 0, 0], sizes = [1, 8, 1, 16], strides = [1, 1, 1, 1]} : vector<1x8x1x22xf32> to vector<1x8x1x16xf32>
    %235 = vector.broadcast %233 : f32 to vector<1x8x1x16xf32>
    %236 = arith.mulf %235, %234 : vector<1x8x1x16xf32>
    %237 = arith.addf %231, %236 : vector<1x8x1x16xf32>
    %c43 = arith.constant 43 : index
    %238 = memref.load %arg1[%c43] : memref<98xf32, #tpu.memory_space<smem>>
    %239 = vector.extract_strided_slice %232 {offsets = [0, 0, 0, 1], sizes = [1, 8, 1, 16], strides = [1, 1, 1, 1]} : vector<1x8x1x22xf32> to vector<1x8x1x16xf32>
    %240 = vector.broadcast %238 : f32 to vector<1x8x1x16xf32>
    %241 = arith.mulf %240, %239 : vector<1x8x1x16xf32>
    %242 = arith.addf %237, %241 : vector<1x8x1x16xf32>
    %c44 = arith.constant 44 : index
    %243 = memref.load %arg1[%c44] : memref<98xf32, #tpu.memory_space<smem>>
    %244 = vector.extract_strided_slice %232 {offsets = [0, 0, 0, 2], sizes = [1, 8, 1, 16], strides = [1, 1, 1, 1]} : vector<1x8x1x22xf32> to vector<1x8x1x16xf32>
    %245 = vector.broadcast %243 : f32 to vector<1x8x1x16xf32>
    %246 = arith.mulf %245, %244 : vector<1x8x1x16xf32>
    %247 = arith.addf %242, %246 : vector<1x8x1x16xf32>
    %c45 = arith.constant 45 : index
    %248 = memref.load %arg1[%c45] : memref<98xf32, #tpu.memory_space<smem>>
    %249 = vector.extract_strided_slice %232 {offsets = [0, 0, 0, 3], sizes = [1, 8, 1, 16], strides = [1, 1, 1, 1]} : vector<1x8x1x22xf32> to vector<1x8x1x16xf32>
    %250 = vector.broadcast %248 : f32 to vector<1x8x1x16xf32>
    %251 = arith.mulf %250, %249 : vector<1x8x1x16xf32>
    %252 = arith.addf %247, %251 : vector<1x8x1x16xf32>
    %c46 = arith.constant 46 : index
    %253 = memref.load %arg1[%c46] : memref<98xf32, #tpu.memory_space<smem>>
    %254 = vector.extract_strided_slice %232 {offsets = [0, 0, 0, 4], sizes = [1, 8, 1, 16], strides = [1, 1, 1, 1]} : vector<1x8x1x22xf32> to vector<1x8x1x16xf32>
    %255 = vector.broadcast %253 : f32 to vector<1x8x1x16xf32>
    %256 = arith.mulf %255, %254 : vector<1x8x1x16xf32>
    %257 = arith.addf %252, %256 : vector<1x8x1x16xf32>
    %c47 = arith.constant 47 : index
    %258 = memref.load %arg1[%c47] : memref<98xf32, #tpu.memory_space<smem>>
    %259 = vector.extract_strided_slice %232 {offsets = [0, 0, 0, 5], sizes = [1, 8, 1, 16], strides = [1, 1, 1, 1]} : vector<1x8x1x22xf32> to vector<1x8x1x16xf32>
    %260 = vector.broadcast %258 : f32 to vector<1x8x1x16xf32>
    %261 = arith.mulf %260, %259 : vector<1x8x1x16xf32>
    %262 = arith.addf %257, %261 : vector<1x8x1x16xf32>
    %c48 = arith.constant 48 : index
    %263 = memref.load %arg1[%c48] : memref<98xf32, #tpu.memory_space<smem>>
    %264 = vector.extract_strided_slice %232 {offsets = [0, 0, 0, 6], sizes = [1, 8, 1, 16], strides = [1, 1, 1, 1]} : vector<1x8x1x22xf32> to vector<1x8x1x16xf32>
    %265 = vector.broadcast %263 : f32 to vector<1x8x1x16xf32>
    %266 = arith.mulf %265, %264 : vector<1x8x1x16xf32>
    %267 = arith.addf %262, %266 : vector<1x8x1x16xf32>
    %268 = vector.extract_strided_slice %14 {offsets = [0, 0, 0, 0], sizes = [1, 8, 1, 22], strides = [1, 1, 1, 1]} : vector<1x14x1x22xf32> to vector<1x8x1x22xf32>
    %c49 = arith.constant 49 : index
    %269 = memref.load %arg1[%c49] : memref<98xf32, #tpu.memory_space<smem>>
    %270 = vector.extract_strided_slice %268 {offsets = [0, 0, 0, 0], sizes = [1, 8, 1, 16], strides = [1, 1, 1, 1]} : vector<1x8x1x22xf32> to vector<1x8x1x16xf32>
    %271 = vector.broadcast %269 : f32 to vector<1x8x1x16xf32>
    %272 = arith.mulf %271, %270 : vector<1x8x1x16xf32>
    %273 = arith.addf %267, %272 : vector<1x8x1x16xf32>
    %c50 = arith.constant 50 : index
    %274 = memref.load %arg1[%c50] : memref<98xf32, #tpu.memory_space<smem>>
    %275 = vector.extract_strided_slice %268 {offsets = [0, 0, 0, 1], sizes = [1, 8, 1, 16], strides = [1, 1, 1, 1]} : vector<1x8x1x22xf32> to vector<1x8x1x16xf32>
    %276 = vector.broadcast %274 : f32 to vector<1x8x1x16xf32>
    %277 = arith.mulf %276, %275 : vector<1x8x1x16xf32>
    %278 = arith.addf %273, %277 : vector<1x8x1x16xf32>
    %c51 = arith.constant 51 : index
    %279 = memref.load %arg1[%c51] : memref<98xf32, #tpu.memory_space<smem>>
    %280 = vector.extract_strided_slice %268 {offsets = [0, 0, 0, 2], sizes = [1, 8, 1, 16], strides = [1, 1, 1, 1]} : vector<1x8x1x22xf32> to vector<1x8x1x16xf32>
    %281 = vector.broadcast %279 : f32 to vector<1x8x1x16xf32>
    %282 = arith.mulf %281, %280 : vector<1x8x1x16xf32>
    %283 = arith.addf %278, %282 : vector<1x8x1x16xf32>
    %c52 = arith.constant 52 : index
    %284 = memref.load %arg1[%c52] : memref<98xf32, #tpu.memory_space<smem>>
    %285 = vector.extract_strided_slice %268 {offsets = [0, 0, 0, 3], sizes = [1, 8, 1, 16], strides = [1, 1, 1, 1]} : vector<1x8x1x22xf32> to vector<1x8x1x16xf32>
    %286 = vector.broadcast %284 : f32 to vector<1x8x1x16xf32>
    %287 = arith.mulf %286, %285 : vector<1x8x1x16xf32>
    %288 = arith.addf %283, %287 : vector<1x8x1x16xf32>
    %c53 = arith.constant 53 : index
    %289 = memref.load %arg1[%c53] : memref<98xf32, #tpu.memory_space<smem>>
    %290 = vector.extract_strided_slice %268 {offsets = [0, 0, 0, 4], sizes = [1, 8, 1, 16], strides = [1, 1, 1, 1]} : vector<1x8x1x22xf32> to vector<1x8x1x16xf32>
    %291 = vector.broadcast %289 : f32 to vector<1x8x1x16xf32>
    %292 = arith.mulf %291, %290 : vector<1x8x1x16xf32>
    %293 = arith.addf %288, %292 : vector<1x8x1x16xf32>
    %c54 = arith.constant 54 : index
    %294 = memref.load %arg1[%c54] : memref<98xf32, #tpu.memory_space<smem>>
    %295 = vector.extract_strided_slice %268 {offsets = [0, 0, 0, 5], sizes = [1, 8, 1, 16], strides = [1, 1, 1, 1]} : vector<1x8x1x22xf32> to vector<1x8x1x16xf32>
    %296 = vector.broadcast %294 : f32 to vector<1x8x1x16xf32>
    %297 = arith.mulf %296, %295 : vector<1x8x1x16xf32>
    %298 = arith.addf %293, %297 : vector<1x8x1x16xf32>
    %c55 = arith.constant 55 : index
    %299 = memref.load %arg1[%c55] : memref<98xf32, #tpu.memory_space<smem>>
    %300 = vector.extract_strided_slice %268 {offsets = [0, 0, 0, 6], sizes = [1, 8, 1, 16], strides = [1, 1, 1, 1]} : vector<1x8x1x22xf32> to vector<1x8x1x16xf32>
    %301 = vector.broadcast %299 : f32 to vector<1x8x1x16xf32>
    %302 = arith.mulf %301, %300 : vector<1x8x1x16xf32>
    %303 = arith.addf %298, %302 : vector<1x8x1x16xf32>
    %304 = vector.extract_strided_slice %14 {offsets = [0, 1, 0, 0], sizes = [1, 8, 1, 22], strides = [1, 1, 1, 1]} : vector<1x14x1x22xf32> to vector<1x8x1x22xf32>
    %c56 = arith.constant 56 : index
    %305 = memref.load %arg1[%c56] : memref<98xf32, #tpu.memory_space<smem>>
    %306 = vector.extract_strided_slice %304 {offsets = [0, 0, 0, 0], sizes = [1, 8, 1, 16], strides = [1, 1, 1, 1]} : vector<1x8x1x22xf32> to vector<1x8x1x16xf32>
    %307 = vector.broadcast %305 : f32 to vector<1x8x1x16xf32>
    %308 = arith.mulf %307, %306 : vector<1x8x1x16xf32>
    %309 = arith.addf %303, %308 : vector<1x8x1x16xf32>
    %c57 = arith.constant 57 : index
    %310 = memref.load %arg1[%c57] : memref<98xf32, #tpu.memory_space<smem>>
    %311 = vector.extract_strided_slice %304 {offsets = [0, 0, 0, 1], sizes = [1, 8, 1, 16], strides = [1, 1, 1, 1]} : vector<1x8x1x22xf32> to vector<1x8x1x16xf32>
    %312 = vector.broadcast %310 : f32 to vector<1x8x1x16xf32>
    %313 = arith.mulf %312, %311 : vector<1x8x1x16xf32>
    %314 = arith.addf %309, %313 : vector<1x8x1x16xf32>
    %c58 = arith.constant 58 : index
    %315 = memref.load %arg1[%c58] : memref<98xf32, #tpu.memory_space<smem>>
    %316 = vector.extract_strided_slice %304 {offsets = [0, 0, 0, 2], sizes = [1, 8, 1, 16], strides = [1, 1, 1, 1]} : vector<1x8x1x22xf32> to vector<1x8x1x16xf32>
    %317 = vector.broadcast %315 : f32 to vector<1x8x1x16xf32>
    %318 = arith.mulf %317, %316 : vector<1x8x1x16xf32>
    %319 = arith.addf %314, %318 : vector<1x8x1x16xf32>
    %c59 = arith.constant 59 : index
    %320 = memref.load %arg1[%c59] : memref<98xf32, #tpu.memory_space<smem>>
    %321 = vector.extract_strided_slice %304 {offsets = [0, 0, 0, 3], sizes = [1, 8, 1, 16], strides = [1, 1, 1, 1]} : vector<1x8x1x22xf32> to vector<1x8x1x16xf32>
    %322 = vector.broadcast %320 : f32 to vector<1x8x1x16xf32>
    %323 = arith.mulf %322, %321 : vector<1x8x1x16xf32>
    %324 = arith.addf %319, %323 : vector<1x8x1x16xf32>
    %c60 = arith.constant 60 : index
    %325 = memref.load %arg1[%c60] : memref<98xf32, #tpu.memory_space<smem>>
    %326 = vector.extract_strided_slice %304 {offsets = [0, 0, 0, 4], sizes = [1, 8, 1, 16], strides = [1, 1, 1, 1]} : vector<1x8x1x22xf32> to vector<1x8x1x16xf32>
    %327 = vector.broadcast %325 : f32 to vector<1x8x1x16xf32>
    %328 = arith.mulf %327, %326 : vector<1x8x1x16xf32>
    %329 = arith.addf %324, %328 : vector<1x8x1x16xf32>
    %c61 = arith.constant 61 : index
    %330 = memref.load %arg1[%c61] : memref<98xf32, #tpu.memory_space<smem>>
    %331 = vector.extract_strided_slice %304 {offsets = [0, 0, 0, 5], sizes = [1, 8, 1, 16], strides = [1, 1, 1, 1]} : vector<1x8x1x22xf32> to vector<1x8x1x16xf32>
    %332 = vector.broadcast %330 : f32 to vector<1x8x1x16xf32>
    %333 = arith.mulf %332, %331 : vector<1x8x1x16xf32>
    %334 = arith.addf %329, %333 : vector<1x8x1x16xf32>
    %c62 = arith.constant 62 : index
    %335 = memref.load %arg1[%c62] : memref<98xf32, #tpu.memory_space<smem>>
    %336 = vector.extract_strided_slice %304 {offsets = [0, 0, 0, 6], sizes = [1, 8, 1, 16], strides = [1, 1, 1, 1]} : vector<1x8x1x22xf32> to vector<1x8x1x16xf32>
    %337 = vector.broadcast %335 : f32 to vector<1x8x1x16xf32>
    %338 = arith.mulf %337, %336 : vector<1x8x1x16xf32>
    %339 = arith.addf %334, %338 : vector<1x8x1x16xf32>
    %340 = vector.extract_strided_slice %14 {offsets = [0, 2, 0, 0], sizes = [1, 8, 1, 22], strides = [1, 1, 1, 1]} : vector<1x14x1x22xf32> to vector<1x8x1x22xf32>
    %c63 = arith.constant 63 : index
    %341 = memref.load %arg1[%c63] : memref<98xf32, #tpu.memory_space<smem>>
    %342 = vector.extract_strided_slice %340 {offsets = [0, 0, 0, 0], sizes = [1, 8, 1, 16], strides = [1, 1, 1, 1]} : vector<1x8x1x22xf32> to vector<1x8x1x16xf32>
    %343 = vector.broadcast %341 : f32 to vector<1x8x1x16xf32>
    %344 = arith.mulf %343, %342 : vector<1x8x1x16xf32>
    %345 = arith.addf %339, %344 : vector<1x8x1x16xf32>
    %c64 = arith.constant 64 : index
    %346 = memref.load %arg1[%c64] : memref<98xf32, #tpu.memory_space<smem>>
    %347 = vector.extract_strided_slice %340 {offsets = [0, 0, 0, 1], sizes = [1, 8, 1, 16], strides = [1, 1, 1, 1]} : vector<1x8x1x22xf32> to vector<1x8x1x16xf32>
    %348 = vector.broadcast %346 : f32 to vector<1x8x1x16xf32>
    %349 = arith.mulf %348, %347 : vector<1x8x1x16xf32>
    %350 = arith.addf %345, %349 : vector<1x8x1x16xf32>
    %c65 = arith.constant 65 : index
    %351 = memref.load %arg1[%c65] : memref<98xf32, #tpu.memory_space<smem>>
    %352 = vector.extract_strided_slice %340 {offsets = [0, 0, 0, 2], sizes = [1, 8, 1, 16], strides = [1, 1, 1, 1]} : vector<1x8x1x22xf32> to vector<1x8x1x16xf32>
    %353 = vector.broadcast %351 : f32 to vector<1x8x1x16xf32>
    %354 = arith.mulf %353, %352 : vector<1x8x1x16xf32>
    %355 = arith.addf %350, %354 : vector<1x8x1x16xf32>
    %c66 = arith.constant 66 : index
    %356 = memref.load %arg1[%c66] : memref<98xf32, #tpu.memory_space<smem>>
    %357 = vector.extract_strided_slice %340 {offsets = [0, 0, 0, 3], sizes = [1, 8, 1, 16], strides = [1, 1, 1, 1]} : vector<1x8x1x22xf32> to vector<1x8x1x16xf32>
    %358 = vector.broadcast %356 : f32 to vector<1x8x1x16xf32>
    %359 = arith.mulf %358, %357 : vector<1x8x1x16xf32>
    %360 = arith.addf %355, %359 : vector<1x8x1x16xf32>
    %c67 = arith.constant 67 : index
    %361 = memref.load %arg1[%c67] : memref<98xf32, #tpu.memory_space<smem>>
    %362 = vector.extract_strided_slice %340 {offsets = [0, 0, 0, 4], sizes = [1, 8, 1, 16], strides = [1, 1, 1, 1]} : vector<1x8x1x22xf32> to vector<1x8x1x16xf32>
    %363 = vector.broadcast %361 : f32 to vector<1x8x1x16xf32>
    %364 = arith.mulf %363, %362 : vector<1x8x1x16xf32>
    %365 = arith.addf %360, %364 : vector<1x8x1x16xf32>
    %c68 = arith.constant 68 : index
    %366 = memref.load %arg1[%c68] : memref<98xf32, #tpu.memory_space<smem>>
    %367 = vector.extract_strided_slice %340 {offsets = [0, 0, 0, 5], sizes = [1, 8, 1, 16], strides = [1, 1, 1, 1]} : vector<1x8x1x22xf32> to vector<1x8x1x16xf32>
    %368 = vector.broadcast %366 : f32 to vector<1x8x1x16xf32>
    %369 = arith.mulf %368, %367 : vector<1x8x1x16xf32>
    %370 = arith.addf %365, %369 : vector<1x8x1x16xf32>
    %c69 = arith.constant 69 : index
    %371 = memref.load %arg1[%c69] : memref<98xf32, #tpu.memory_space<smem>>
    %372 = vector.extract_strided_slice %340 {offsets = [0, 0, 0, 6], sizes = [1, 8, 1, 16], strides = [1, 1, 1, 1]} : vector<1x8x1x22xf32> to vector<1x8x1x16xf32>
    %373 = vector.broadcast %371 : f32 to vector<1x8x1x16xf32>
    %374 = arith.mulf %373, %372 : vector<1x8x1x16xf32>
    %375 = arith.addf %370, %374 : vector<1x8x1x16xf32>
    %376 = vector.extract_strided_slice %14 {offsets = [0, 3, 0, 0], sizes = [1, 8, 1, 22], strides = [1, 1, 1, 1]} : vector<1x14x1x22xf32> to vector<1x8x1x22xf32>
    %c70 = arith.constant 70 : index
    %377 = memref.load %arg1[%c70] : memref<98xf32, #tpu.memory_space<smem>>
    %378 = vector.extract_strided_slice %376 {offsets = [0, 0, 0, 0], sizes = [1, 8, 1, 16], strides = [1, 1, 1, 1]} : vector<1x8x1x22xf32> to vector<1x8x1x16xf32>
    %379 = vector.broadcast %377 : f32 to vector<1x8x1x16xf32>
    %380 = arith.mulf %379, %378 : vector<1x8x1x16xf32>
    %381 = arith.addf %375, %380 : vector<1x8x1x16xf32>
    %c71 = arith.constant 71 : index
    %382 = memref.load %arg1[%c71] : memref<98xf32, #tpu.memory_space<smem>>
    %383 = vector.extract_strided_slice %376 {offsets = [0, 0, 0, 1], sizes = [1, 8, 1, 16], strides = [1, 1, 1, 1]} : vector<1x8x1x22xf32> to vector<1x8x1x16xf32>
    %384 = vector.broadcast %382 : f32 to vector<1x8x1x16xf32>
    %385 = arith.mulf %384, %383 : vector<1x8x1x16xf32>
    %386 = arith.addf %381, %385 : vector<1x8x1x16xf32>
    %c72 = arith.constant 72 : index
    %387 = memref.load %arg1[%c72] : memref<98xf32, #tpu.memory_space<smem>>
    %388 = vector.extract_strided_slice %376 {offsets = [0, 0, 0, 2], sizes = [1, 8, 1, 16], strides = [1, 1, 1, 1]} : vector<1x8x1x22xf32> to vector<1x8x1x16xf32>
    %389 = vector.broadcast %387 : f32 to vector<1x8x1x16xf32>
    %390 = arith.mulf %389, %388 : vector<1x8x1x16xf32>
    %391 = arith.addf %386, %390 : vector<1x8x1x16xf32>
    %c73 = arith.constant 73 : index
    %392 = memref.load %arg1[%c73] : memref<98xf32, #tpu.memory_space<smem>>
    %393 = vector.extract_strided_slice %376 {offsets = [0, 0, 0, 3], sizes = [1, 8, 1, 16], strides = [1, 1, 1, 1]} : vector<1x8x1x22xf32> to vector<1x8x1x16xf32>
    %394 = vector.broadcast %392 : f32 to vector<1x8x1x16xf32>
    %395 = arith.mulf %394, %393 : vector<1x8x1x16xf32>
    %396 = arith.addf %391, %395 : vector<1x8x1x16xf32>
    %c74 = arith.constant 74 : index
    %397 = memref.load %arg1[%c74] : memref<98xf32, #tpu.memory_space<smem>>
    %398 = vector.extract_strided_slice %376 {offsets = [0, 0, 0, 4], sizes = [1, 8, 1, 16], strides = [1, 1, 1, 1]} : vector<1x8x1x22xf32> to vector<1x8x1x16xf32>
    %399 = vector.broadcast %397 : f32 to vector<1x8x1x16xf32>
    %400 = arith.mulf %399, %398 : vector<1x8x1x16xf32>
    %401 = arith.addf %396, %400 : vector<1x8x1x16xf32>
    %c75 = arith.constant 75 : index
    %402 = memref.load %arg1[%c75] : memref<98xf32, #tpu.memory_space<smem>>
    %403 = vector.extract_strided_slice %376 {offsets = [0, 0, 0, 5], sizes = [1, 8, 1, 16], strides = [1, 1, 1, 1]} : vector<1x8x1x22xf32> to vector<1x8x1x16xf32>
    %404 = vector.broadcast %402 : f32 to vector<1x8x1x16xf32>
    %405 = arith.mulf %404, %403 : vector<1x8x1x16xf32>
    %406 = arith.addf %401, %405 : vector<1x8x1x16xf32>
    %c76 = arith.constant 76 : index
    %407 = memref.load %arg1[%c76] : memref<98xf32, #tpu.memory_space<smem>>
    %408 = vector.extract_strided_slice %376 {offsets = [0, 0, 0, 6], sizes = [1, 8, 1, 16], strides = [1, 1, 1, 1]} : vector<1x8x1x22xf32> to vector<1x8x1x16xf32>
    %409 = vector.broadcast %407 : f32 to vector<1x8x1x16xf32>
    %410 = arith.mulf %409, %408 : vector<1x8x1x16xf32>
    %411 = arith.addf %406, %410 : vector<1x8x1x16xf32>
    %412 = vector.extract_strided_slice %14 {offsets = [0, 4, 0, 0], sizes = [1, 8, 1, 22], strides = [1, 1, 1, 1]} : vector<1x14x1x22xf32> to vector<1x8x1x22xf32>
    %c77 = arith.constant 77 : index
    %413 = memref.load %arg1[%c77] : memref<98xf32, #tpu.memory_space<smem>>
    %414 = vector.extract_strided_slice %412 {offsets = [0, 0, 0, 0], sizes = [1, 8, 1, 16], strides = [1, 1, 1, 1]} : vector<1x8x1x22xf32> to vector<1x8x1x16xf32>
    %415 = vector.broadcast %413 : f32 to vector<1x8x1x16xf32>
    %416 = arith.mulf %415, %414 : vector<1x8x1x16xf32>
    %417 = arith.addf %411, %416 : vector<1x8x1x16xf32>
    %c78 = arith.constant 78 : index
    %418 = memref.load %arg1[%c78] : memref<98xf32, #tpu.memory_space<smem>>
    %419 = vector.extract_strided_slice %412 {offsets = [0, 0, 0, 1], sizes = [1, 8, 1, 16], strides = [1, 1, 1, 1]} : vector<1x8x1x22xf32> to vector<1x8x1x16xf32>
    %420 = vector.broadcast %418 : f32 to vector<1x8x1x16xf32>
    %421 = arith.mulf %420, %419 : vector<1x8x1x16xf32>
    %422 = arith.addf %417, %421 : vector<1x8x1x16xf32>
    %c79 = arith.constant 79 : index
    %423 = memref.load %arg1[%c79] : memref<98xf32, #tpu.memory_space<smem>>
    %424 = vector.extract_strided_slice %412 {offsets = [0, 0, 0, 2], sizes = [1, 8, 1, 16], strides = [1, 1, 1, 1]} : vector<1x8x1x22xf32> to vector<1x8x1x16xf32>
    %425 = vector.broadcast %423 : f32 to vector<1x8x1x16xf32>
    %426 = arith.mulf %425, %424 : vector<1x8x1x16xf32>
    %427 = arith.addf %422, %426 : vector<1x8x1x16xf32>
    %c80 = arith.constant 80 : index
    %428 = memref.load %arg1[%c80] : memref<98xf32, #tpu.memory_space<smem>>
    %429 = vector.extract_strided_slice %412 {offsets = [0, 0, 0, 3], sizes = [1, 8, 1, 16], strides = [1, 1, 1, 1]} : vector<1x8x1x22xf32> to vector<1x8x1x16xf32>
    %430 = vector.broadcast %428 : f32 to vector<1x8x1x16xf32>
    %431 = arith.mulf %430, %429 : vector<1x8x1x16xf32>
    %432 = arith.addf %427, %431 : vector<1x8x1x16xf32>
    %c81 = arith.constant 81 : index
    %433 = memref.load %arg1[%c81] : memref<98xf32, #tpu.memory_space<smem>>
    %434 = vector.extract_strided_slice %412 {offsets = [0, 0, 0, 4], sizes = [1, 8, 1, 16], strides = [1, 1, 1, 1]} : vector<1x8x1x22xf32> to vector<1x8x1x16xf32>
    %435 = vector.broadcast %433 : f32 to vector<1x8x1x16xf32>
    %436 = arith.mulf %435, %434 : vector<1x8x1x16xf32>
    %437 = arith.addf %432, %436 : vector<1x8x1x16xf32>
    %c82 = arith.constant 82 : index
    %438 = memref.load %arg1[%c82] : memref<98xf32, #tpu.memory_space<smem>>
    %439 = vector.extract_strided_slice %412 {offsets = [0, 0, 0, 5], sizes = [1, 8, 1, 16], strides = [1, 1, 1, 1]} : vector<1x8x1x22xf32> to vector<1x8x1x16xf32>
    %440 = vector.broadcast %438 : f32 to vector<1x8x1x16xf32>
    %441 = arith.mulf %440, %439 : vector<1x8x1x16xf32>
    %442 = arith.addf %437, %441 : vector<1x8x1x16xf32>
    %c83 = arith.constant 83 : index
    %443 = memref.load %arg1[%c83] : memref<98xf32, #tpu.memory_space<smem>>
    %444 = vector.extract_strided_slice %412 {offsets = [0, 0, 0, 6], sizes = [1, 8, 1, 16], strides = [1, 1, 1, 1]} : vector<1x8x1x22xf32> to vector<1x8x1x16xf32>
    %445 = vector.broadcast %443 : f32 to vector<1x8x1x16xf32>
    %446 = arith.mulf %445, %444 : vector<1x8x1x16xf32>
    %447 = arith.addf %442, %446 : vector<1x8x1x16xf32>
    %448 = vector.extract_strided_slice %14 {offsets = [0, 5, 0, 0], sizes = [1, 8, 1, 22], strides = [1, 1, 1, 1]} : vector<1x14x1x22xf32> to vector<1x8x1x22xf32>
    %c84 = arith.constant 84 : index
    %449 = memref.load %arg1[%c84] : memref<98xf32, #tpu.memory_space<smem>>
    %450 = vector.extract_strided_slice %448 {offsets = [0, 0, 0, 0], sizes = [1, 8, 1, 16], strides = [1, 1, 1, 1]} : vector<1x8x1x22xf32> to vector<1x8x1x16xf32>
    %451 = vector.broadcast %449 : f32 to vector<1x8x1x16xf32>
    %452 = arith.mulf %451, %450 : vector<1x8x1x16xf32>
    %453 = arith.addf %447, %452 : vector<1x8x1x16xf32>
    %c85 = arith.constant 85 : index
    %454 = memref.load %arg1[%c85] : memref<98xf32, #tpu.memory_space<smem>>
    %455 = vector.extract_strided_slice %448 {offsets = [0, 0, 0, 1], sizes = [1, 8, 1, 16], strides = [1, 1, 1, 1]} : vector<1x8x1x22xf32> to vector<1x8x1x16xf32>
    %456 = vector.broadcast %454 : f32 to vector<1x8x1x16xf32>
    %457 = arith.mulf %456, %455 : vector<1x8x1x16xf32>
    %458 = arith.addf %453, %457 : vector<1x8x1x16xf32>
    %c86 = arith.constant 86 : index
    %459 = memref.load %arg1[%c86] : memref<98xf32, #tpu.memory_space<smem>>
    %460 = vector.extract_strided_slice %448 {offsets = [0, 0, 0, 2], sizes = [1, 8, 1, 16], strides = [1, 1, 1, 1]} : vector<1x8x1x22xf32> to vector<1x8x1x16xf32>
    %461 = vector.broadcast %459 : f32 to vector<1x8x1x16xf32>
    %462 = arith.mulf %461, %460 : vector<1x8x1x16xf32>
    %463 = arith.addf %458, %462 : vector<1x8x1x16xf32>
    %c87 = arith.constant 87 : index
    %464 = memref.load %arg1[%c87] : memref<98xf32, #tpu.memory_space<smem>>
    %465 = vector.extract_strided_slice %448 {offsets = [0, 0, 0, 3], sizes = [1, 8, 1, 16], strides = [1, 1, 1, 1]} : vector<1x8x1x22xf32> to vector<1x8x1x16xf32>
    %466 = vector.broadcast %464 : f32 to vector<1x8x1x16xf32>
    %467 = arith.mulf %466, %465 : vector<1x8x1x16xf32>
    %468 = arith.addf %463, %467 : vector<1x8x1x16xf32>
    %c88 = arith.constant 88 : index
    %469 = memref.load %arg1[%c88] : memref<98xf32, #tpu.memory_space<smem>>
    %470 = vector.extract_strided_slice %448 {offsets = [0, 0, 0, 4], sizes = [1, 8, 1, 16], strides = [1, 1, 1, 1]} : vector<1x8x1x22xf32> to vector<1x8x1x16xf32>
    %471 = vector.broadcast %469 : f32 to vector<1x8x1x16xf32>
    %472 = arith.mulf %471, %470 : vector<1x8x1x16xf32>
    %473 = arith.addf %468, %472 : vector<1x8x1x16xf32>
    %c89 = arith.constant 89 : index
    %474 = memref.load %arg1[%c89] : memref<98xf32, #tpu.memory_space<smem>>
    %475 = vector.extract_strided_slice %448 {offsets = [0, 0, 0, 5], sizes = [1, 8, 1, 16], strides = [1, 1, 1, 1]} : vector<1x8x1x22xf32> to vector<1x8x1x16xf32>
    %476 = vector.broadcast %474 : f32 to vector<1x8x1x16xf32>
    %477 = arith.mulf %476, %475 : vector<1x8x1x16xf32>
    %478 = arith.addf %473, %477 : vector<1x8x1x16xf32>
    %c90 = arith.constant 90 : index
    %479 = memref.load %arg1[%c90] : memref<98xf32, #tpu.memory_space<smem>>
    %480 = vector.extract_strided_slice %448 {offsets = [0, 0, 0, 6], sizes = [1, 8, 1, 16], strides = [1, 1, 1, 1]} : vector<1x8x1x22xf32> to vector<1x8x1x16xf32>
    %481 = vector.broadcast %479 : f32 to vector<1x8x1x16xf32>
    %482 = arith.mulf %481, %480 : vector<1x8x1x16xf32>
    %483 = arith.addf %478, %482 : vector<1x8x1x16xf32>
    %484 = vector.extract_strided_slice %14 {offsets = [0, 6, 0, 0], sizes = [1, 8, 1, 22], strides = [1, 1, 1, 1]} : vector<1x14x1x22xf32> to vector<1x8x1x22xf32>
    %c91 = arith.constant 91 : index
    %485 = memref.load %arg1[%c91] : memref<98xf32, #tpu.memory_space<smem>>
    %486 = vector.extract_strided_slice %484 {offsets = [0, 0, 0, 0], sizes = [1, 8, 1, 16], strides = [1, 1, 1, 1]} : vector<1x8x1x22xf32> to vector<1x8x1x16xf32>
    %487 = vector.broadcast %485 : f32 to vector<1x8x1x16xf32>
    %488 = arith.mulf %487, %486 : vector<1x8x1x16xf32>
    %489 = arith.addf %483, %488 : vector<1x8x1x16xf32>
    %c92 = arith.constant 92 : index
    %490 = memref.load %arg1[%c92] : memref<98xf32, #tpu.memory_space<smem>>
    %491 = vector.extract_strided_slice %484 {offsets = [0, 0, 0, 1], sizes = [1, 8, 1, 16], strides = [1, 1, 1, 1]} : vector<1x8x1x22xf32> to vector<1x8x1x16xf32>
    %492 = vector.broadcast %490 : f32 to vector<1x8x1x16xf32>
    %493 = arith.mulf %492, %491 : vector<1x8x1x16xf32>
    %494 = arith.addf %489, %493 : vector<1x8x1x16xf32>
    %c93 = arith.constant 93 : index
    %495 = memref.load %arg1[%c93] : memref<98xf32, #tpu.memory_space<smem>>
    %496 = vector.extract_strided_slice %484 {offsets = [0, 0, 0, 2], sizes = [1, 8, 1, 16], strides = [1, 1, 1, 1]} : vector<1x8x1x22xf32> to vector<1x8x1x16xf32>
    %497 = vector.broadcast %495 : f32 to vector<1x8x1x16xf32>
    %498 = arith.mulf %497, %496 : vector<1x8x1x16xf32>
    %499 = arith.addf %494, %498 : vector<1x8x1x16xf32>
    %c94 = arith.constant 94 : index
    %500 = memref.load %arg1[%c94] : memref<98xf32, #tpu.memory_space<smem>>
    %501 = vector.extract_strided_slice %484 {offsets = [0, 0, 0, 3], sizes = [1, 8, 1, 16], strides = [1, 1, 1, 1]} : vector<1x8x1x22xf32> to vector<1x8x1x16xf32>
    %502 = vector.broadcast %500 : f32 to vector<1x8x1x16xf32>
    %503 = arith.mulf %502, %501 : vector<1x8x1x16xf32>
    %504 = arith.addf %499, %503 : vector<1x8x1x16xf32>
    %c95 = arith.constant 95 : index
    %505 = memref.load %arg1[%c95] : memref<98xf32, #tpu.memory_space<smem>>
    %506 = vector.extract_strided_slice %484 {offsets = [0, 0, 0, 4], sizes = [1, 8, 1, 16], strides = [1, 1, 1, 1]} : vector<1x8x1x22xf32> to vector<1x8x1x16xf32>
    %507 = vector.broadcast %505 : f32 to vector<1x8x1x16xf32>
    %508 = arith.mulf %507, %506 : vector<1x8x1x16xf32>
    %509 = arith.addf %504, %508 : vector<1x8x1x16xf32>
    %c96 = arith.constant 96 : index
    %510 = memref.load %arg1[%c96] : memref<98xf32, #tpu.memory_space<smem>>
    %511 = vector.extract_strided_slice %484 {offsets = [0, 0, 0, 5], sizes = [1, 8, 1, 16], strides = [1, 1, 1, 1]} : vector<1x8x1x22xf32> to vector<1x8x1x16xf32>
    %512 = vector.broadcast %510 : f32 to vector<1x8x1x16xf32>
    %513 = arith.mulf %512, %511 : vector<1x8x1x16xf32>
    %514 = arith.addf %509, %513 : vector<1x8x1x16xf32>
    %c97 = arith.constant 97 : index
    %515 = memref.load %arg1[%c97] : memref<98xf32, #tpu.memory_space<smem>>
    %516 = vector.extract_strided_slice %484 {offsets = [0, 0, 0, 6], sizes = [1, 8, 1, 16], strides = [1, 1, 1, 1]} : vector<1x8x1x22xf32> to vector<1x8x1x16xf32>
    %517 = vector.broadcast %515 : f32 to vector<1x8x1x16xf32>
    %518 = arith.mulf %517, %516 : vector<1x8x1x16xf32>
    %519 = arith.addf %514, %518 : vector<1x8x1x16xf32>
    %c0_11 = arith.constant 0 : index
    %520 = memref.load %arg3[%c0_11] : memref<2xf32, #tpu.memory_space<smem>>
    %521 = vector.broadcast %520 : f32 to vector<1x8x1x16xf32>
    %522 = arith.mulf %519, %521 : vector<1x8x1x16xf32>
    %c1_12 = arith.constant 1 : index
    %523 = memref.load %arg3[%c1_12] : memref<2xf32, #tpu.memory_space<smem>>
    %524 = vector.broadcast %523 : f32 to vector<1x8x1x16xf32>
    %525 = arith.addf %522, %524 : vector<1x8x1x16xf32>
    %526 = arith.negf %525 : vector<1x8x1x16xf32>
    %527 = math.exp %526 : vector<1x8x1x16xf32>
    %cst_13 = arith.constant 1.000000e+00 : f32
    %528 = vector.broadcast %cst_13 : f32 to vector<1x8x1x16xf32>
    %529 = arith.addf %528, %527 : vector<1x8x1x16xf32>
    %530 = arith.divf %528, %529 : vector<1x8x1x16xf32>
    %531 = arith.mulf %530, %4 : vector<1x8x1x16xf32>
    %cst_14 = arith.constant dense<0.000000e+00> : vector<1x8x1xf32>
    %532 = vector.multi_reduction <add>, %531, %cst_14 [3] : vector<1x8x1x16xf32> to vector<1x8x1xf32>
    %533 = vector.shape_cast %532 : vector<1x8x1xf32> to vector<1x8x1x1xf32>
    %cst_15 = arith.constant 3.906250e-03 : f32
    %534 = vector.broadcast %cst_15 : f32 to vector<1x8x1x1xf32>
    %535 = arith.mulf %533, %534 : vector<1x8x1x1xf32>
    %cst_16 = arith.constant 0.000000e+00 : f32
    %536 = vector.broadcast %cst_16 : f32 to vector<1x1x1x1xf32>
    %537 = tpu.concatenate %536, %535, %536 in 1 : vector<1x1x1x1xf32>, vector<1x8x1x1xf32>, vector<1x1x1x1xf32> -> vector<1x10x1x1xf32>
    %c0_17 = arith.constant 0 : index
    %538 = memref.load %arg2[%c0_17] : memref<3xf32, #tpu.memory_space<smem>>
    %539 = vector.extract_strided_slice %537 {offsets = [0, 0, 0, 0], sizes = [1, 8, 1, 1], strides = [1, 1, 1, 1]} : vector<1x10x1x1xf32> to vector<1x8x1x1xf32>
    %540 = vector.broadcast %538 : f32 to vector<1x8x1x1xf32>
    %541 = arith.mulf %540, %539 : vector<1x8x1x1xf32>
    %c1_18 = arith.constant 1 : index
    %542 = memref.load %arg2[%c1_18] : memref<3xf32, #tpu.memory_space<smem>>
    %543 = vector.extract_strided_slice %537 {offsets = [0, 1, 0, 0], sizes = [1, 8, 1, 1], strides = [1, 1, 1, 1]} : vector<1x10x1x1xf32> to vector<1x8x1x1xf32>
    %544 = vector.broadcast %542 : f32 to vector<1x8x1x1xf32>
    %545 = arith.mulf %544, %543 : vector<1x8x1x1xf32>
    %546 = arith.addf %541, %545 : vector<1x8x1x1xf32>
    %c2_19 = arith.constant 2 : index
    %547 = memref.load %arg2[%c2_19] : memref<3xf32, #tpu.memory_space<smem>>
    %548 = vector.extract_strided_slice %537 {offsets = [0, 2, 0, 0], sizes = [1, 8, 1, 1], strides = [1, 1, 1, 1]} : vector<1x10x1x1xf32> to vector<1x8x1x1xf32>
    %549 = vector.broadcast %547 : f32 to vector<1x8x1x1xf32>
    %550 = arith.mulf %549, %548 : vector<1x8x1x1xf32>
    %551 = arith.addf %546, %550 : vector<1x8x1x1xf32>
    %552 = arith.negf %551 : vector<1x8x1x1xf32>
    %553 = math.exp %552 : vector<1x8x1x1xf32>
    %cst_20 = arith.constant 1.000000e+00 : f32
    %554 = vector.broadcast %cst_20 : f32 to vector<1x8x1x1xf32>
    %555 = arith.addf %554, %553 : vector<1x8x1x1xf32>
    %556 = arith.divf %554, %555 : vector<1x8x1x1xf32>
    %557 = vector.broadcast %556 : vector<1x8x1x1xf32> to vector<1x8x1x16xf32>
    %558 = arith.mulf %530, %557 : vector<1x8x1x16xf32>
    %c0_21 = arith.constant 0 : index
    %c0_22 = arith.constant 0 : index
    %c0_23 = arith.constant 0 : index
    %c0_24 = arith.constant 0 : index
    %559 = vector.load %arg4[%c0_21, %c0_22, %c0_23, %c0_24] : memref<1x8x16x16xf32, #tpu.memory_space<vmem>>, vector<1x8x16x16xf32>
    %560 = vector.broadcast %558 : vector<1x8x1x16xf32> to vector<1x8x16x16xf32>
    %561 = arith.mulf %559, %560 : vector<1x8x16x16xf32>
    %c0_25 = arith.constant 0 : index
    %c0_26 = arith.constant 0 : index
    %c0_27 = arith.constant 0 : index
    %c0_28 = arith.constant 0 : index
    %562 = vector.load %arg5[%c0_25, %c0_26, %c0_27, %c0_28] : memref<1x8x16x16xf32, #tpu.memory_space<vmem>>, vector<1x8x16x16xf32>
    tpu.vector_store %arg5[%c0_25, %c0_26, %c0_27, %c0_28], %561 {strides = array<i32>} : memref<1x8x16x16xf32, #tpu.memory_space<vmem>>, vector<1x8x16x16xf32>,
    return
  }
  func.func @transform_0(%arg0: i32) -> i32 {
    %c0_i32 = arith.constant 0 : i32
    %c0_i32_0 = arith.constant 0 : i32
    return %c0_i32 : i32
  }
  func.func @transform_1(%arg0: i32) -> i32 {
    %c0_i32 = arith.constant 0 : i32
    %c0_i32_0 = arith.constant 0 : i32
    return %c0_i32 : i32
  }
  func.func @transform_2(%arg0: i32) -> i32 {
    %c0_i32 = arith.constant 0 : i32
    %c0_i32_0 = arith.constant 0 : i32
    return %c0_i32 : i32
  }
  func.func @transform_3(%arg0: i32) -> (i32, i32, i32, i32) {
    %c0_i32 = arith.constant 0 : i32
    %c0_i32_0 = arith.constant 0 : i32
    %c0_i32_1 = arith.constant 0 : i32
    %c0_i32_2 = arith.constant 0 : i32
    return %arg0, %c0_i32, %c0_i32_0, %c0_i32_1 : i32, i32, i32, i32
  }
  func.func @transform_4(%arg0: i32) -> (i32, i32, i32, i32) {
    %c0_i32 = arith.constant 0 : i32
    %c0_i32_0 = arith.constant 0 : i32
    %c0_i32_1 = arith.constant 0 : i32
    %c0_i32_2 = arith.constant 0 : i32
    return %arg0, %c0_i32, %c0_i32_0, %c0_i32_1 : i32, i32, i32, i32
  }
}

</mosaic_0001>

<llo_original>
// kernel: tpu_custom_call.1
$region0: #{tpu_custom_call.1}
  #allocation0 [shape = 'u32[]', space=smem, size = 0x4, offset = 0x4, fixed_abs, tag = 'smem constant byte address 0x4 - core index']
  #allocation1 [shape = 'u32[144,128]{1,0:T(1,128)}', space=vmem, size = 0x12000, scoped, tag = 'internal scratch']
  %s0 = inlined_call_operand.hbm [shape: f32[98], index: 0, kind: input, shape index: {}]
  %s1 = inlined_call_operand.vmem [shape: f32[3], index: 1, kind: input, shape index: {}]
  %s2 = inlined_call_operand.vmem [shape: f32[2], index: 2, kind: input, shape index: {}]
  %s3 = inlined_call_operand.hbm [shape: f32[2,8,16,16], index: 3, kind: input, shape index: {}]
  %s4 = inlined_call_operand.hbm [shape: f32[2,8,16,16], index: 4, kind: output, shape index: {}]
  %s5 = sld [smem:[#allocation0]]
  $region65: #{tpu_custom_call.1} parent=0
    _
  %s7 = ssub.s32 1, %s5
  %s8 = scalar_select 0, %s7, %s5
  $region1: #{tpu_custom_call.1} parent=0
    #allocation2 [shape = 'u8[512]{0}', space=smem, size = 0x200, scoped, tag = 'input window, operand 0, single buffered']
    #allocation3 [shape = 's32[2]{0}', space=sflag, size = 0x8, scoped, tag = 'scoped memory for tpu_custom_call.1']
    #allocation4 [shape = 's32[2]{0}', space=sflag, size = 0x8, scoped, tag = 'scoped memory for tpu_custom_call.1']
    #allocation5 [shape = 's32[2]{0}', space=sflag, size = 0x8, scoped, tag = 'scoped memory for tpu_custom_call.1']
    #allocation6 [shape = 's32[2]{0}', space=sflag, size = 0x8, scoped, tag = 'scoped memory for tpu_custom_call.1']
    #allocation7 [shape = 'u8[512]{0}', space=smem, size = 0x200, scoped, tag = 'input window, operand 1, single buffered']
    #allocation8 [shape = 'u8[512]{0}', space=smem, size = 0x200, scoped, tag = 'input window, operand 2, single buffered']
    #allocation9 [shape = 's32[1]{0}', space=sflag, size = 0x4, scoped, tag = 'scoped memory for tpu_custom_call.1']
    #allocation10 [shape = 'u8[131072]{0}', space=vmem, size = 0x20000, scoped, tag = 'input window, operand 3']
    #allocation11 [shape = 'u8[131072]{0}', space=vmem, size = 0x20000, scoped, tag = 'output window, operand 0']
    %9 = vsyncpa [#allocation5], 0
    %10 = vsyncpa [#allocation6], 0
    %11 = vsyncpa [#allocation9], 0
    %12 = vsyncpa [#allocation3], 0
    %s13 = scalar_lea.sflag [#allocation3], 1
    %14 = vsyncpa %s13, 0
    %15 = vsyncpa [#allocation4], 0
    %s16 = scalar_lea.sflag [#allocation4], 1
    %17 = vsyncpa %s16, 0
    loop: start=0, step=1, limit=4
    $region2: #{tpu_custom_call.1} parent=1 // loop_pre_header
      _
    $region3: #{tpu_custom_call.1} parent=1 // loop_header
      %s19 = sphi 0, %s23
      %p20 = scmp.ge.s32.totalorder %s19, 4
      %s27 = sphi 0, %s27
      %s29 = sphi 0, %s27
      %s30 = sphi 0, %s29
      %s44 = sphi 0, %s30
      %s48 = sphi 0, %s48
      %s50 = sphi 0, %s48
      %s51 = sphi 0, %s50
      %s65 = sphi 0, %s51
      %s69 = sphi 0, %s69
      %s71 = sphi 0, %s69
      %s72 = sphi 0, %s71
      %s86 = sphi 0, %s72
      %s92 = sphi 0, %s94
      %s95 = sphi 0, %s92
      %s96 = sphi 0, %s95
      %s112 = sphi 0, %s96
      %s118 = sphi 0, %s120
      %s121 = sphi 0, %s118
      %s122 = sphi 0, %s121
      %s138 = sphi 0, %s122
    $region4: #{tpu_custom_call.1} parent=1 // loop_header_branch
      %22 = sbr.rel (%p20) target = $region8
    $region5: #{tpu_custom_call.1} parent=1 // loop_body
      %s24 = ssub.s32 %s19, 1
      %s25 = ssub.s32 %s19, 2
      %s26 = sadd.s32 %s19, 1
      %s28 = sadd.s32 %s27, 1
      %p31 = scmp.eq.s32.totalorder %s19, 1
      %p32 = scmp.ne.s32.totalorder %s27, %s29
      %p33 = scmp.eq.s32.totalorder %s19, 0
      %p34 = por %p32, %p33
      %p35 = scmp.ne.s32.totalorder %s27, %s29
      %p36 = scmp.eq.s32.totalorder %s24, 1
      %p37 = por %p35, %p36
      %p38 = scmp.ne.s32.totalorder %s29, %s30
      %p39 = scmp.eq.s32.totalorder %s24, 0
      %p40 = por %p38, %p39
      %p41 = scmp.ne.s32.totalorder %s29, %s30
      %p42 = scmp.eq.s32.totalorder %s25, 1
      %p43 = por %p41, %p42
      %p45 = scmp.ne.s32.totalorder %s30, %s44
      %p46 = scmp.eq.s32.totalorder %s25, 0
      %p47 = por %p45, %p46
      %s49 = sadd.s32 %s48, 1
      %p52 = scmp.eq.s32.totalorder %s19, 1
      %p53 = scmp.ne.s32.totalorder %s48, %s50
      %p54 = scmp.eq.s32.totalorder %s19, 0
      %p55 = por %p53, %p54
      %p56 = scmp.ne.s32.totalorder %s48, %s50
      %p57 = scmp.eq.s32.totalorder %s24, 1
      %p58 = por %p56, %p57
      %p59 = scmp.ne.s32.totalorder %s50, %s51
      %p60 = scmp.eq.s32.totalorder %s24, 0
      %p61 = por %p59, %p60
      %p62 = scmp.ne.s32.totalorder %s50, %s51
      %p63 = scmp.eq.s32.totalorder %s25, 1
      %p64 = por %p62, %p63
      %p66 = scmp.ne.s32.totalorder %s51, %s65
      %p67 = scmp.eq.s32.totalorder %s25, 0
      %p68 = por %p66, %p67
      %s70 = sadd.s32 %s69, 1
      %p73 = scmp.eq.s32.totalorder %s19, 1
      %p74 = scmp.ne.s32.totalorder %s69, %s71
      %p75 = scmp.eq.s32.totalorder %s19, 0
      %p76 = por %p74, %p75
      %p77 = scmp.ne.s32.totalorder %s69, %s71
      %p78 = scmp.eq.s32.totalorder %s24, 1
      %p79 = por %p77, %p78
      %p80 = scmp.ne.s32.totalorder %s71, %s72
      %p81 = scmp.eq.s32.totalorder %s24, 0
      %p82 = por %p80, %p81
      %p83 = scmp.ne.s32.totalorder %s71, %s72
      %p84 = scmp.eq.s32.totalorder %s25, 1
      %p85 = por %p83, %p84
      %p87 = scmp.ne.s32.totalorder %s72, %s86
      %p88 = scmp.eq.s32.totalorder %s25, 0
      %p89 = por %p87, %p88
      %s90 = ssub.s32 %s19, %s26
      %p91 = scmp.eq.s32.totalorder %s90, 0
      %s93 = sadd.s32 %s92, 1
      %s94 = scalar_select %p91, %s92, %s93
      %p97 = pneg %p91
      %p98 = scmp.eq.s32.totalorder %s19, 1
      %p99 = por %p97, %p98
      %p100 = scmp.ne.s32.totalorder %s92, %s95
      %p101 = scmp.eq.s32.totalorder %s19, 0
      %p102 = por %p100, %p101
      %p103 = scmp.ne.s32.totalorder %s92, %s95
      %p104 = scmp.eq.s32.totalorder %s24, 1
      %p105 = por %p103, %p104
      %p106 = scmp.ne.s32.totalorder %s95, %s96
      %p107 = scmp.eq.s32.totalorder %s24, 0
      %p108 = por %p106, %p107
      %p109 = scmp.ne.s32.totalorder %s95, %s96
      %p110 = scmp.eq.s32.totalorder %s25, 1
      %p111 = por %p109, %p110
      %p113 = scmp.ne.s32.totalorder %s96, %s112
      %p114 = scmp.eq.s32.totalorder %s25, 0
      %p115 = por %p113, %p114
      %s116 = ssub.s32 %s19, %s26
      %p117 = scmp.eq.s32.totalorder %s116, 0
      %s119 = sadd.s32 %s118, 1
      %s120 = scalar_select %p117, %s118, %s119
      %p123 = pneg %p117
      %p124 = scmp.eq.s32.totalorder %s19, 1
      %p125 = por %p123, %p124
      %p126 = scmp.ne.s32.totalorder %s118, %s121
      %p127 = scmp.eq.s32.totalorder %s19, 0
      %p128 = por %p126, %p127
      %p129 = scmp.ne.s32.totalorder %s118, %s121
      %p130 = scmp.eq.s32.totalorder %s24, 1
      %p131 = por %p129, %p130
      %p132 = scmp.ne.s32.totalorder %s121, %s122
      %p133 = scmp.eq.s32.totalorder %s24, 0
      %p134 = por %p132, %p133
      %p135 = scmp.ne.s32.totalorder %s121, %s122
      %p136 = scmp.eq.s32.totalorder %s25, 1
      %p137 = por %p135, %p136
      %p139 = scmp.ne.s32.totalorder %s122, %s138
      %p140 = scmp.eq.s32.totalorder %s25, 0
      %p141 = por %p139, %p140
      %p142 = scmp.le.s32.totalorder 1, %s19
      %p143 = scmp.lt.s32.totalorder %s19, 3
      %p144 = pnand %p142, %p143
      %p145 = pneg %p144
      // Predicated region
      $region9: #{tpu_custom_call.1} parent=5 // pred_check
        _
      $region10: #{tpu_custom_call.1} parent=5 // pred_check_branch
        %147 = sbr.rel (%p144) target = $region12
      $region11: #{tpu_custom_call.1} parent=5 // pred_region
        %s148 = ssub.s32 %s19, 1
        // Predicated region
        $region13: #{tpu_custom_call.1} parent=11 // pred_check
          %p149 = pneg %p40
        $region14: #{tpu_custom_call.1} parent=11 // pred_check_branch
          %151 = sbr.rel (%p149) target = $region16
        $region15: #{tpu_custom_call.1} parent=11 // pred_region
          %s153 = ssub.s32 16, 16
          %154 = vsyncadd [#allocation5], %s153
          %157 = dma.hbm_to_smem %s0, 16, [#allocation2], [#allocation5]
        $region16: #{tpu_custom_call.1} parent=11 // pred_fallthru
          _
        // Predicated region
        $region17: #{tpu_custom_call.1} parent=11 // pred_check
          %p158 = pneg %p61
        $region18: #{tpu_custom_call.1} parent=11 // pred_check_branch
          %160 = sbr.rel (%p158) target = $region20
        $region19: #{tpu_custom_call.1} parent=11 // pred_region
          %s162 = ssub.s32 16, 16
          %163 = vsyncadd [#allocation6], %s162
          %s165 = sshll.u32 %s1, 4
          %s166 = int_to_ptr.vmem [resolvable:$true] %s165
          %168 = dma.vmem_to_smem %s166, 16, [#allocation7], [#allocation6]
        $region20: #{tpu_custom_call.1} parent=11 // pred_fallthru
          _
        // Predicated region
        $region21: #{tpu_custom_call.1} parent=11 // pred_check
          %p169 = pneg %p82
        $region22: #{tpu_custom_call.1} parent=11 // pred_check_branch
          %171 = sbr.rel (%p169) target = $region24
        $region23: #{tpu_custom_call.1} parent=11 // pred_region
          %s173 = ssub.s32 16, 16
          %174 = vsyncadd [#allocation9], %s173
          %s176 = sshll.u32 %s2, 4
          %s177 = int_to_ptr.vmem [resolvable:$true] %s176
          %179 = dma.vmem_to_smem %s177, 16, [#allocation8], [#allocation9]
        $region24: #{tpu_custom_call.1} parent=11 // pred_fallthru
          _
      $region12: #{tpu_custom_call.1} parent=5 // pred_fallthru
        _
      %p180 = scmp.lt.s32.totalorder %s19, 2
      // Predicated region
      $region25: #{tpu_custom_call.1} parent=5 // pred_check
        %p181 = pneg %p180
      $region26: #{tpu_custom_call.1} parent=5 // pred_check_branch
        %183 = sbr.rel (%p181) target = $region28
      $region27: #{tpu_custom_call.1} parent=5 // pred_region
        // Predicated region
        $region29: #{tpu_custom_call.1} parent=27 // pred_check
          %p184 = pneg %p102
        $region30: #{tpu_custom_call.1} parent=27 // pred_check_branch
          %186 = sbr.rel (%p184) target = $region32
        $region31: #{tpu_custom_call.1} parent=27 // pred_region
          %s187 = sand.u32 %s92, 1
          %s188 = scalar_lea.sflag [#allocation3], %s187
          %s189 = sand.u32 %s92, 1
          %s190 = smul.addr %s189, 128
          %s191 = scalar_lea.vmem [#allocation10], %s190
          %s193 = ssub.s32 2048, 2048
          %194 = vsyncadd %s188, %s193
          %s195 = smul.addr %s19, 16
          %s196 = smul.addr %s195, 128
          %s197 = scalar_lea.hbm %s3, %s196
          %s198 = sshll.u32 %s191, 4
          %s199 = int_to_ptr.vmem [resolvable:$true] %s198
          %204 = dma.hbm_to_vmem [thread:$0]  %s197, 2048, %s199, %s188, 128, 128, 8
        $region32: #{tpu_custom_call.1} parent=27 // pred_fallthru
          _
      $region28: #{tpu_custom_call.1} parent=5 // pred_fallthru
        _
      %p205 = scmp.le.s32.totalorder 1, %s19
      %p206 = scmp.lt.s32.totalorder %s19, 3
      %p207 = pnand %p205, %p206
      %p208 = pneg %p207
      // Predicated region
      $region33: #{tpu_custom_call.1} parent=5 // pred_check
        _
      $region34: #{tpu_custom_call.1} parent=5 // pred_check_branch
        %210 = sbr.rel (%p207) target = $region36
      $region35: #{tpu_custom_call.1} parent=5 // pred_region
        %s211 = ssub.s32 %s19, 1
        // Predicated region
        $region37: #{tpu_custom_call.1} parent=35 // pred_check
          %p212 = pneg %p40
        $region38: #{tpu_custom_call.1} parent=35 // pred_check_branch
          %214 = sbr.rel (%p212) target = $region40
        $region39: #{tpu_custom_call.1} parent=35 // pred_region
          %215 = dma.done [#allocation5], 16
        $region40: #{tpu_custom_call.1} parent=35 // pred_fallthru
          _
        // Predicated region
        $region41: #{tpu_custom_call.1} parent=35 // pred_check
          %p216 = pneg %p61
        $region42: #{tpu_custom_call.1} parent=35 // pred_check_branch
          %218 = sbr.rel (%p216) target = $region44
        $region43: #{tpu_custom_call.1} parent=35 // pred_region
          %219 = dma.done [#allocation6], 16
        $region44: #{tpu_custom_call.1} parent=35 // pred_fallthru
          _
        // Predicated region
        $region45: #{tpu_custom_call.1} parent=35 // pred_check
          %p220 = pneg %p82
        $region46: #{tpu_custom_call.1} parent=35 // pred_check_branch
          %222 = sbr.rel (%p220) target = $region48
        $region47: #{tpu_custom_call.1} parent=35 // pred_region
          %223 = dma.done [#allocation9], 16
        $region48: #{tpu_custom_call.1} parent=35 // pred_fallthru
          _
        %s224 = sand.u32 %s95, 1
        %s225 = scalar_lea.sflag [#allocation3], %s224
        %s226 = sand.u32 %s95, 1
        %s227 = smul.addr %s226, 128
        %s228 = scalar_lea.vmem [#allocation10], %s227
        // Predicated region
        $region49: #{tpu_custom_call.1} parent=35 // pred_check
          %p229 = pneg %p108
        $region50: #{tpu_custom_call.1} parent=35 // pred_check_branch
          %231 = sbr.rel (%p229) target = $region52
        $region51: #{tpu_custom_call.1} parent=35 // pred_region
          %232 = dma.done %s225, 2048
        $region52: #{tpu_custom_call.1} parent=35 // pred_fallthru
          _
        %233 = sfence
        %p234 = pneg %p40
        %p235 = pneg %p37
        %p236 = pneg %p61
        %p237 = pneg %p58
        %p238 = pneg %p82
        %p239 = pneg %p79
        %s240 = sand.u32 %s95, 1
        %s241 = scalar_lea.sflag [#allocation3], %s240
        %s242 = sand.u32 %s95, 1
        %s243 = smul.addr %s242, 128
        %s244 = scalar_lea.vmem [#allocation10], %s243
        %p245 = pneg %p108
        %p246 = pneg %p105
        %p247 = pneg %p134
        %p248 = pneg %p131
        %s249 = sand.u32 %s121, 1
        %s250 = scalar_lea.sflag [#allocation4], %s249
        %s251 = sand.u32 %s121, 1
        %s252 = smul.addr %s251, 128
        %s253 = scalar_lea.vmem [#allocation11], %s252
        %v254 = vld [vmem:[%s228] sm:$0xff]
        %v255 = vld [vmem:[%s228 + $0x8] sm:$0xff]
        %v256 = vld [vmem:[%s228 + $0x10] sm:$0xff]
        %v257 = vld [vmem:[%s228 + $0x18] sm:$0xff]
        %v258 = vld [vmem:[%s228 + $0x20] sm:$0xff]
        %v259 = vld [vmem:[%s228 + $0x28] sm:$0xff]
        %v260 = vld [vmem:[%s228 + $0x30] sm:$0xff]
        %v261 = vld [vmem:[%s228 + $0x38] sm:$0xff]
        %v262 = vld [vmem:[%s228 + $0x40] sm:$0xff]
        %v263 = vld [vmem:[%s228 + $0x48] sm:$0xff]
        %v264 = vld [vmem:[%s228 + $0x50] sm:$0xff]
        %v265 = vld [vmem:[%s228 + $0x58] sm:$0xff]
        %v266 = vld [vmem:[%s228 + $0x60] sm:$0xff]
        %v267 = vld [vmem:[%s228 + $0x68] sm:$0xff]
        %v268 = vld [vmem:[%s228 + $0x70] sm:$0xff]
        %v269 = vld [vmem:[%s228 + $0x78] sm:$0xff]
        %vm270 = vcmask 130048
        %v271 = vsel %vm270, %v254, -inf
        %v272 = vsel %vm270, %v255, -inf
        %v273 = vmax.f32 %v271, %v272
        %v274 = vrot.slane %v273, 4
        %v275 = vmax.f32 %v273, %v274
        %v276 = vrot.slane %v275, 2
        %v277 = vmax.f32 %v275, %v276
        %v278 = vrot.slane %v277, 1
        %v279 = vmax.f32 %v277, %v278
        %v280 = vsel %vm270, %v256, -inf
        %v281 = vsel %vm270, %v257, -inf
        %v282 = vmax.f32 %v280, %v281
        %v283 = vrot.slane %v282, 4
        %v284 = vmax.f32 %v282, %v283
        %v285 = vrot.slane %v284, 2
        %v286 = vmax.f32 %v284, %v285
        %v287 = vrot.slane %v286, 1
        %v288 = vmax.f32 %v286, %v287
        %v289 = vsel %vm270, %v258, -inf
        %v290 = vsel %vm270, %v259, -inf
        %v291 = vmax.f32 %v289, %v290
        %v292 = vrot.slane %v291, 4
        %v293 = vmax.f32 %v291, %v292
        %v294 = vrot.slane %v293, 2
        %v295 = vmax.f32 %v293, %v294
        %v296 = vrot.slane %v295, 1
        %v297 = vmax.f32 %v295, %v296
        %v298 = vsel %vm270, %v260, -inf
        %v299 = vsel %vm270, %v261, -inf
        %v300 = vmax.f32 %v298, %v299
        %v301 = vrot.slane %v300, 4
        %v302 = vmax.f32 %v300, %v301
        %v303 = vrot.slane %v302, 2
        %v304 = vmax.f32 %v302, %v303
        %v305 = vrot.slane %v304, 1
        %v306 = vmax.f32 %v304, %v305
        %v307 = vsel %vm270, %v262, -inf
        %v308 = vsel %vm270, %v263, -inf
        %v309 = vmax.f32 %v307, %v308
        %v310 = vrot.slane %v309, 4
        %v311 = vmax.f32 %v309, %v310
        %v312 = vrot.slane %v311, 2
        %v313 = vmax.f32 %v311, %v312
        %v314 = vrot.slane %v313, 1
        %v315 = vmax.f32 %v313, %v314
        %v316 = vsel %vm270, %v264, -inf
        %v317 = vsel %vm270, %v265, -inf
        %v318 = vmax.f32 %v316, %v317
        %v319 = vrot.slane %v318, 4
        %v320 = vmax.f32 %v318, %v319
        %v321 = vrot.slane %v320, 2
        %v322 = vmax.f32 %v320, %v321
        %v323 = vrot.slane %v322, 1
        %v324 = vmax.f32 %v322, %v323
        %v325 = vsel %vm270, %v266, -inf
        %v326 = vsel %vm270, %v267, -inf
        %v327 = vmax.f32 %v325, %v326
        %v328 = vrot.slane %v327, 4
        %v329 = vmax.f32 %v327, %v328
        %v330 = vrot.slane %v329, 2
        %v331 = vmax.f32 %v329, %v330
        %v332 = vrot.slane %v331, 1
        %v333 = vmax.f32 %v331, %v332
        %v334 = vsel %vm270, %v268, -inf
        %v335 = vsel %vm270, %v269, -inf
        %v336 = vmax.f32 %v334, %v335
        %v337 = vrot.slane %v336, 4
        %v338 = vmax.f32 %v336, %v337
        %v339 = vrot.slane %v338, 2
        %v340 = vmax.f32 %v338, %v339
        %v341 = vrot.slane %v340, 1
        %v342 = vmax.f32 %v340, %v341
        %v343 = vsel %vm270, %v254, 0.0
        %v344 = vsel %vm270, %v255, 0.0
        %v345 = vadd.f32 %v343, %v344
        %v346 = vrot.slane %v345, 4
        %v347 = vadd.f32 %v345, %v346
        %v348 = vrot.slane %v347, 2
        %v349 = vadd.f32 %v347, %v348
        %v350 = vrot.slane %v349, 1
        %v351 = vadd.f32 %v349, %v350
        %v352 = vsel %vm270, %v256, 0.0
        %v353 = vsel %vm270, %v257, 0.0
        %v354 = vadd.f32 %v352, %v353
        %v355 = vrot.slane %v354, 4
        %v356 = vadd.f32 %v354, %v355
        %v357 = vrot.slane %v356, 2
        %v358 = vadd.f32 %v356, %v357
        %v359 = vrot.slane %v358, 1
        %v360 = vadd.f32 %v358, %v359
        %v361 = vsel %vm270, %v258, 0.0
        %v362 = vsel %vm270, %v259, 0.0
        %v363 = vadd.f32 %v361, %v362
        %v364 = vrot.slane %v363, 4
        %v365 = vadd.f32 %v363, %v364
        %v366 = vrot.slane %v365, 2
        %v367 = vadd.f32 %v365, %v366
        %v368 = vrot.slane %v367, 1
        %v369 = vadd.f32 %v367, %v368
        %v370 = vsel %vm270, %v260, 0.0
        %v371 = vsel %vm270, %v261, 0.0
        %v372 = vadd.f32 %v370, %v371
        %v373 = vrot.slane %v372, 4
        %v374 = vadd.f32 %v372, %v373
        %v375 = vrot.slane %v374, 2
        %v376 = vadd.f32 %v374, %v375
        %v377 = vrot.slane %v376, 1
        %v378 = vadd.f32 %v376, %v377
        %v379 = vsel %vm270, %v262, 0.0
        %v380 = vsel %vm270, %v263, 0.0
        %v381 = vadd.f32 %v379, %v380
        %v382 = vrot.slane %v381, 4
        %v383 = vadd.f32 %v381, %v382
        %v384 = vrot.slane %v383, 2
        %v385 = vadd.f32 %v383, %v384
        %v386 = vrot.slane %v385, 1
        %v387 = vadd.f32 %v385, %v386
        %v388 = vsel %vm270, %v264, 0.0
        %v389 = vsel %vm270, %v265, 0.0
        %v390 = vadd.f32 %v388, %v389
        %v391 = vrot.slane %v390, 4
        %v392 = vadd.f32 %v390, %v391
        %v393 = vrot.slane %v392, 2
        %v394 = vadd.f32 %v392, %v393
        %v395 = vrot.slane %v394, 1
        %v396 = vadd.f32 %v394, %v395
        %v397 = vsel %vm270, %v266, 0.0
        %v398 = vsel %vm270, %v267, 0.0
        %v399 = vadd.f32 %v397, %v398
        %v400 = vrot.slane %v399, 4
        %v401 = vadd.f32 %v399, %v400
        %v402 = vrot.slane %v401, 2
        %v403 = vadd.f32 %v401, %v402
        %v404 = vrot.slane %v403, 1
        %v405 = vadd.f32 %v403, %v404
        %v406 = vsel %vm270, %v268, 0.0
        %v407 = vsel %vm270, %v269, 0.0
        %v408 = vadd.f32 %v406, %v407
        %v409 = vrot.slane %v408, 4
        %v410 = vadd.f32 %v408, %v409
        %v411 = vrot.slane %v410, 2
        %v412 = vadd.f32 %v410, %v411
        %v413 = vrot.slane %v412, 1
        %v414 = vadd.f32 %v412, %v413
        %v415 = vmul.f32 %v351, 0.0625
        %v416 = vmul.f32 %v360, 0.0625
        %v417 = vmul.f32 %v369, 0.0625
        %v418 = vmul.f32 %v378, 0.0625
        %v419 = vmul.f32 %v387, 0.0625
        %v420 = vmul.f32 %v396, 0.0625
        %v421 = vmul.f32 %v405, 0.0625
        %v422 = vmul.f32 %v414, 0.0625
        %432 = vrot.lane.b32.xlu0 0.0, 3
        %v433 = vpop.permute.xlu0 %432
        %434 = vrot.lane.b32.xlu0 %v279, 3
        %v435 = vpop.permute.xlu0 %434
        %436 = vrot.lane.b32.xlu0 %v288, 3
        %v437 = vpop.permute.xlu0 %436
        %438 = vrot.lane.b32.xlu0 %v297, 3
        %v439 = vpop.permute.xlu0 %438
        %440 = vrot.lane.b32.xlu0 %v306, 3
        %v441 = vpop.permute.xlu0 %440
        %442 = vrot.lane.b32.xlu0 %v315, 3
        %v443 = vpop.permute.xlu0 %442
        %444 = vrot.lane.b32.xlu0 %v324, 3
        %v445 = vpop.permute.xlu0 %444
        %446 = vrot.lane.b32.xlu0 %v333, 3
        %v447 = vpop.permute.xlu0 %446
        %448 = vrot.lane.b32.xlu0 %v342, 3
        %v449 = vpop.permute.xlu0 %448
        %vm459 = vcmask 23552
        %v460 = vsel %vm459, 0.0, %v433
        %v461 = vsel %vm459, 0.0, %v435
        %v462 = vsel %vm459, 0.0, %v437
        %v463 = vsel %vm459, 0.0, %v439
        %v464 = vsel %vm459, 0.0, %v441
        %v465 = vsel %vm459, 0.0, %v443
        %v466 = vsel %vm459, 0.0, %v445
        %v467 = vsel %vm459, 0.0, %v447
        %v468 = vsel %vm459, 0.0, %v449
        %vm469 = vcmask 154624
        %v470 = vsel %vm469, %v460, 0.0
        %v471 = vsel %vm469, %v461, 0.0
        %v472 = vsel %vm469, %v462, 0.0
        %v473 = vsel %vm469, %v463, 0.0
        %v474 = vsel %vm469, %v464, 0.0
        %v475 = vsel %vm469, %v465, 0.0
        %v476 = vsel %vm469, %v466, 0.0
        %v477 = vsel %vm469, %v467, 0.0
        %v478 = vsel %vm469, %v468, 0.0
        %487 = vrot.lane.b32.xlu0 %v415, 3
        %v488 = vpop.permute.xlu0 %487
        %489 = vrot.lane.b32.xlu0 %v416, 3
        %v490 = vpop.permute.xlu0 %489
        %491 = vrot.lane.b32.xlu0 %v417, 3
        %v492 = vpop.permute.xlu0 %491
        %493 = vrot.lane.b32.xlu0 %v418, 3
        %v494 = vpop.permute.xlu0 %493
        %495 = vrot.lane.b32.xlu0 %v419, 3
        %v496 = vpop.permute.xlu0 %495
        %497 = vrot.lane.b32.xlu0 %v420, 3
        %v498 = vpop.permute.xlu0 %497
        %499 = vrot.lane.b32.xlu0 %v421, 3
        %v500 = vpop.permute.xlu0 %499
        %501 = vrot.lane.b32.xlu0 %v422, 3
        %v502 = vpop.permute.xlu0 %501
        %v511 = vsel %vm459, 0.0, %v488
        %v512 = vsel %vm459, 0.0, %v490
        %v513 = vsel %vm459, 0.0, %v492
        %v514 = vsel %vm459, 0.0, %v494
        %v515 = vsel %vm459, 0.0, %v496
        %v516 = vsel %vm459, 0.0, %v498
        %v517 = vsel %vm459, 0.0, %v500
        %v518 = vsel %vm459, 0.0, %v502
        %v519 = vsel %vm469, %v511, 0.0
        %v520 = vsel %vm469, %v512, 0.0
        %v521 = vsel %vm469, %v513, 0.0
        %v522 = vsel %vm469, %v514, 0.0
        %v523 = vsel %vm469, %v515, 0.0
        %v524 = vsel %vm469, %v516, 0.0
        %v525 = vsel %vm469, %v517, 0.0
        %v526 = vsel %vm469, %v518, 0.0
        %s527 = sld [smem:[#allocation2]]
        %v528 = vstv %s527
        %v529 = vmul.f32 %v528, %v470
        %v530 = vmul.f32 %v528, %v471
        %v531 = vmul.f32 %v528, %v472
        %v532 = vmul.f32 %v528, %v473
        %v533 = vmul.f32 %v528, %v474
        %v534 = vmul.f32 %v528, %v475
        %v535 = vadd.f32 %v529, 0.0
        %v536 = vadd.f32 %v530, 0.0
        %v537 = vadd.f32 %v531, 0.0
        %v538 = vadd.f32 %v532, 0.0
        %v539 = vadd.f32 %v533, 0.0
        %v540 = vadd.f32 %v534, 0.0
        %s541 = sld [smem:[#allocation2 + $0x1]]
        %v542 = vstv %s541
        %v543 = vmul.f32 %v542, %v470
        %v544 = vmul.f32 %v542, %v471
        %v545 = vmul.f32 %v542, %v472
        %v546 = vmul.f32 %v542, %v473
        %v547 = vmul.f32 %v542, %v474
        %v548 = vmul.f32 %v542, %v475
        %555 = vrot.lane.b32.xlu0 %v543, 127
        %v556 = vpop.permute.xlu0 %555
        %557 = vrot.lane.b32.xlu0 %v544, 127
        %v558 = vpop.permute.xlu0 %557
        %559 = vrot.lane.b32.xlu0 %v545, 127
        %v560 = vpop.permute.xlu0 %559
        %561 = vrot.lane.b32.xlu0 %v546, 127
        %v562 = vpop.permute.xlu0 %561
        %563 = vrot.lane.b32.xlu0 %v547, 127
        %v564 = vpop.permute.xlu0 %563
        %565 = vrot.lane.b32.xlu0 %v548, 127
        %v566 = vpop.permute.xlu0 %565
        %v573 = vadd.f32 %v535, %v556
        %v574 = vadd.f32 %v536, %v558
        %v575 = vadd.f32 %v537, %v560
        %v576 = vadd.f32 %v538, %v562
        %v577 = vadd.f32 %v539, %v564
        %v578 = vadd.f32 %v540, %v566
        %s579 = sld [smem:[#allocation2 + $0x2]]
        %v580 = vstv %s579
        %v581 = vmul.f32 %v580, %v470
        %v582 = vmul.f32 %v580, %v471
        %v583 = vmul.f32 %v580, %v472
        %v584 = vmul.f32 %v580, %v473
        %v585 = vmul.f32 %v580, %v474
        %v586 = vmul.f32 %v580, %v475
        %593 = vrot.lane.b32.xlu0 %v581, 126
        %v594 = vpop.permute.xlu0 %593
        %595 = vrot.lane.b32.xlu0 %v582, 126
        %v596 = vpop.permute.xlu0 %595
        %597 = vrot.lane.b32.xlu0 %v583, 126
        %v598 = vpop.permute.xlu0 %597
        %599 = vrot.lane.b32.xlu0 %v584, 126
        %v600 = vpop.permute.xlu0 %599
        %601 = vrot.lane.b32.xlu0 %v585, 126
        %v602 = vpop.permute.xlu0 %601
        %603 = vrot.lane.b32.xlu0 %v586, 126
        %v604 = vpop.permute.xlu0 %603
        %v611 = vadd.f32 %v573, %v594
        %v612 = vadd.f32 %v574, %v596
        %v613 = vadd.f32 %v575, %v598
        %v614 = vadd.f32 %v576, %v600
        %v615 = vadd.f32 %v577, %v602
        %v616 = vadd.f32 %v578, %v604
        %s617 = sld [smem:[#allocation2 + $0x3]]
        %v618 = vstv %s617
        %v619 = vmul.f32 %v618, %v470
        %v620 = vmul.f32 %v618, %v471
        %v621 = vmul.f32 %v618, %v472
        %v622 = vmul.f32 %v618, %v473
        %v623 = vmul.f32 %v618, %v474
        %v624 = vmul.f32 %v618, %v475
        %631 = vrot.lane.b32.xlu0 %v619, 125
        %v632 = vpop.permute.xlu0 %631
        %633 = vrot.lane.b32.xlu0 %v620, 125
        %v634 = vpop.permute.xlu0 %633
        %635 = vrot.lane.b32.xlu0 %v621, 125
        %v636 = vpop.permute.xlu0 %635
        %637 = vrot.lane.b32.xlu0 %v622, 125
        %v638 = vpop.permute.xlu0 %637
        %639 = vrot.lane.b32.xlu0 %v623, 125
        %v640 = vpop.permute.xlu0 %639
        %641 = vrot.lane.b32.xlu0 %v624, 125
        %v642 = vpop.permute.xlu0 %641
        %v649 = vadd.f32 %v611, %v632
        %v650 = vadd.f32 %v612, %v634
        %v651 = vadd.f32 %v613, %v636
        %v652 = vadd.f32 %v614, %v638
        %v653 = vadd.f32 %v615, %v640
        %v654 = vadd.f32 %v616, %v642
        %s655 = sld [smem:[#allocation2 + $0x4]]
        %v656 = vstv %s655
        %v657 = vmul.f32 %v656, %v470
        %v658 = vmul.f32 %v656, %v471
        %v659 = vmul.f32 %v656, %v472
        %v660 = vmul.f32 %v656, %v473
        %v661 = vmul.f32 %v656, %v474
        %v662 = vmul.f32 %v656, %v475
        %669 = vrot.lane.b32.xlu0 %v657, 124
        %v670 = vpop.permute.xlu0 %669
        %671 = vrot.lane.b32.xlu0 %v658, 124
        %v672 = vpop.permute.xlu0 %671
        %673 = vrot.lane.b32.xlu0 %v659, 124
        %v674 = vpop.permute.xlu0 %673
        %675 = vrot.lane.b32.xlu0 %v660, 124
        %v676 = vpop.permute.xlu0 %675
        %677 = vrot.lane.b32.xlu0 %v661, 124
        %v678 = vpop.permute.xlu0 %677
        %679 = vrot.lane.b32.xlu0 %v662, 124
        %v680 = vpop.permute.xlu0 %679
        %v687 = vadd.f32 %v649, %v670
        %v688 = vadd.f32 %v650, %v672
        %v689 = vadd.f32 %v651, %v674
        %v690 = vadd.f32 %v652, %v676
        %v691 = vadd.f32 %v653, %v678
        %v692 = vadd.f32 %v654, %v680
        %s693 = sld [smem:[#allocation2 + $0x5]]
        %v694 = vstv %s693
        %v695 = vmul.f32 %v694, %v470
        %v696 = vmul.f32 %v694, %v471
        %v697 = vmul.f32 %v694, %v472
        %v698 = vmul.f32 %v694, %v473
        %v699 = vmul.f32 %v694, %v474
        %v700 = vmul.f32 %v694, %v475
        %707 = vrot.lane.b32.xlu0 %v695, 123
        %v708 = vpop.permute.xlu0 %707
        %709 = vrot.lane.b32.xlu0 %v696, 123
        %v710 = vpop.permute.xlu0 %709
        %711 = vrot.lane.b32.xlu0 %v697, 123
        %v712 = vpop.permute.xlu0 %711
        %713 = vrot.lane.b32.xlu0 %v698, 123
        %v714 = vpop.permute.xlu0 %713
        %715 = vrot.lane.b32.xlu0 %v699, 123
        %v716 = vpop.permute.xlu0 %715
        %717 = vrot.lane.b32.xlu0 %v700, 123
        %v718 = vpop.permute.xlu0 %717
        %v725 = vadd.f32 %v687, %v708
        %v726 = vadd.f32 %v688, %v710
        %v727 = vadd.f32 %v689, %v712
        %v728 = vadd.f32 %v690, %v714
        %v729 = vadd.f32 %v691, %v716
        %v730 = vadd.f32 %v692, %v718
        %s731 = sld [smem:[#allocation2 + $0x6]]
        %v732 = vstv %s731
        %v733 = vmul.f32 %v732, %v470
        %v734 = vmul.f32 %v732, %v471
        %v735 = vmul.f32 %v732, %v472
        %v736 = vmul.f32 %v732, %v473
        %v737 = vmul.f32 %v732, %v474
        %v738 = vmul.f32 %v732, %v475
        %745 = vrot.lane.b32.xlu0 %v733, 122
        %v746 = vpop.permute.xlu0 %745
        %747 = vrot.lane.b32.xlu0 %v734, 122
        %v748 = vpop.permute.xlu0 %747
        %749 = vrot.lane.b32.xlu0 %v735, 122
        %v750 = vpop.permute.xlu0 %749
        %751 = vrot.lane.b32.xlu0 %v736, 122
        %v752 = vpop.permute.xlu0 %751
        %753 = vrot.lane.b32.xlu0 %v737, 122
        %v754 = vpop.permute.xlu0 %753
        %755 = vrot.lane.b32.xlu0 %v738, 122
        %v756 = vpop.permute.xlu0 %755
        %v763 = vadd.f32 %v725, %v746
        %v764 = vadd.f32 %v726, %v748
        %v765 = vadd.f32 %v727, %v750
        %v766 = vadd.f32 %v728, %v752
        %v767 = vadd.f32 %v729, %v754
        %v768 = vadd.f32 %v730, %v756
        %s769 = sld [smem:[#allocation2 + $0x7]]
        %v770 = vstv %s769
        %v771 = vmul.f32 %v770, %v470
        %v772 = vmul.f32 %v770, %v471
        %v773 = vmul.f32 %v770, %v472
        %v774 = vmul.f32 %v770, %v473
        %v775 = vmul.f32 %v770, %v474
        %v776 = vmul.f32 %v770, %v475
        %v777 = vmul.f32 %v770, %v476
        %v778 = vadd.f32 %v763, %v771
        %v779 = vadd.f32 %v763, %v772
        %v780 = vadd.f32 %v764, %v773
        %v781 = vadd.f32 %v765, %v774
        %v782 = vadd.f32 %v766, %v775
        %v783 = vadd.f32 %v767, %v776
        %v784 = vadd.f32 %v768, %v777
        %s785 = sld [smem:[#allocation2 + $0x8]]
        %v786 = vstv %s785
        %v787 = vmul.f32 %v786, %v470
        %v788 = vmul.f32 %v786, %v471
        %v789 = vmul.f32 %v786, %v472
        %v790 = vmul.f32 %v786, %v473
        %v791 = vmul.f32 %v786, %v474
        %v792 = vmul.f32 %v786, %v475
        %v793 = vmul.f32 %v786, %v476
        %801 = vrot.lane.b32.xlu0 %v787, 127
        %v802 = vpop.permute.xlu0 %801
        %803 = vrot.lane.b32.xlu0 %v788, 127
        %v804 = vpop.permute.xlu0 %803
        %805 = vrot.lane.b32.xlu0 %v789, 127
        %v806 = vpop.permute.xlu0 %805
        %807 = vrot.lane.b32.xlu0 %v790, 127
        %v808 = vpop.permute.xlu0 %807
        %809 = vrot.lane.b32.xlu0 %v791, 127
        %v810 = vpop.permute.xlu0 %809
        %811 = vrot.lane.b32.xlu0 %v792, 127
        %v812 = vpop.permute.xlu0 %811
        %813 = vrot.lane.b32.xlu0 %v793, 127
        %v814 = vpop.permute.xlu0 %813
        %v822 = vadd.f32 %v778, %v802
        %v823 = vadd.f32 %v779, %v804
        %v824 = vadd.f32 %v780, %v806
        %v825 = vadd.f32 %v781, %v808
        %v826 = vadd.f32 %v782, %v810
        %v827 = vadd.f32 %v783, %v812
        %v828 = vadd.f32 %v784, %v814
        %s829 = sld [smem:[#allocation2 + $0x9]]
        %v830 = vstv %s829
        %v831 = vmul.f32 %v830, %v470
        %v832 = vmul.f32 %v830, %v471
        %v833 = vmul.f32 %v830, %v472
        %v834 = vmul.f32 %v830, %v473
        %v835 = vmul.f32 %v830, %v474
        %v836 = vmul.f32 %v830, %v475
        %v837 = vmul.f32 %v830, %v476
        %845 = vrot.lane.b32.xlu0 %v831, 126
        %v846 = vpop.permute.xlu0 %845
        %847 = vrot.lane.b32.xlu0 %v832, 126
        %v848 = vpop.permute.xlu0 %847
        %849 = vrot.lane.b32.xlu0 %v833, 126
        %v850 = vpop.permute.xlu0 %849
        %851 = vrot.lane.b32.xlu0 %v834, 126
        %v852 = vpop.permute.xlu0 %851
        %853 = vrot.lane.b32.xlu0 %v835, 126
        %v854 = vpop.permute.xlu0 %853
        %855 = vrot.lane.b32.xlu0 %v836, 126
        %v856 = vpop.permute.xlu0 %855
        %857 = vrot.lane.b32.xlu0 %v837, 126
        %v858 = vpop.permute.xlu0 %857
        %v866 = vadd.f32 %v822, %v846
        %v867 = vadd.f32 %v823, %v848
        %v868 = vadd.f32 %v824, %v850
        %v869 = vadd.f32 %v825, %v852
        %v870 = vadd.f32 %v826, %v854
        %v871 = vadd.f32 %v827, %v856
        %v872 = vadd.f32 %v828, %v858
        %s873 = sld [smem:[#allocation2 + $0xa]]
        %v874 = vstv %s873
        %v875 = vmul.f32 %v874, %v470
        %v876 = vmul.f32 %v874, %v471
        %v877 = vmul.f32 %v874, %v472
        %v878 = vmul.f32 %v874, %v473
        %v879 = vmul.f32 %v874, %v474
        %v880 = vmul.f32 %v874, %v475
        %v881 = vmul.f32 %v874, %v476
        %889 = vrot.lane.b32.xlu0 %v875, 125
        %v890 = vpop.permute.xlu0 %889
        %891 = vrot.lane.b32.xlu0 %v876, 125
        %v892 = vpop.permute.xlu0 %891
        %893 = vrot.lane.b32.xlu0 %v877, 125
        %v894 = vpop.permute.xlu0 %893
        %895 = vrot.lane.b32.xlu0 %v878, 125
        %v896 = vpop.permute.xlu0 %895
        %897 = vrot.lane.b32.xlu0 %v879, 125
        %v898 = vpop.permute.xlu0 %897
        %899 = vrot.lane.b32.xlu0 %v880, 125
        %v900 = vpop.permute.xlu0 %899
        %901 = vrot.lane.b32.xlu0 %v881, 125
        %v902 = vpop.permute.xlu0 %901
        %v910 = vadd.f32 %v866, %v890
        %v911 = vadd.f32 %v867, %v892
        %v912 = vadd.f32 %v868, %v894
        %v913 = vadd.f32 %v869, %v896
        %v914 = vadd.f32 %v870, %v898
        %v915 = vadd.f32 %v871, %v900
        %v916 = vadd.f32 %v872, %v902
        %s917 = sld [smem:[#allocation2 + $0xb]]
        %v918 = vstv %s917
        %v919 = vmul.f32 %v918, %v470
        %v920 = vmul.f32 %v918, %v471
        %v921 = vmul.f32 %v918, %v472
        %v922 = vmul.f32 %v918, %v473
        %v923 = vmul.f32 %v918, %v474
        %v924 = vmul.f32 %v918, %v475
        %v925 = vmul.f32 %v918, %v476
        %933 = vrot.lane.b32.xlu0 %v919, 124
        %v934 = vpop.permute.xlu0 %933
        %935 = vrot.lane.b32.xlu0 %v920, 124
        %v936 = vpop.permute.xlu0 %935
        %937 = vrot.lane.b32.xlu0 %v921, 124
        %v938 = vpop.permute.xlu0 %937
        %939 = vrot.lane.b32.xlu0 %v922, 124
        %v940 = vpop.permute.xlu0 %939
        %941 = vrot.lane.b32.xlu0 %v923, 124
        %v942 = vpop.permute.xlu0 %941
        %943 = vrot.lane.b32.xlu0 %v924, 124
        %v944 = vpop.permute.xlu0 %943
        %945 = vrot.lane.b32.xlu0 %v925, 124
        %v946 = vpop.permute.xlu0 %945
        %v954 = vadd.f32 %v910, %v934
        %v955 = vadd.f32 %v911, %v936
        %v956 = vadd.f32 %v912, %v938
        %v957 = vadd.f32 %v913, %v940
        %v958 = vadd.f32 %v914, %v942
        %v959 = vadd.f32 %v915, %v944
        %v960 = vadd.f32 %v916, %v946
        %s961 = sld [smem:[#allocation2 + $0xc]]
        %v962 = vstv %s961
        %v963 = vmul.f32 %v962, %v470
        %v964 = vmul.f32 %v962, %v471
        %v965 = vmul.f32 %v962, %v472
        %v966 = vmul.f32 %v962, %v473
        %v967 = vmul.f32 %v962, %v474
        %v968 = vmul.f32 %v962, %v475
        %v969 = vmul.f32 %v962, %v476
        %977 = vrot.lane.b32.xlu0 %v963, 123
        %v978 = vpop.permute.xlu0 %977
        %979 = vrot.lane.b32.xlu0 %v964, 123
        %v980 = vpop.permute.xlu0 %979
        %981 = vrot.lane.b32.xlu0 %v965, 123
        %v982 = vpop.permute.xlu0 %981
        %983 = vrot.lane.b32.xlu0 %v966, 123
        %v984 = vpop.permute.xlu0 %983
        %985 = vrot.lane.b32.xlu0 %v967, 123
        %v986 = vpop.permute.xlu0 %985
        %987 = vrot.lane.b32.xlu0 %v968, 123
        %v988 = vpop.permute.xlu0 %987
        %989 = vrot.lane.b32.xlu0 %v969, 123
        %v990 = vpop.permute.xlu0 %989
        %v998 = vadd.f32 %v954, %v978
        %v999 = vadd.f32 %v955, %v980
        %v1000 = vadd.f32 %v956, %v982
        %v1001 = vadd.f32 %v957, %v984
        %v1002 = vadd.f32 %v958, %v986
        %v1003 = vadd.f32 %v959, %v988
        %v1004 = vadd.f32 %v960, %v990
        %s1005 = sld [smem:[#allocation2 + $0xd]]
        %v1006 = vstv %s1005
        %v1007 = vmul.f32 %v1006, %v470
        %v1008 = vmul.f32 %v1006, %v471
        %v1009 = vmul.f32 %v1006, %v472
        %v1010 = vmul.f32 %v1006, %v473
        %v1011 = vmul.f32 %v1006, %v474
        %v1012 = vmul.f32 %v1006, %v475
        %v1013 = vmul.f32 %v1006, %v476
        %1021 = vrot.lane.b32.xlu0 %v1007, 122
        %v1022 = vpop.permute.xlu0 %1021
        %1023 = vrot.lane.b32.xlu0 %v1008, 122
        %v1024 = vpop.permute.xlu0 %1023
        %1025 = vrot.lane.b32.xlu0 %v1009, 122
        %v1026 = vpop.permute.xlu0 %1025
        %1027 = vrot.lane.b32.xlu0 %v1010, 122
        %v1028 = vpop.permute.xlu0 %1027
        %1029 = vrot.lane.b32.xlu0 %v1011, 122
        %v1030 = vpop.permute.xlu0 %1029
        %1031 = vrot.lane.b32.xlu0 %v1012, 122
        %v1032 = vpop.permute.xlu0 %1031
        %1033 = vrot.lane.b32.xlu0 %v1013, 122
        %v1034 = vpop.permute.xlu0 %1033
        %v1042 = vadd.f32 %v998, %v1022
        %v1043 = vadd.f32 %v999, %v1024
        %v1044 = vadd.f32 %v1000, %v1026
        %v1045 = vadd.f32 %v1001, %v1028
        %v1046 = vadd.f32 %v1002, %v1030
        %v1047 = vadd.f32 %v1003, %v1032
        %v1048 = vadd.f32 %v1004, %v1034
        %s1049 = sld [smem:[#allocation2 + $0xe]]
        %v1050 = vstv %s1049
        %v1051 = vmul.f32 %v1050, %v470
        %v1052 = vmul.f32 %v1050, %v471
        %v1053 = vmul.f32 %v1050, %v472
        %v1054 = vmul.f32 %v1050, %v473
        %v1055 = vmul.f32 %v1050, %v474
        %v1056 = vmul.f32 %v1050, %v475
        %v1057 = vmul.f32 %v1050, %v476
        %v1058 = vmul.f32 %v1050, %v477
        %v1059 = vadd.f32 %v1042, %v1051
        %v1060 = vadd.f32 %v1042, %v1052
        %v1061 = vadd.f32 %v1043, %v1053
        %v1062 = vadd.f32 %v1044, %v1054
        %v1063 = vadd.f32 %v1045, %v1055
        %v1064 = vadd.f32 %v1046, %v1056
        %v1065 = vadd.f32 %v1047, %v1057
        %v1066 = vadd.f32 %v1048, %v1058
        %s1067 = sld [smem:[#allocation2 + $0xf]]
        %v1068 = vstv %s1067
        %v1069 = vmul.f32 %v1068, %v470
        %v1070 = vmul.f32 %v1068, %v471
        %v1071 = vmul.f32 %v1068, %v472
        %v1072 = vmul.f32 %v1068, %v473
        %v1073 = vmul.f32 %v1068, %v474
        %v1074 = vmul.f32 %v1068, %v475
        %v1075 = vmul.f32 %v1068, %v476
        %v1076 = vmul.f32 %v1068, %v477
        %1085 = vrot.lane.b32.xlu0 %v1069, 127
        %v1086 = vpop.permute.xlu0 %1085
        %1087 = vrot.lane.b32.xlu0 %v1070, 127
        %v1088 = vpop.permute.xlu0 %1087
        %1089 = vrot.lane.b32.xlu0 %v1071, 127
        %v1090 = vpop.permute.xlu0 %1089
        %1091 = vrot.lane.b32.xlu0 %v1072, 127
        %v1092 = vpop.permute.xlu0 %1091
        %1093 = vrot.lane.b32.xlu0 %v1073, 127
        %v1094 = vpop.permute.xlu0 %1093
        %1095 = vrot.lane.b32.xlu0 %v1074, 127
        %v1096 = vpop.permute.xlu0 %1095
        %1097 = vrot.lane.b32.xlu0 %v1075, 127
        %v1098 = vpop.permute.xlu0 %1097
        %1099 = vrot.lane.b32.xlu0 %v1076, 127
        %v1100 = vpop.permute.xlu0 %1099
        %v1109 = vadd.f32 %v1059, %v1086
        %v1110 = vadd.f32 %v1060, %v1088
        %v1111 = vadd.f32 %v1061, %v1090
        %v1112 = vadd.f32 %v1062, %v1092
        %v1113 = vadd.f32 %v1063, %v1094
        %v1114 = vadd.f32 %v1064, %v1096
        %v1115 = vadd.f32 %v1065, %v1098
        %v1116 = vadd.f32 %v1066, %v1100
        %s1117 = sld [smem:[#allocation2 + $0x10]]
        %v1118 = vstv %s1117
        %v1119 = vmul.f32 %v1118, %v470
        %v1120 = vmul.f32 %v1118, %v471
        %v1121 = vmul.f32 %v1118, %v472
        %v1122 = vmul.f32 %v1118, %v473
        %v1123 = vmul.f32 %v1118, %v474
        %v1124 = vmul.f32 %v1118, %v475
        %v1125 = vmul.f32 %v1118, %v476
        %v1126 = vmul.f32 %v1118, %v477
        %1135 = vrot.lane.b32.xlu0 %v1119, 126
        %v1136 = vpop.permute.xlu0 %1135
        %1137 = vrot.lane.b32.xlu0 %v1120, 126
        %v1138 = vpop.permute.xlu0 %1137
        %1139 = vrot.lane.b32.xlu0 %v1121, 126
        %v1140 = vpop.permute.xlu0 %1139
        %1141 = vrot.lane.b32.xlu0 %v1122, 126
        %v1142 = vpop.permute.xlu0 %1141
        %1143 = vrot.lane.b32.xlu0 %v1123, 126
        %v1144 = vpop.permute.xlu0 %1143
        %1145 = vrot.lane.b32.xlu0 %v1124, 126
        %v1146 = vpop.permute.xlu0 %1145
        %1147 = vrot.lane.b32.xlu0 %v1125, 126
        %v1148 = vpop.permute.xlu0 %1147
        %1149 = vrot.lane.b32.xlu0 %v1126, 126
        %v1150 = vpop.permute.xlu0 %1149
        %v1159 = vadd.f32 %v1109, %v1136
        %v1160 = vadd.f32 %v1110, %v1138
        %v1161 = vadd.f32 %v1111, %v1140
        %v1162 = vadd.f32 %v1112, %v1142
        %v1163 = vadd.f32 %v1113, %v1144
        %v1164 = vadd.f32 %v1114, %v1146
        %v1165 = vadd.f32 %v1115, %v1148
        %v1166 = vadd.f32 %v1116, %v1150
        %s1167 = sld [smem:[#allocation2 + $0x11]]
        %v1168 = vstv %s1167
        %v1169 = vmul.f32 %v1168, %v470
        %v1170 = vmul.f32 %v1168, %v471
        %v1171 = vmul.f32 %v1168, %v472
        %v1172 = vmul.f32 %v1168, %v473
        %v1173 = vmul.f32 %v1168, %v474
        %v1174 = vmul.f32 %v1168, %v475
        %v1175 = vmul.f32 %v1168, %v476
        %v1176 = vmul.f32 %v1168, %v477
        %1185 = vrot.lane.b32.xlu0 %v1169, 125
        %v1186 = vpop.permute.xlu0 %1185
        %1187 = vrot.lane.b32.xlu0 %v1170, 125
        %v1188 = vpop.permute.xlu0 %1187
        %1189 = vrot.lane.b32.xlu0 %v1171, 125
        %v1190 = vpop.permute.xlu0 %1189
        %1191 = vrot.lane.b32.xlu0 %v1172, 125
        %v1192 = vpop.permute.xlu0 %1191
        %1193 = vrot.lane.b32.xlu0 %v1173, 125
        %v1194 = vpop.permute.xlu0 %1193
        %1195 = vrot.lane.b32.xlu0 %v1174, 125
        %v1196 = vpop.permute.xlu0 %1195
        %1197 = vrot.lane.b32.xlu0 %v1175, 125
        %v1198 = vpop.permute.xlu0 %1197
        %1199 = vrot.lane.b32.xlu0 %v1176, 125
        %v1200 = vpop.permute.xlu0 %1199
        %v1209 = vadd.f32 %v1159, %v1186
        %v1210 = vadd.f32 %v1160, %v1188
        %v1211 = vadd.f32 %v1161, %v1190
        %v1212 = vadd.f32 %v1162, %v1192
        %v1213 = vadd.f32 %v1163, %v1194
        %v1214 = vadd.f32 %v1164, %v1196
        %v1215 = vadd.f32 %v1165, %v1198
        %v1216 = vadd.f32 %v1166, %v1200
        %s1217 = sld [smem:[#allocation2 + $0x12]]
        %v1218 = vstv %s1217
        %v1219 = vmul.f32 %v1218, %v470
        %v1220 = vmul.f32 %v1218, %v471
        %v1221 = vmul.f32 %v1218, %v472
        %v1222 = vmul.f32 %v1218, %v473
        %v1223 = vmul.f32 %v1218, %v474
        %v1224 = vmul.f32 %v1218, %v475
        %v1225 = vmul.f32 %v1218, %v476
        %v1226 = vmul.f32 %v1218, %v477
        %1235 = vrot.lane.b32.xlu0 %v1219, 124
        %v1236 = vpop.permute.xlu0 %1235
        %1237 = vrot.lane.b32.xlu0 %v1220, 124
        %v1238 = vpop.permute.xlu0 %1237
        %1239 = vrot.lane.b32.xlu0 %v1221, 124
        %v1240 = vpop.permute.xlu0 %1239
        %1241 = vrot.lane.b32.xlu0 %v1222, 124
        %v1242 = vpop.permute.xlu0 %1241
        %1243 = vrot.lane.b32.xlu0 %v1223, 124
        %v1244 = vpop.permute.xlu0 %1243
        %1245 = vrot.lane.b32.xlu0 %v1224, 124
        %v1246 = vpop.permute.xlu0 %1245
        %1247 = vrot.lane.b32.xlu0 %v1225, 124
        %v1248 = vpop.permute.xlu0 %1247
        %1249 = vrot.lane.b32.xlu0 %v1226, 124
        %v1250 = vpop.permute.xlu0 %1249
        %v1259 = vadd.f32 %v1209, %v1236
        %v1260 = vadd.f32 %v1210, %v1238
        %v1261 = vadd.f32 %v1211, %v1240
        %v1262 = vadd.f32 %v1212, %v1242
        %v1263 = vadd.f32 %v1213, %v1244
        %v1264 = vadd.f32 %v1214, %v1246
        %v1265 = vadd.f32 %v1215, %v1248
        %v1266 = vadd.f32 %v1216, %v1250
        %s1267 = sld [smem:[#allocation2 + $0x13]]
        %v1268 = vstv %s1267
        %v1269 = vmul.f32 %v1268, %v470
        %v1270 = vmul.f32 %v1268, %v471
        %v1271 = vmul.f32 %v1268, %v472
        %v1272 = vmul.f32 %v1268, %v473
        %v1273 = vmul.f32 %v1268, %v474
        %v1274 = vmul.f32 %v1268, %v475
        %v1275 = vmul.f32 %v1268, %v476
        %v1276 = vmul.f32 %v1268, %v477
        %1285 = vrot.lane.b32.xlu0 %v1269, 123
        %v1286 = vpop.permute.xlu0 %1285
        %1287 = vrot.lane.b32.xlu0 %v1270, 123
        %v1288 = vpop.permute.xlu0 %1287
        %1289 = vrot.lane.b32.xlu0 %v1271, 123
        %v1290 = vpop.permute.xlu0 %1289
        %1291 = vrot.lane.b32.xlu0 %v1272, 123
        %v1292 = vpop.permute.xlu0 %1291
        %1293 = vrot.lane.b32.xlu0 %v1273, 123
        %v1294 = vpop.permute.xlu0 %1293
        %1295 = vrot.lane.b32.xlu0 %v1274, 123
        %v1296 = vpop.permute.xlu0 %1295
        %1297 = vrot.lane.b32.xlu0 %v1275, 123
        %v1298 = vpop.permute.xlu0 %1297
        %1299 = vrot.lane.b32.xlu0 %v1276, 123
        %v1300 = vpop.permute.xlu0 %1299
        %v1309 = vadd.f32 %v1259, %v1286
        %v1310 = vadd.f32 %v1260, %v1288
        %v1311 = vadd.f32 %v1261, %v1290
        %v1312 = vadd.f32 %v1262, %v1292
        %v1313 = vadd.f32 %v1263, %v1294
        %v1314 = vadd.f32 %v1264, %v1296
        %v1315 = vadd.f32 %v1265, %v1298
        %v1316 = vadd.f32 %v1266, %v1300
        %s1317 = sld [smem:[#allocation2 + $0x14]]
        %v1318 = vstv %s1317
        %v1319 = vmul.f32 %v1318, %v470
        %v1320 = vmul.f32 %v1318, %v471
        %v1321 = vmul.f32 %v1318, %v472
        %v1322 = vmul.f32 %v1318, %v473
        %v1323 = vmul.f32 %v1318, %v474
        %v1324 = vmul.f32 %v1318, %v475
        %v1325 = vmul.f32 %v1318, %v476
        %v1326 = vmul.f32 %v1318, %v477
        %1335 = vrot.lane.b32.xlu0 %v1319, 122
        %v1336 = vpop.permute.xlu0 %1335
        %1337 = vrot.lane.b32.xlu0 %v1320, 122
        %v1338 = vpop.permute.xlu0 %1337
        %1339 = vrot.lane.b32.xlu0 %v1321, 122
        %v1340 = vpop.permute.xlu0 %1339
        %1341 = vrot.lane.b32.xlu0 %v1322, 122
        %v1342 = vpop.permute.xlu0 %1341
        %1343 = vrot.lane.b32.xlu0 %v1323, 122
        %v1344 = vpop.permute.xlu0 %1343
        %1345 = vrot.lane.b32.xlu0 %v1324, 122
        %v1346 = vpop.permute.xlu0 %1345
        %1347 = vrot.lane.b32.xlu0 %v1325, 122
        %v1348 = vpop.permute.xlu0 %1347
        %1349 = vrot.lane.b32.xlu0 %v1326, 122
        %v1350 = vpop.permute.xlu0 %1349
        %v1359 = vadd.f32 %v1309, %v1336
        %v1360 = vadd.f32 %v1310, %v1338
        %v1361 = vadd.f32 %v1311, %v1340
        %v1362 = vadd.f32 %v1312, %v1342
        %v1363 = vadd.f32 %v1313, %v1344
        %v1364 = vadd.f32 %v1314, %v1346
        %v1365 = vadd.f32 %v1315, %v1348
        %v1366 = vadd.f32 %v1316, %v1350
        %s1367 = sld [smem:[#allocation2 + $0x15]]
        %v1368 = vstv %s1367
        %v1369 = vmul.f32 %v1368, %v471
        %v1370 = vmul.f32 %v1368, %v472
        %v1371 = vmul.f32 %v1368, %v473
        %v1372 = vmul.f32 %v1368, %v474
        %v1373 = vmul.f32 %v1368, %v475
        %v1374 = vmul.f32 %v1368, %v476
        %v1375 = vmul.f32 %v1368, %v477
        %v1376 = vmul.f32 %v1368, %v478
        %v1377 = vadd.f32 %v1359, %v1369
        %v1378 = vadd.f32 %v1360, %v1370
        %v1379 = vadd.f32 %v1361, %v1371
        %v1380 = vadd.f32 %v1362, %v1372
        %v1381 = vadd.f32 %v1363, %v1373
        %v1382 = vadd.f32 %v1364, %v1374
        %v1383 = vadd.f32 %v1365, %v1375
        %v1384 = vadd.f32 %v1366, %v1376
        %s1385 = sld [smem:[#allocation2 + $0x16]]
        %v1386 = vstv %s1385
        %v1387 = vmul.f32 %v1386, %v471
        %v1388 = vmul.f32 %v1386, %v472
        %v1389 = vmul.f32 %v1386, %v473
        %v1390 = vmul.f32 %v1386, %v474
        %v1391 = vmul.f32 %v1386, %v475
        %v1392 = vmul.f32 %v1386, %v476
        %v1393 = vmul.f32 %v1386, %v477
        %v1394 = vmul.f32 %v1386, %v478
        %1403 = vrot.lane.b32.xlu0 %v1387, 127
        %v1404 = vpop.permute.xlu0 %1403
        %1405 = vrot.lane.b32.xlu0 %v1388, 127
        %v1406 = vpop.permute.xlu0 %1405
        %1407 = vrot.lane.b32.xlu0 %v1389, 127
        %v1408 = vpop.permute.xlu0 %1407
        %1409 = vrot.lane.b32.xlu0 %v1390, 127
        %v1410 = vpop.permute.xlu0 %1409
        %1411 = vrot.lane.b32.xlu0 %v1391, 127
        %v1412 = vpop.permute.xlu0 %1411
        %1413 = vrot.lane.b32.xlu0 %v1392, 127
        %v1414 = vpop.permute.xlu0 %1413
        %1415 = vrot.lane.b32.xlu0 %v1393, 127
        %v1416 = vpop.permute.xlu0 %1415
        %1417 = vrot.lane.b32.xlu0 %v1394, 127
        %v1418 = vpop.permute.xlu0 %1417
        %v1427 = vadd.f32 %v1377, %v1404
        %v1428 = vadd.f32 %v1378, %v1406
        %v1429 = vadd.f32 %v1379, %v1408
        %v1430 = vadd.f32 %v1380, %v1410
        %v1431 = vadd.f32 %v1381, %v1412
        %v1432 = vadd.f32 %v1382, %v1414
        %v1433 = vadd.f32 %v1383, %v1416
        %v1434 = vadd.f32 %v1384, %v1418
        %s1435 = sld [smem:[#allocation2 + $0x17]]
        %v1436 = vstv %s1435
        %v1437 = vmul.f32 %v1436, %v471
        %v1438 = vmul.f32 %v1436, %v472
        %v1439 = vmul.f32 %v1436, %v473
        %v1440 = vmul.f32 %v1436, %v474
        %v1441 = vmul.f32 %v1436, %v475
        %v1442 = vmul.f32 %v1436, %v476
        %v1443 = vmul.f32 %v1436, %v477
        %v1444 = vmul.f32 %v1436, %v478
        %1453 = vrot.lane.b32.xlu0 %v1437, 126
        %v1454 = vpop.permute.xlu0 %1453
        %1455 = vrot.lane.b32.xlu0 %v1438, 126
        %v1456 = vpop.permute.xlu0 %1455
        %1457 = vrot.lane.b32.xlu0 %v1439, 126
        %v1458 = vpop.permute.xlu0 %1457
        %1459 = vrot.lane.b32.xlu0 %v1440, 126
        %v1460 = vpop.permute.xlu0 %1459
        %1461 = vrot.lane.b32.xlu0 %v1441, 126
        %v1462 = vpop.permute.xlu0 %1461
        %1463 = vrot.lane.b32.xlu0 %v1442, 126
        %v1464 = vpop.permute.xlu0 %1463
        %1465 = vrot.lane.b32.xlu0 %v1443, 126
        %v1466 = vpop.permute.xlu0 %1465
        %1467 = vrot.lane.b32.xlu0 %v1444, 126
        %v1468 = vpop.permute.xlu0 %1467
        %v1477 = vadd.f32 %v1427, %v1454
        %v1478 = vadd.f32 %v1428, %v1456
        %v1479 = vadd.f32 %v1429, %v1458
        %v1480 = vadd.f32 %v1430, %v1460
        %v1481 = vadd.f32 %v1431, %v1462
        %v1482 = vadd.f32 %v1432, %v1464
        %v1483 = vadd.f32 %v1433, %v1466
        %v1484 = vadd.f32 %v1434, %v1468
        %s1485 = sld [smem:[#allocation2 + $0x18]]
        %v1486 = vstv %s1485
        %v1487 = vmul.f32 %v1486, %v471
        %v1488 = vmul.f32 %v1486, %v472
        %v1489 = vmul.f32 %v1486, %v473
        %v1490 = vmul.f32 %v1486, %v474
        %v1491 = vmul.f32 %v1486, %v475
        %v1492 = vmul.f32 %v1486, %v476
        %v1493 = vmul.f32 %v1486, %v477
        %v1494 = vmul.f32 %v1486, %v478
        %1503 = vrot.lane.b32.xlu0 %v1487, 125
        %v1504 = vpop.permute.xlu0 %1503
        %1505 = vrot.lane.b32.xlu0 %v1488, 125
        %v1506 = vpop.permute.xlu0 %1505
        %1507 = vrot.lane.b32.xlu0 %v1489, 125
        %v1508 = vpop.permute.xlu0 %1507
        %1509 = vrot.lane.b32.xlu0 %v1490, 125
        %v1510 = vpop.permute.xlu0 %1509
        %1511 = vrot.lane.b32.xlu0 %v1491, 125
        %v1512 = vpop.permute.xlu0 %1511
        %1513 = vrot.lane.b32.xlu0 %v1492, 125
        %v1514 = vpop.permute.xlu0 %1513
        %1515 = vrot.lane.b32.xlu0 %v1493, 125
        %v1516 = vpop.permute.xlu0 %1515
        %1517 = vrot.lane.b32.xlu0 %v1494, 125
        %v1518 = vpop.permute.xlu0 %1517
        %v1527 = vadd.f32 %v1477, %v1504
        %v1528 = vadd.f32 %v1478, %v1506
        %v1529 = vadd.f32 %v1479, %v1508
        %v1530 = vadd.f32 %v1480, %v1510
        %v1531 = vadd.f32 %v1481, %v1512
        %v1532 = vadd.f32 %v1482, %v1514
        %v1533 = vadd.f32 %v1483, %v1516
        %v1534 = vadd.f32 %v1484, %v1518
        %s1535 = sld [smem:[#allocation2 + $0x19]]
        %v1536 = vstv %s1535
        %v1537 = vmul.f32 %v1536, %v471
        %v1538 = vmul.f32 %v1536, %v472
        %v1539 = vmul.f32 %v1536, %v473
        %v1540 = vmul.f32 %v1536, %v474
        %v1541 = vmul.f32 %v1536, %v475
        %v1542 = vmul.f32 %v1536, %v476
        %v1543 = vmul.f32 %v1536, %v477
        %v1544 = vmul.f32 %v1536, %v478
        %1553 = vrot.lane.b32.xlu0 %v1537, 124
        %v1554 = vpop.permute.xlu0 %1553
        %1555 = vrot.lane.b32.xlu0 %v1538, 124
        %v1556 = vpop.permute.xlu0 %1555
        %1557 = vrot.lane.b32.xlu0 %v1539, 124
        %v1558 = vpop.permute.xlu0 %1557
        %1559 = vrot.lane.b32.xlu0 %v1540, 124
        %v1560 = vpop.permute.xlu0 %1559
        %1561 = vrot.lane.b32.xlu0 %v1541, 124
        %v1562 = vpop.permute.xlu0 %1561
        %1563 = vrot.lane.b32.xlu0 %v1542, 124
        %v1564 = vpop.permute.xlu0 %1563
        %1565 = vrot.lane.b32.xlu0 %v1543, 124
        %v1566 = vpop.permute.xlu0 %1565
        %1567 = vrot.lane.b32.xlu0 %v1544, 124
        %v1568 = vpop.permute.xlu0 %1567
        %v1577 = vadd.f32 %v1527, %v1554
        %v1578 = vadd.f32 %v1528, %v1556
        %v1579 = vadd.f32 %v1529, %v1558
        %v1580 = vadd.f32 %v1530, %v1560
        %v1581 = vadd.f32 %v1531, %v1562
        %v1582 = vadd.f32 %v1532, %v1564
        %v1583 = vadd.f32 %v1533, %v1566
        %v1584 = vadd.f32 %v1534, %v1568
        %s1585 = sld [smem:[#allocation2 + $0x1a]]
        %v1586 = vstv %s1585
        %v1587 = vmul.f32 %v1586, %v471
        %v1588 = vmul.f32 %v1586, %v472
        %v1589 = vmul.f32 %v1586, %v473
        %v1590 = vmul.f32 %v1586, %v474
        %v1591 = vmul.f32 %v1586, %v475
        %v1592 = vmul.f32 %v1586, %v476
        %v1593 = vmul.f32 %v1586, %v477
        %v1594 = vmul.f32 %v1586, %v478
        %1603 = vrot.lane.b32.xlu0 %v1587, 123
        %v1604 = vpop.permute.xlu0 %1603
        %1605 = vrot.lane.b32.xlu0 %v1588, 123
        %v1606 = vpop.permute.xlu0 %1605
        %1607 = vrot.lane.b32.xlu0 %v1589, 123
        %v1608 = vpop.permute.xlu0 %1607
        %1609 = vrot.lane.b32.xlu0 %v1590, 123
        %v1610 = vpop.permute.xlu0 %1609
        %1611 = vrot.lane.b32.xlu0 %v1591, 123
        %v1612 = vpop.permute.xlu0 %1611
        %1613 = vrot.lane.b32.xlu0 %v1592, 123
        %v1614 = vpop.permute.xlu0 %1613
        %1615 = vrot.lane.b32.xlu0 %v1593, 123
        %v1616 = vpop.permute.xlu0 %1615
        %1617 = vrot.lane.b32.xlu0 %v1594, 123
        %v1618 = vpop.permute.xlu0 %1617
        %v1627 = vadd.f32 %v1577, %v1604
        %v1628 = vadd.f32 %v1578, %v1606
        %v1629 = vadd.f32 %v1579, %v1608
        %v1630 = vadd.f32 %v1580, %v1610
        %v1631 = vadd.f32 %v1581, %v1612
        %v1632 = vadd.f32 %v1582, %v1614
        %v1633 = vadd.f32 %v1583, %v1616
        %v1634 = vadd.f32 %v1584, %v1618
        %s1635 = sld [smem:[#allocation2 + $0x1b]]
        %v1636 = vstv %s1635
        %v1637 = vmul.f32 %v1636, %v471
        %v1638 = vmul.f32 %v1636, %v472
        %v1639 = vmul.f32 %v1636, %v473
        %v1640 = vmul.f32 %v1636, %v474
        %v1641 = vmul.f32 %v1636, %v475
        %v1642 = vmul.f32 %v1636, %v476
        %v1643 = vmul.f32 %v1636, %v477
        %v1644 = vmul.f32 %v1636, %v478
        %1653 = vrot.lane.b32.xlu0 %v1637, 122
        %v1654 = vpop.permute.xlu0 %1653
        %1655 = vrot.lane.b32.xlu0 %v1638, 122
        %v1656 = vpop.permute.xlu0 %1655
        %1657 = vrot.lane.b32.xlu0 %v1639, 122
        %v1658 = vpop.permute.xlu0 %1657
        %1659 = vrot.lane.b32.xlu0 %v1640, 122
        %v1660 = vpop.permute.xlu0 %1659
        %1661 = vrot.lane.b32.xlu0 %v1641, 122
        %v1662 = vpop.permute.xlu0 %1661
        %1663 = vrot.lane.b32.xlu0 %v1642, 122
        %v1664 = vpop.permute.xlu0 %1663
        %1665 = vrot.lane.b32.xlu0 %v1643, 122
        %v1666 = vpop.permute.xlu0 %1665
        %1667 = vrot.lane.b32.xlu0 %v1644, 122
        %v1668 = vpop.permute.xlu0 %1667
        %v1677 = vadd.f32 %v1627, %v1654
        %v1678 = vadd.f32 %v1628, %v1656
        %v1679 = vadd.f32 %v1629, %v1658
        %v1680 = vadd.f32 %v1630, %v1660
        %v1681 = vadd.f32 %v1631, %v1662
        %v1682 = vadd.f32 %v1632, %v1664
        %v1683 = vadd.f32 %v1633, %v1666
        %v1684 = vadd.f32 %v1634, %v1668
        %s1685 = sld [smem:[#allocation2 + $0x1c]]
        %v1686 = vstv %s1685
        %v1687 = vmul.f32 %v1686, %v472
        %v1688 = vmul.f32 %v1686, %v473
        %v1689 = vmul.f32 %v1686, %v474
        %v1690 = vmul.f32 %v1686, %v475
        %v1691 = vmul.f32 %v1686, %v476
        %v1692 = vmul.f32 %v1686, %v477
        %v1693 = vmul.f32 %v1686, %v478
        %v1694 = vmul.f32 %v1686, %v470
        %v1695 = vadd.f32 %v1677, %v1687
        %v1696 = vadd.f32 %v1678, %v1688
        %v1697 = vadd.f32 %v1679, %v1689
        %v1698 = vadd.f32 %v1680, %v1690
        %v1699 = vadd.f32 %v1681, %v1691
        %v1700 = vadd.f32 %v1682, %v1692
        %v1701 = vadd.f32 %v1683, %v1693
        %v1702 = vadd.f32 %v1684, %v1694
        %s1703 = sld [smem:[#allocation2 + $0x1d]]
        %v1704 = vstv %s1703
        %v1705 = vmul.f32 %v1704, %v472
        %v1706 = vmul.f32 %v1704, %v473
        %v1707 = vmul.f32 %v1704, %v474
        %v1708 = vmul.f32 %v1704, %v475
        %v1709 = vmul.f32 %v1704, %v476
        %v1710 = vmul.f32 %v1704, %v477
        %v1711 = vmul.f32 %v1704, %v478
        %v1712 = vmul.f32 %v1704, %v470
        %1721 = vrot.lane.b32.xlu0 %v1705, 127
        %v1722 = vpop.permute.xlu0 %1721
        %1723 = vrot.lane.b32.xlu0 %v1706, 127
        %v1724 = vpop.permute.xlu0 %1723
        %1725 = vrot.lane.b32.xlu0 %v1707, 127
        %v1726 = vpop.permute.xlu0 %1725
        %1727 = vrot.lane.b32.xlu0 %v1708, 127
        %v1728 = vpop.permute.xlu0 %1727
        %1729 = vrot.lane.b32.xlu0 %v1709, 127
        %v1730 = vpop.permute.xlu0 %1729
        %1731 = vrot.lane.b32.xlu0 %v1710, 127
        %v1732 = vpop.permute.xlu0 %1731
        %1733 = vrot.lane.b32.xlu0 %v1711, 127
        %v1734 = vpop.permute.xlu0 %1733
        %1735 = vrot.lane.b32.xlu0 %v1712, 127
        %v1736 = vpop.permute.xlu0 %1735
        %v1745 = vadd.f32 %v1695, %v1722
        %v1746 = vadd.f32 %v1696, %v1724
        %v1747 = vadd.f32 %v1697, %v1726
        %v1748 = vadd.f32 %v1698, %v1728
        %v1749 = vadd.f32 %v1699, %v1730
        %v1750 = vadd.f32 %v1700, %v1732
        %v1751 = vadd.f32 %v1701, %v1734
        %v1752 = vadd.f32 %v1702, %v1736
        %s1753 = sld [smem:[#allocation2 + $0x1e]]
        %v1754 = vstv %s1753
        %v1755 = vmul.f32 %v1754, %v472
        %v1756 = vmul.f32 %v1754, %v473
        %v1757 = vmul.f32 %v1754, %v474
        %v1758 = vmul.f32 %v1754, %v475
        %v1759 = vmul.f32 %v1754, %v476
        %v1760 = vmul.f32 %v1754, %v477
        %v1761 = vmul.f32 %v1754, %v478
        %v1762 = vmul.f32 %v1754, %v470
        %1771 = vrot.lane.b32.xlu0 %v1755, 126
        %v1772 = vpop.permute.xlu0 %1771
        %1773 = vrot.lane.b32.xlu0 %v1756, 126
        %v1774 = vpop.permute.xlu0 %1773
        %1775 = vrot.lane.b32.xlu0 %v1757, 126
        %v1776 = vpop.permute.xlu0 %1775
        %1777 = vrot.lane.b32.xlu0 %v1758, 126
        %v1778 = vpop.permute.xlu0 %1777
        %1779 = vrot.lane.b32.xlu0 %v1759, 126
        %v1780 = vpop.permute.xlu0 %1779
        %1781 = vrot.lane.b32.xlu0 %v1760, 126
        %v1782 = vpop.permute.xlu0 %1781
        %1783 = vrot.lane.b32.xlu0 %v1761, 126
        %v1784 = vpop.permute.xlu0 %1783
        %1785 = vrot.lane.b32.xlu0 %v1762, 126
        %v1786 = vpop.permute.xlu0 %1785
        %v1795 = vadd.f32 %v1745, %v1772
        %v1796 = vadd.f32 %v1746, %v1774
        %v1797 = vadd.f32 %v1747, %v1776
        %v1798 = vadd.f32 %v1748, %v1778
        %v1799 = vadd.f32 %v1749, %v1780
        %v1800 = vadd.f32 %v1750, %v1782
        %v1801 = vadd.f32 %v1751, %v1784
        %v1802 = vadd.f32 %v1752, %v1786
        %s1803 = sld [smem:[#allocation2 + $0x1f]]
        %v1804 = vstv %s1803
        %v1805 = vmul.f32 %v1804, %v472
        %v1806 = vmul.f32 %v1804, %v473
        %v1807 = vmul.f32 %v1804, %v474
        %v1808 = vmul.f32 %v1804, %v475
        %v1809 = vmul.f32 %v1804, %v476
        %v1810 = vmul.f32 %v1804, %v477
        %v1811 = vmul.f32 %v1804, %v478
        %v1812 = vmul.f32 %v1804, %v470
        %1821 = vrot.lane.b32.xlu0 %v1805, 125
        %v1822 = vpop.permute.xlu0 %1821
        %1823 = vrot.lane.b32.xlu0 %v1806, 125
        %v1824 = vpop.permute.xlu0 %1823
        %1825 = vrot.lane.b32.xlu0 %v1807, 125
        %v1826 = vpop.permute.xlu0 %1825
        %1827 = vrot.lane.b32.xlu0 %v1808, 125
        %v1828 = vpop.permute.xlu0 %1827
        %1829 = vrot.lane.b32.xlu0 %v1809, 125
        %v1830 = vpop.permute.xlu0 %1829
        %1831 = vrot.lane.b32.xlu0 %v1810, 125
        %v1832 = vpop.permute.xlu0 %1831
        %1833 = vrot.lane.b32.xlu0 %v1811, 125
        %v1834 = vpop.permute.xlu0 %1833
        %1835 = vrot.lane.b32.xlu0 %v1812, 125
        %v1836 = vpop.permute.xlu0 %1835
        %v1845 = vadd.f32 %v1795, %v1822
        %v1846 = vadd.f32 %v1796, %v1824
        %v1847 = vadd.f32 %v1797, %v1826
        %v1848 = vadd.f32 %v1798, %v1828
        %v1849 = vadd.f32 %v1799, %v1830
        %v1850 = vadd.f32 %v1800, %v1832
        %v1851 = vadd.f32 %v1801, %v1834
        %v1852 = vadd.f32 %v1802, %v1836
        %s1853 = sld [smem:[#allocation2 + $0x20]]
        %v1854 = vstv %s1853
        %v1855 = vmul.f32 %v1854, %v472
        %v1856 = vmul.f32 %v1854, %v473
        %v1857 = vmul.f32 %v1854, %v474
        %v1858 = vmul.f32 %v1854, %v475
        %v1859 = vmul.f32 %v1854, %v476
        %v1860 = vmul.f32 %v1854, %v477
        %v1861 = vmul.f32 %v1854, %v478
        %v1862 = vmul.f32 %v1854, %v470
        %1871 = vrot.lane.b32.xlu0 %v1855, 124
        %v1872 = vpop.permute.xlu0 %1871
        %1873 = vrot.lane.b32.xlu0 %v1856, 124
        %v1874 = vpop.permute.xlu0 %1873
        %1875 = vrot.lane.b32.xlu0 %v1857, 124
        %v1876 = vpop.permute.xlu0 %1875
        %1877 = vrot.lane.b32.xlu0 %v1858, 124
        %v1878 = vpop.permute.xlu0 %1877
        %1879 = vrot.lane.b32.xlu0 %v1859, 124
        %v1880 = vpop.permute.xlu0 %1879
        %1881 = vrot.lane.b32.xlu0 %v1860, 124
        %v1882 = vpop.permute.xlu0 %1881
        %1883 = vrot.lane.b32.xlu0 %v1861, 124
        %v1884 = vpop.permute.xlu0 %1883
        %1885 = vrot.lane.b32.xlu0 %v1862, 124
        %v1886 = vpop.permute.xlu0 %1885
        %v1895 = vadd.f32 %v1845, %v1872
        %v1896 = vadd.f32 %v1846, %v1874
        %v1897 = vadd.f32 %v1847, %v1876
        %v1898 = vadd.f32 %v1848, %v1878
        %v1899 = vadd.f32 %v1849, %v1880
        %v1900 = vadd.f32 %v1850, %v1882
        %v1901 = vadd.f32 %v1851, %v1884
        %v1902 = vadd.f32 %v1852, %v1886
        %s1903 = sld [smem:[#allocation2 + $0x21]]
        %v1904 = vstv %s1903
        %v1905 = vmul.f32 %v1904, %v472
        %v1906 = vmul.f32 %v1904, %v473
        %v1907 = vmul.f32 %v1904, %v474
        %v1908 = vmul.f32 %v1904, %v475
        %v1909 = vmul.f32 %v1904, %v476
        %v1910 = vmul.f32 %v1904, %v477
        %v1911 = vmul.f32 %v1904, %v478
        %v1912 = vmul.f32 %v1904, %v470
        %1921 = vrot.lane.b32.xlu0 %v1905, 123
        %v1922 = vpop.permute.xlu0 %1921
        %1923 = vrot.lane.b32.xlu0 %v1906, 123
        %v1924 = vpop.permute.xlu0 %1923
        %1925 = vrot.lane.b32.xlu0 %v1907, 123
        %v1926 = vpop.permute.xlu0 %1925
        %1927 = vrot.lane.b32.xlu0 %v1908, 123
        %v1928 = vpop.permute.xlu0 %1927
        %1929 = vrot.lane.b32.xlu0 %v1909, 123
        %v1930 = vpop.permute.xlu0 %1929
        %1931 = vrot.lane.b32.xlu0 %v1910, 123
        %v1932 = vpop.permute.xlu0 %1931
        %1933 = vrot.lane.b32.xlu0 %v1911, 123
        %v1934 = vpop.permute.xlu0 %1933
        %1935 = vrot.lane.b32.xlu0 %v1912, 123
        %v1936 = vpop.permute.xlu0 %1935
        %v1945 = vadd.f32 %v1895, %v1922
        %v1946 = vadd.f32 %v1896, %v1924
        %v1947 = vadd.f32 %v1897, %v1926
        %v1948 = vadd.f32 %v1898, %v1928
        %v1949 = vadd.f32 %v1899, %v1930
        %v1950 = vadd.f32 %v1900, %v1932
        %v1951 = vadd.f32 %v1901, %v1934
        %v1952 = vadd.f32 %v1902, %v1936
        %s1953 = sld [smem:[#allocation2 + $0x22]]
        %v1954 = vstv %s1953
        %v1955 = vmul.f32 %v1954, %v472
        %v1956 = vmul.f32 %v1954, %v473
        %v1957 = vmul.f32 %v1954, %v474
        %v1958 = vmul.f32 %v1954, %v475
        %v1959 = vmul.f32 %v1954, %v476
        %v1960 = vmul.f32 %v1954, %v477
        %v1961 = vmul.f32 %v1954, %v478
        %v1962 = vmul.f32 %v1954, %v470
        %1971 = vrot.lane.b32.xlu0 %v1955, 122
        %v1972 = vpop.permute.xlu0 %1971
        %1973 = vrot.lane.b32.xlu0 %v1956, 122
        %v1974 = vpop.permute.xlu0 %1973
        %1975 = vrot.lane.b32.xlu0 %v1957, 122
        %v1976 = vpop.permute.xlu0 %1975
        %1977 = vrot.lane.b32.xlu0 %v1958, 122
        %v1978 = vpop.permute.xlu0 %1977
        %1979 = vrot.lane.b32.xlu0 %v1959, 122
        %v1980 = vpop.permute.xlu0 %1979
        %1981 = vrot.lane.b32.xlu0 %v1960, 122
        %v1982 = vpop.permute.xlu0 %1981
        %1983 = vrot.lane.b32.xlu0 %v1961, 122
        %v1984 = vpop.permute.xlu0 %1983
        %1985 = vrot.lane.b32.xlu0 %v1962, 122
        %v1986 = vpop.permute.xlu0 %1985
        %v1995 = vadd.f32 %v1945, %v1972
        %v1996 = vadd.f32 %v1946, %v1974
        %v1997 = vadd.f32 %v1947, %v1976
        %v1998 = vadd.f32 %v1948, %v1978
        %v1999 = vadd.f32 %v1949, %v1980
        %v2000 = vadd.f32 %v1950, %v1982
        %v2001 = vadd.f32 %v1951, %v1984
        %v2002 = vadd.f32 %v1952, %v1986
        %s2003 = sld [smem:[#allocation2 + $0x23]]
        %v2004 = vstv %s2003
        %v2005 = vmul.f32 %v2004, %v473
        %v2006 = vmul.f32 %v2004, %v474
        %v2007 = vmul.f32 %v2004, %v475
        %v2008 = vmul.f32 %v2004, %v476
        %v2009 = vmul.f32 %v2004, %v477
        %v2010 = vmul.f32 %v2004, %v478
        %v2011 = vmul.f32 %v2004, %v470
        %v2012 = vadd.f32 %v1995, %v2005
        %v2013 = vadd.f32 %v1996, %v2006
        %v2014 = vadd.f32 %v1997, %v2007
        %v2015 = vadd.f32 %v1998, %v2008
        %v2016 = vadd.f32 %v1999, %v2009
        %v2017 = vadd.f32 %v2000, %v2010
        %v2018 = vadd.f32 %v2001, %v2011
        %v2019 = vadd.f32 %v2002, %v2011
        %s2020 = sld [smem:[#allocation2 + $0x24]]
        %v2021 = vstv %s2020
        %v2022 = vmul.f32 %v2021, %v473
        %v2023 = vmul.f32 %v2021, %v474
        %v2024 = vmul.f32 %v2021, %v475
        %v2025 = vmul.f32 %v2021, %v476
        %v2026 = vmul.f32 %v2021, %v477
        %v2027 = vmul.f32 %v2021, %v478
        %v2028 = vmul.f32 %v2021, %v470
        %2036 = vrot.lane.b32.xlu0 %v2022, 127
        %v2037 = vpop.permute.xlu0 %2036
        %2038 = vrot.lane.b32.xlu0 %v2023, 127
        %v2039 = vpop.permute.xlu0 %2038
        %2040 = vrot.lane.b32.xlu0 %v2024, 127
        %v2041 = vpop.permute.xlu0 %2040
        %2042 = vrot.lane.b32.xlu0 %v2025, 127
        %v2043 = vpop.permute.xlu0 %2042
        %2044 = vrot.lane.b32.xlu0 %v2026, 127
        %v2045 = vpop.permute.xlu0 %2044
        %2046 = vrot.lane.b32.xlu0 %v2027, 127
        %v2047 = vpop.permute.xlu0 %2046
        %2048 = vrot.lane.b32.xlu0 %v2028, 127
        %v2049 = vpop.permute.xlu0 %2048
        %v2057 = vadd.f32 %v2012, %v2037
        %v2058 = vadd.f32 %v2013, %v2039
        %v2059 = vadd.f32 %v2014, %v2041
        %v2060 = vadd.f32 %v2015, %v2043
        %v2061 = vadd.f32 %v2016, %v2045
        %v2062 = vadd.f32 %v2017, %v2047
        %v2063 = vadd.f32 %v2018, %v2049
        %v2064 = vadd.f32 %v2019, %v2049
        %s2065 = sld [smem:[#allocation2 + $0x25]]
        %v2066 = vstv %s2065
        %v2067 = vmul.f32 %v2066, %v473
        %v2068 = vmul.f32 %v2066, %v474
        %v2069 = vmul.f32 %v2066, %v475
        %v2070 = vmul.f32 %v2066, %v476
        %v2071 = vmul.f32 %v2066, %v477
        %v2072 = vmul.f32 %v2066, %v478
        %v2073 = vmul.f32 %v2066, %v470
        %2081 = vrot.lane.b32.xlu0 %v2067, 126
        %v2082 = vpop.permute.xlu0 %2081
        %2083 = vrot.lane.b32.xlu0 %v2068, 126
        %v2084 = vpop.permute.xlu0 %2083
        %2085 = vrot.lane.b32.xlu0 %v2069, 126
        %v2086 = vpop.permute.xlu0 %2085
        %2087 = vrot.lane.b32.xlu0 %v2070, 126
        %v2088 = vpop.permute.xlu0 %2087
        %2089 = vrot.lane.b32.xlu0 %v2071, 126
        %v2090 = vpop.permute.xlu0 %2089
        %2091 = vrot.lane.b32.xlu0 %v2072, 126
        %v2092 = vpop.permute.xlu0 %2091
        %2093 = vrot.lane.b32.xlu0 %v2073, 126
        %v2094 = vpop.permute.xlu0 %2093
        %v2102 = vadd.f32 %v2057, %v2082
        %v2103 = vadd.f32 %v2058, %v2084
        %v2104 = vadd.f32 %v2059, %v2086
        %v2105 = vadd.f32 %v2060, %v2088
        %v2106 = vadd.f32 %v2061, %v2090
        %v2107 = vadd.f32 %v2062, %v2092
        %v2108 = vadd.f32 %v2063, %v2094
        %v2109 = vadd.f32 %v2064, %v2094
        %s2110 = sld [smem:[#allocation2 + $0x26]]
        %v2111 = vstv %s2110
        %v2112 = vmul.f32 %v2111, %v473
        %v2113 = vmul.f32 %v2111, %v474
        %v2114 = vmul.f32 %v2111, %v475
        %v2115 = vmul.f32 %v2111, %v476
        %v2116 = vmul.f32 %v2111, %v477
        %v2117 = vmul.f32 %v2111, %v478
        %v2118 = vmul.f32 %v2111, %v470
        %2126 = vrot.lane.b32.xlu0 %v2112, 125
        %v2127 = vpop.permute.xlu0 %2126
        %2128 = vrot.lane.b32.xlu0 %v2113, 125
        %v2129 = vpop.permute.xlu0 %2128
        %2130 = vrot.lane.b32.xlu0 %v2114, 125
        %v2131 = vpop.permute.xlu0 %2130
        %2132 = vrot.lane.b32.xlu0 %v2115, 125
        %v2133 = vpop.permute.xlu0 %2132
        %2134 = vrot.lane.b32.xlu0 %v2116, 125
        %v2135 = vpop.permute.xlu0 %2134
        %2136 = vrot.lane.b32.xlu0 %v2117, 125
        %v2137 = vpop.permute.xlu0 %2136
        %2138 = vrot.lane.b32.xlu0 %v2118, 125
        %v2139 = vpop.permute.xlu0 %2138
        %v2147 = vadd.f32 %v2102, %v2127
        %v2148 = vadd.f32 %v2103, %v2129
        %v2149 = vadd.f32 %v2104, %v2131
        %v2150 = vadd.f32 %v2105, %v2133
        %v2151 = vadd.f32 %v2106, %v2135
        %v2152 = vadd.f32 %v2107, %v2137
        %v2153 = vadd.f32 %v2108, %v2139
        %v2154 = vadd.f32 %v2109, %v2139
        %s2155 = sld [smem:[#allocation2 + $0x27]]
        %v2156 = vstv %s2155
        %v2157 = vmul.f32 %v2156, %v473
        %v2158 = vmul.f32 %v2156, %v474
        %v2159 = vmul.f32 %v2156, %v475
        %v2160 = vmul.f32 %v2156, %v476
        %v2161 = vmul.f32 %v2156, %v477
        %v2162 = vmul.f32 %v2156, %v478
        %v2163 = vmul.f32 %v2156, %v470
        %2171 = vrot.lane.b32.xlu0 %v2157, 124
        %v2172 = vpop.permute.xlu0 %2171
        %2173 = vrot.lane.b32.xlu0 %v2158, 124
        %v2174 = vpop.permute.xlu0 %2173
        %2175 = vrot.lane.b32.xlu0 %v2159, 124
        %v2176 = vpop.permute.xlu0 %2175
        %2177 = vrot.lane.b32.xlu0 %v2160, 124
        %v2178 = vpop.permute.xlu0 %2177
        %2179 = vrot.lane.b32.xlu0 %v2161, 124
        %v2180 = vpop.permute.xlu0 %2179
        %2181 = vrot.lane.b32.xlu0 %v2162, 124
        %v2182 = vpop.permute.xlu0 %2181
        %2183 = vrot.lane.b32.xlu0 %v2163, 124
        %v2184 = vpop.permute.xlu0 %2183
        %v2192 = vadd.f32 %v2147, %v2172
        %v2193 = vadd.f32 %v2148, %v2174
        %v2194 = vadd.f32 %v2149, %v2176
        %v2195 = vadd.f32 %v2150, %v2178
        %v2196 = vadd.f32 %v2151, %v2180
        %v2197 = vadd.f32 %v2152, %v2182
        %v2198 = vadd.f32 %v2153, %v2184
        %v2199 = vadd.f32 %v2154, %v2184
        %s2200 = sld [smem:[#allocation2 + $0x28]]
        %v2201 = vstv %s2200
        %v2202 = vmul.f32 %v2201, %v473
        %v2203 = vmul.f32 %v2201, %v474
        %v2204 = vmul.f32 %v2201, %v475
        %v2205 = vmul.f32 %v2201, %v476
        %v2206 = vmul.f32 %v2201, %v477
        %v2207 = vmul.f32 %v2201, %v478
        %v2208 = vmul.f32 %v2201, %v470
        %2216 = vrot.lane.b32.xlu0 %v2202, 123
        %v2217 = vpop.permute.xlu0 %2216
        %2218 = vrot.lane.b32.xlu0 %v2203, 123
        %v2219 = vpop.permute.xlu0 %2218
        %2220 = vrot.lane.b32.xlu0 %v2204, 123
        %v2221 = vpop.permute.xlu0 %2220
        %2222 = vrot.lane.b32.xlu0 %v2205, 123
        %v2223 = vpop.permute.xlu0 %2222
        %2224 = vrot.lane.b32.xlu0 %v2206, 123
        %v2225 = vpop.permute.xlu0 %2224
        %2226 = vrot.lane.b32.xlu0 %v2207, 123
        %v2227 = vpop.permute.xlu0 %2226
        %2228 = vrot.lane.b32.xlu0 %v2208, 123
        %v2229 = vpop.permute.xlu0 %2228
        %v2237 = vadd.f32 %v2192, %v2217
        %v2238 = vadd.f32 %v2193, %v2219
        %v2239 = vadd.f32 %v2194, %v2221
        %v2240 = vadd.f32 %v2195, %v2223
        %v2241 = vadd.f32 %v2196, %v2225
        %v2242 = vadd.f32 %v2197, %v2227
        %v2243 = vadd.f32 %v2198, %v2229
        %v2244 = vadd.f32 %v2199, %v2229
        %s2245 = sld [smem:[#allocation2 + $0x29]]
        %v2246 = vstv %s2245
        %v2247 = vmul.f32 %v2246, %v473
        %v2248 = vmul.f32 %v2246, %v474
        %v2249 = vmul.f32 %v2246, %v475
        %v2250 = vmul.f32 %v2246, %v476
        %v2251 = vmul.f32 %v2246, %v477
        %v2252 = vmul.f32 %v2246, %v478
        %v2253 = vmul.f32 %v2246, %v470
        %2261 = vrot.lane.b32.xlu0 %v2247, 122
        %v2262 = vpop.permute.xlu0 %2261
        %2263 = vrot.lane.b32.xlu0 %v2248, 122
        %v2264 = vpop.permute.xlu0 %2263
        %2265 = vrot.lane.b32.xlu0 %v2249, 122
        %v2266 = vpop.permute.xlu0 %2265
        %2267 = vrot.lane.b32.xlu0 %v2250, 122
        %v2268 = vpop.permute.xlu0 %2267
        %2269 = vrot.lane.b32.xlu0 %v2251, 122
        %v2270 = vpop.permute.xlu0 %2269
        %2271 = vrot.lane.b32.xlu0 %v2252, 122
        %v2272 = vpop.permute.xlu0 %2271
        %2273 = vrot.lane.b32.xlu0 %v2253, 122
        %v2274 = vpop.permute.xlu0 %2273
        %v2282 = vadd.f32 %v2237, %v2262
        %v2283 = vadd.f32 %v2238, %v2264
        %v2284 = vadd.f32 %v2239, %v2266
        %v2285 = vadd.f32 %v2240, %v2268
        %v2286 = vadd.f32 %v2241, %v2270
        %v2287 = vadd.f32 %v2242, %v2272
        %v2288 = vadd.f32 %v2243, %v2274
        %v2289 = vadd.f32 %v2244, %v2274
        %s2290 = sld [smem:[#allocation2 + $0x2a]]
        %v2291 = vstv %s2290
        %v2292 = vmul.f32 %v2291, %v474
        %v2293 = vmul.f32 %v2291, %v475
        %v2294 = vmul.f32 %v2291, %v476
        %v2295 = vmul.f32 %v2291, %v477
        %v2296 = vmul.f32 %v2291, %v478
        %v2297 = vmul.f32 %v2291, %v470
        %v2298 = vadd.f32 %v2282, %v2292
        %v2299 = vadd.f32 %v2283, %v2293
        %v2300 = vadd.f32 %v2284, %v2294
        %v2301 = vadd.f32 %v2285, %v2295
        %v2302 = vadd.f32 %v2286, %v2296
        %v2303 = vadd.f32 %v2287, %v2297
        %v2304 = vadd.f32 %v2288, %v2297
        %v2305 = vadd.f32 %v2289, %v2297
        %s2306 = sld [smem:[#allocation2 + $0x2b]]
        %v2307 = vstv %s2306
        %v2308 = vmul.f32 %v2307, %v474
        %v2309 = vmul.f32 %v2307, %v475
        %v2310 = vmul.f32 %v2307, %v476
        %v2311 = vmul.f32 %v2307, %v477
        %v2312 = vmul.f32 %v2307, %v478
        %v2313 = vmul.f32 %v2307, %v470
        %2320 = vrot.lane.b32.xlu0 %v2308, 127
        %v2321 = vpop.permute.xlu0 %2320
        %2322 = vrot.lane.b32.xlu0 %v2309, 127
        %v2323 = vpop.permute.xlu0 %2322
        %2324 = vrot.lane.b32.xlu0 %v2310, 127
        %v2325 = vpop.permute.xlu0 %2324
        %2326 = vrot.lane.b32.xlu0 %v2311, 127
        %v2327 = vpop.permute.xlu0 %2326
        %2328 = vrot.lane.b32.xlu0 %v2312, 127
        %v2329 = vpop.permute.xlu0 %2328
        %2330 = vrot.lane.b32.xlu0 %v2313, 127
        %v2331 = vpop.permute.xlu0 %2330
        %v2338 = vadd.f32 %v2298, %v2321
        %v2339 = vadd.f32 %v2299, %v2323
        %v2340 = vadd.f32 %v2300, %v2325
        %v2341 = vadd.f32 %v2301, %v2327
        %v2342 = vadd.f32 %v2302, %v2329
        %v2343 = vadd.f32 %v2303, %v2331
        %v2344 = vadd.f32 %v2304, %v2331
        %v2345 = vadd.f32 %v2305, %v2331
        %s2346 = sld [smem:[#allocation2 + $0x2c]]
        %v2347 = vstv %s2346
        %v2348 = vmul.f32 %v2347, %v474
        %v2349 = vmul.f32 %v2347, %v475
        %v2350 = vmul.f32 %v2347, %v476
        %v2351 = vmul.f32 %v2347, %v477
        %v2352 = vmul.f32 %v2347, %v478
        %v2353 = vmul.f32 %v2347, %v470
        %2360 = vrot.lane.b32.xlu0 %v2348, 126
        %v2361 = vpop.permute.xlu0 %2360
        %2362 = vrot.lane.b32.xlu0 %v2349, 126
        %v2363 = vpop.permute.xlu0 %2362
        %2364 = vrot.lane.b32.xlu0 %v2350, 126
        %v2365 = vpop.permute.xlu0 %2364
        %2366 = vrot.lane.b32.xlu0 %v2351, 126
        %v2367 = vpop.permute.xlu0 %2366
        %2368 = vrot.lane.b32.xlu0 %v2352, 126
        %v2369 = vpop.permute.xlu0 %2368
        %2370 = vrot.lane.b32.xlu0 %v2353, 126
        %v2371 = vpop.permute.xlu0 %2370
        %v2378 = vadd.f32 %v2338, %v2361
        %v2379 = vadd.f32 %v2339, %v2363
        %v2380 = vadd.f32 %v2340, %v2365
        %v2381 = vadd.f32 %v2341, %v2367
        %v2382 = vadd.f32 %v2342, %v2369
        %v2383 = vadd.f32 %v2343, %v2371
        %v2384 = vadd.f32 %v2344, %v2371
        %v2385 = vadd.f32 %v2345, %v2371
        %s2386 = sld [smem:[#allocation2 + $0x2d]]
        %v2387 = vstv %s2386
        %v2388 = vmul.f32 %v2387, %v474
        %v2389 = vmul.f32 %v2387, %v475
        %v2390 = vmul.f32 %v2387, %v476
        %v2391 = vmul.f32 %v2387, %v477
        %v2392 = vmul.f32 %v2387, %v478
        %v2393 = vmul.f32 %v2387, %v470
        %2400 = vrot.lane.b32.xlu0 %v2388, 125
        %v2401 = vpop.permute.xlu0 %2400
        %2402 = vrot.lane.b32.xlu0 %v2389, 125
        %v2403 = vpop.permute.xlu0 %2402
        %2404 = vrot.lane.b32.xlu0 %v2390, 125
        %v2405 = vpop.permute.xlu0 %2404
        %2406 = vrot.lane.b32.xlu0 %v2391, 125
        %v2407 = vpop.permute.xlu0 %2406
        %2408 = vrot.lane.b32.xlu0 %v2392, 125
        %v2409 = vpop.permute.xlu0 %2408
        %2410 = vrot.lane.b32.xlu0 %v2393, 125
        %v2411 = vpop.permute.xlu0 %2410
        %v2418 = vadd.f32 %v2378, %v2401
        %v2419 = vadd.f32 %v2379, %v2403
        %v2420 = vadd.f32 %v2380, %v2405
        %v2421 = vadd.f32 %v2381, %v2407
        %v2422 = vadd.f32 %v2382, %v2409
        %v2423 = vadd.f32 %v2383, %v2411
        %v2424 = vadd.f32 %v2384, %v2411
        %v2425 = vadd.f32 %v2385, %v2411
        %s2426 = sld [smem:[#allocation2 + $0x2e]]
        %v2427 = vstv %s2426
        %v2428 = vmul.f32 %v2427, %v474
        %v2429 = vmul.f32 %v2427, %v475
        %v2430 = vmul.f32 %v2427, %v476
        %v2431 = vmul.f32 %v2427, %v477
        %v2432 = vmul.f32 %v2427, %v478
        %v2433 = vmul.f32 %v2427, %v470
        %2440 = vrot.lane.b32.xlu0 %v2428, 124
        %v2441 = vpop.permute.xlu0 %2440
        %2442 = vrot.lane.b32.xlu0 %v2429, 124
        %v2443 = vpop.permute.xlu0 %2442
        %2444 = vrot.lane.b32.xlu0 %v2430, 124
        %v2445 = vpop.permute.xlu0 %2444
        %2446 = vrot.lane.b32.xlu0 %v2431, 124
        %v2447 = vpop.permute.xlu0 %2446
        %2448 = vrot.lane.b32.xlu0 %v2432, 124
        %v2449 = vpop.permute.xlu0 %2448
        %2450 = vrot.lane.b32.xlu0 %v2433, 124
        %v2451 = vpop.permute.xlu0 %2450
        %v2458 = vadd.f32 %v2418, %v2441
        %v2459 = vadd.f32 %v2419, %v2443
        %v2460 = vadd.f32 %v2420, %v2445
        %v2461 = vadd.f32 %v2421, %v2447
        %v2462 = vadd.f32 %v2422, %v2449
        %v2463 = vadd.f32 %v2423, %v2451
        %v2464 = vadd.f32 %v2424, %v2451
        %v2465 = vadd.f32 %v2425, %v2451
        %s2466 = sld [smem:[#allocation2 + $0x2f]]
        %v2467 = vstv %s2466
        %v2468 = vmul.f32 %v2467, %v474
        %v2469 = vmul.f32 %v2467, %v475
        %v2470 = vmul.f32 %v2467, %v476
        %v2471 = vmul.f32 %v2467, %v477
        %v2472 = vmul.f32 %v2467, %v478
        %v2473 = vmul.f32 %v2467, %v470
        %2480 = vrot.lane.b32.xlu0 %v2468, 123
        %v2481 = vpop.permute.xlu0 %2480
        %2482 = vrot.lane.b32.xlu0 %v2469, 123
        %v2483 = vpop.permute.xlu0 %2482
        %2484 = vrot.lane.b32.xlu0 %v2470, 123
        %v2485 = vpop.permute.xlu0 %2484
        %2486 = vrot.lane.b32.xlu0 %v2471, 123
        %v2487 = vpop.permute.xlu0 %2486
        %2488 = vrot.lane.b32.xlu0 %v2472, 123
        %v2489 = vpop.permute.xlu0 %2488
        %2490 = vrot.lane.b32.xlu0 %v2473, 123
        %v2491 = vpop.permute.xlu0 %2490
        %v2498 = vadd.f32 %v2458, %v2481
        %v2499 = vadd.f32 %v2459, %v2483
        %v2500 = vadd.f32 %v2460, %v2485
        %v2501 = vadd.f32 %v2461, %v2487
        %v2502 = vadd.f32 %v2462, %v2489
        %v2503 = vadd.f32 %v2463, %v2491
        %v2504 = vadd.f32 %v2464, %v2491
        %v2505 = vadd.f32 %v2465, %v2491
        %s2506 = sld [smem:[#allocation2 + $0x30]]
        %v2507 = vstv %s2506
        %v2508 = vmul.f32 %v2507, %v474
        %v2509 = vmul.f32 %v2507, %v475
        %v2510 = vmul.f32 %v2507, %v476
        %v2511 = vmul.f32 %v2507, %v477
        %v2512 = vmul.f32 %v2507, %v478
        %v2513 = vmul.f32 %v2507, %v470
        %2520 = vrot.lane.b32.xlu0 %v2508, 122
        %v2521 = vpop.permute.xlu0 %2520
        %2522 = vrot.lane.b32.xlu0 %v2509, 122
        %v2523 = vpop.permute.xlu0 %2522
        %2524 = vrot.lane.b32.xlu0 %v2510, 122
        %v2525 = vpop.permute.xlu0 %2524
        %2526 = vrot.lane.b32.xlu0 %v2511, 122
        %v2527 = vpop.permute.xlu0 %2526
        %2528 = vrot.lane.b32.xlu0 %v2512, 122
        %v2529 = vpop.permute.xlu0 %2528
        %2530 = vrot.lane.b32.xlu0 %v2513, 122
        %v2531 = vpop.permute.xlu0 %2530
        %v2538 = vadd.f32 %v2498, %v2521
        %v2539 = vadd.f32 %v2499, %v2523
        %v2540 = vadd.f32 %v2500, %v2525
        %v2541 = vadd.f32 %v2501, %v2527
        %v2542 = vadd.f32 %v2502, %v2529
        %v2543 = vadd.f32 %v2503, %v2531
        %v2544 = vadd.f32 %v2504, %v2531
        %v2545 = vadd.f32 %v2505, %v2531
        %s2546 = sld [smem:[#allocation2 + $0x31]]
        %v2547 = vstv %s2546
        %v2548 = vmul.f32 %v2547, %v470
        %v2549 = vmul.f32 %v2547, %v519
        %v2550 = vmul.f32 %v2547, %v520
        %v2551 = vmul.f32 %v2547, %v521
        %v2552 = vmul.f32 %v2547, %v522
        %v2553 = vmul.f32 %v2547, %v523
        %v2554 = vadd.f32 %v2538, %v2548
        %v2555 = vadd.f32 %v2539, %v2548
        %v2556 = vadd.f32 %v2540, %v2548
        %v2557 = vadd.f32 %v2541, %v2549
        %v2558 = vadd.f32 %v2542, %v2550
        %v2559 = vadd.f32 %v2543, %v2551
        %v2560 = vadd.f32 %v2544, %v2552
        %v2561 = vadd.f32 %v2545, %v2553
        %s2562 = sld [smem:[#allocation2 + $0x32]]
        %v2563 = vstv %s2562
        %v2564 = vmul.f32 %v2563, %v470
        %v2565 = vmul.f32 %v2563, %v519
        %v2566 = vmul.f32 %v2563, %v520
        %v2567 = vmul.f32 %v2563, %v521
        %v2568 = vmul.f32 %v2563, %v522
        %v2569 = vmul.f32 %v2563, %v523
        %2576 = vrot.lane.b32.xlu0 %v2564, 127
        %v2577 = vpop.permute.xlu0 %2576
        %2578 = vrot.lane.b32.xlu0 %v2565, 127
        %v2579 = vpop.permute.xlu0 %2578
        %2580 = vrot.lane.b32.xlu0 %v2566, 127
        %v2581 = vpop.permute.xlu0 %2580
        %2582 = vrot.lane.b32.xlu0 %v2567, 127
        %v2583 = vpop.permute.xlu0 %2582
        %2584 = vrot.lane.b32.xlu0 %v2568, 127
        %v2585 = vpop.permute.xlu0 %2584
        %2586 = vrot.lane.b32.xlu0 %v2569, 127
        %v2587 = vpop.permute.xlu0 %2586
        %v2594 = vadd.f32 %v2554, %v2577
        %v2595 = vadd.f32 %v2555, %v2577
        %v2596 = vadd.f32 %v2556, %v2577
        %v2597 = vadd.f32 %v2557, %v2579
        %v2598 = vadd.f32 %v2558, %v2581
        %v2599 = vadd.f32 %v2559, %v2583
        %v2600 = vadd.f32 %v2560, %v2585
        %v2601 = vadd.f32 %v2561, %v2587
        %s2602 = sld [smem:[#allocation2 + $0x33]]
        %v2603 = vstv %s2602
        %v2604 = vmul.f32 %v2603, %v470
        %v2605 = vmul.f32 %v2603, %v519
        %v2606 = vmul.f32 %v2603, %v520
        %v2607 = vmul.f32 %v2603, %v521
        %v2608 = vmul.f32 %v2603, %v522
        %v2609 = vmul.f32 %v2603, %v523
        %2616 = vrot.lane.b32.xlu0 %v2604, 126
        %v2617 = vpop.permute.xlu0 %2616
        %2618 = vrot.lane.b32.xlu0 %v2605, 126
        %v2619 = vpop.permute.xlu0 %2618
        %2620 = vrot.lane.b32.xlu0 %v2606, 126
        %v2621 = vpop.permute.xlu0 %2620
        %2622 = vrot.lane.b32.xlu0 %v2607, 126
        %v2623 = vpop.permute.xlu0 %2622
        %2624 = vrot.lane.b32.xlu0 %v2608, 126
        %v2625 = vpop.permute.xlu0 %2624
        %2626 = vrot.lane.b32.xlu0 %v2609, 126
        %v2627 = vpop.permute.xlu0 %2626
        %v2634 = vadd.f32 %v2594, %v2617
        %v2635 = vadd.f32 %v2595, %v2617
        %v2636 = vadd.f32 %v2596, %v2617
        %v2637 = vadd.f32 %v2597, %v2619
        %v2638 = vadd.f32 %v2598, %v2621
        %v2639 = vadd.f32 %v2599, %v2623
        %v2640 = vadd.f32 %v2600, %v2625
        %v2641 = vadd.f32 %v2601, %v2627
        %s2642 = sld [smem:[#allocation2 + $0x34]]
        %v2643 = vstv %s2642
        %v2644 = vmul.f32 %v2643, %v470
        %v2645 = vmul.f32 %v2643, %v519
        %v2646 = vmul.f32 %v2643, %v520
        %v2647 = vmul.f32 %v2643, %v521
        %v2648 = vmul.f32 %v2643, %v522
        %v2649 = vmul.f32 %v2643, %v523
        %2656 = vrot.lane.b32.xlu0 %v2644, 125
        %v2657 = vpop.permute.xlu0 %2656
        %2658 = vrot.lane.b32.xlu0 %v2645, 125
        %v2659 = vpop.permute.xlu0 %2658
        %2660 = vrot.lane.b32.xlu0 %v2646, 125
        %v2661 = vpop.permute.xlu0 %2660
        %2662 = vrot.lane.b32.xlu0 %v2647, 125
        %v2663 = vpop.permute.xlu0 %2662
        %2664 = vrot.lane.b32.xlu0 %v2648, 125
        %v2665 = vpop.permute.xlu0 %2664
        %2666 = vrot.lane.b32.xlu0 %v2649, 125
        %v2667 = vpop.permute.xlu0 %2666
        %v2674 = vadd.f32 %v2634, %v2657
        %v2675 = vadd.f32 %v2635, %v2657
        %v2676 = vadd.f32 %v2636, %v2657
        %v2677 = vadd.f32 %v2637, %v2659
        %v2678 = vadd.f32 %v2638, %v2661
        %v2679 = vadd.f32 %v2639, %v2663
        %v2680 = vadd.f32 %v2640, %v2665
        %v2681 = vadd.f32 %v2641, %v2667
        %s2682 = sld [smem:[#allocation2 + $0x35]]
        %v2683 = vstv %s2682
        %v2684 = vmul.f32 %v2683, %v470
        %v2685 = vmul.f32 %v2683, %v519
        %v2686 = vmul.f32 %v2683, %v520
        %v2687 = vmul.f32 %v2683, %v521
        %v2688 = vmul.f32 %v2683, %v522
        %v2689 = vmul.f32 %v2683, %v523
        %2696 = vrot.lane.b32.xlu0 %v2684, 124
        %v2697 = vpop.permute.xlu0 %2696
        %2698 = vrot.lane.b32.xlu0 %v2685, 124
        %v2699 = vpop.permute.xlu0 %2698
        %2700 = vrot.lane.b32.xlu0 %v2686, 124
        %v2701 = vpop.permute.xlu0 %2700
        %2702 = vrot.lane.b32.xlu0 %v2687, 124
        %v2703 = vpop.permute.xlu0 %2702
        %2704 = vrot.lane.b32.xlu0 %v2688, 124
        %v2705 = vpop.permute.xlu0 %2704
        %2706 = vrot.lane.b32.xlu0 %v2689, 124
        %v2707 = vpop.permute.xlu0 %2706
        %v2714 = vadd.f32 %v2674, %v2697
        %v2715 = vadd.f32 %v2675, %v2697
        %v2716 = vadd.f32 %v2676, %v2697
        %v2717 = vadd.f32 %v2677, %v2699
        %v2718 = vadd.f32 %v2678, %v2701
        %v2719 = vadd.f32 %v2679, %v2703
        %v2720 = vadd.f32 %v2680, %v2705
        %v2721 = vadd.f32 %v2681, %v2707
        %s2722 = sld [smem:[#allocation2 + $0x36]]
        %v2723 = vstv %s2722
        %v2724 = vmul.f32 %v2723, %v470
        %v2725 = vmul.f32 %v2723, %v519
        %v2726 = vmul.f32 %v2723, %v520
        %v2727 = vmul.f32 %v2723, %v521
        %v2728 = vmul.f32 %v2723, %v522
        %v2729 = vmul.f32 %v2723, %v523
        %2736 = vrot.lane.b32.xlu0 %v2724, 123
        %v2737 = vpop.permute.xlu0 %2736
        %2738 = vrot.lane.b32.xlu0 %v2725, 123
        %v2739 = vpop.permute.xlu0 %2738
        %2740 = vrot.lane.b32.xlu0 %v2726, 123
        %v2741 = vpop.permute.xlu0 %2740
        %2742 = vrot.lane.b32.xlu0 %v2727, 123
        %v2743 = vpop.permute.xlu0 %2742
        %2744 = vrot.lane.b32.xlu0 %v2728, 123
        %v2745 = vpop.permute.xlu0 %2744
        %2746 = vrot.lane.b32.xlu0 %v2729, 123
        %v2747 = vpop.permute.xlu0 %2746
        %v2754 = vadd.f32 %v2714, %v2737
        %v2755 = vadd.f32 %v2715, %v2737
        %v2756 = vadd.f32 %v2716, %v2737
        %v2757 = vadd.f32 %v2717, %v2739
        %v2758 = vadd.f32 %v2718, %v2741
        %v2759 = vadd.f32 %v2719, %v2743
        %v2760 = vadd.f32 %v2720, %v2745
        %v2761 = vadd.f32 %v2721, %v2747
        %s2762 = sld [smem:[#allocation2 + $0x37]]
        %v2763 = vstv %s2762
        %v2764 = vmul.f32 %v2763, %v470
        %v2765 = vmul.f32 %v2763, %v519
        %v2766 = vmul.f32 %v2763, %v520
        %v2767 = vmul.f32 %v2763, %v521
        %v2768 = vmul.f32 %v2763, %v522
        %v2769 = vmul.f32 %v2763, %v523
        %2776 = vrot.lane.b32.xlu0 %v2764, 122
        %v2777 = vpop.permute.xlu0 %2776
        %2778 = vrot.lane.b32.xlu0 %v2765, 122
        %v2779 = vpop.permute.xlu0 %2778
        %2780 = vrot.lane.b32.xlu0 %v2766, 122
        %v2781 = vpop.permute.xlu0 %2780
        %2782 = vrot.lane.b32.xlu0 %v2767, 122
        %v2783 = vpop.permute.xlu0 %2782
        %2784 = vrot.lane.b32.xlu0 %v2768, 122
        %v2785 = vpop.permute.xlu0 %2784
        %2786 = vrot.lane.b32.xlu0 %v2769, 122
        %v2787 = vpop.permute.xlu0 %2786
        %v2794 = vadd.f32 %v2754, %v2777
        %v2795 = vadd.f32 %v2755, %v2777
        %v2796 = vadd.f32 %v2756, %v2777
        %v2797 = vadd.f32 %v2757, %v2779
        %v2798 = vadd.f32 %v2758, %v2781
        %v2799 = vadd.f32 %v2759, %v2783
        %v2800 = vadd.f32 %v2760, %v2785
        %v2801 = vadd.f32 %v2761, %v2787
        %s2802 = sld [smem:[#allocation2 + $0x38]]
        %v2803 = vstv %s2802
        %v2804 = vmul.f32 %v2803, %v470
        %v2805 = vmul.f32 %v2803, %v519
        %v2806 = vmul.f32 %v2803, %v520
        %v2807 = vmul.f32 %v2803, %v521
        %v2808 = vmul.f32 %v2803, %v522
        %v2809 = vmul.f32 %v2803, %v523
        %v2810 = vmul.f32 %v2803, %v524
        %v2811 = vadd.f32 %v2794, %v2804
        %v2812 = vadd.f32 %v2795, %v2804
        %v2813 = vadd.f32 %v2796, %v2805
        %v2814 = vadd.f32 %v2797, %v2806
        %v2815 = vadd.f32 %v2798, %v2807
        %v2816 = vadd.f32 %v2799, %v2808
        %v2817 = vadd.f32 %v2800, %v2809
        %v2818 = vadd.f32 %v2801, %v2810
        %s2819 = sld [smem:[#allocation2 + $0x39]]
        %v2820 = vstv %s2819
        %v2821 = vmul.f32 %v2820, %v470
        %v2822 = vmul.f32 %v2820, %v519
        %v2823 = vmul.f32 %v2820, %v520
        %v2824 = vmul.f32 %v2820, %v521
        %v2825 = vmul.f32 %v2820, %v522
        %v2826 = vmul.f32 %v2820, %v523
        %v2827 = vmul.f32 %v2820, %v524
        %2835 = vrot.lane.b32.xlu0 %v2821, 127
        %v2836 = vpop.permute.xlu0 %2835
        %2837 = vrot.lane.b32.xlu0 %v2822, 127
        %v2838 = vpop.permute.xlu0 %2837
        %2839 = vrot.lane.b32.xlu0 %v2823, 127
        %v2840 = vpop.permute.xlu0 %2839
        %2841 = vrot.lane.b32.xlu0 %v2824, 127
        %v2842 = vpop.permute.xlu0 %2841
        %2843 = vrot.lane.b32.xlu0 %v2825, 127
        %v2844 = vpop.permute.xlu0 %2843
        %2845 = vrot.lane.b32.xlu0 %v2826, 127
        %v2846 = vpop.permute.xlu0 %2845
        %2847 = vrot.lane.b32.xlu0 %v2827, 127
        %v2848 = vpop.permute.xlu0 %2847
        %v2856 = vadd.f32 %v2811, %v2836
        %v2857 = vadd.f32 %v2812, %v2836
        %v2858 = vadd.f32 %v2813, %v2838
        %v2859 = vadd.f32 %v2814, %v2840
        %v2860 = vadd.f32 %v2815, %v2842
        %v2861 = vadd.f32 %v2816, %v2844
        %v2862 = vadd.f32 %v2817, %v2846
        %v2863 = vadd.f32 %v2818, %v2848
        %s2864 = sld [smem:[#allocation2 + $0x3a]]
        %v2865 = vstv %s2864
        %v2866 = vmul.f32 %v2865, %v470
        %v2867 = vmul.f32 %v2865, %v519
        %v2868 = vmul.f32 %v2865, %v520
        %v2869 = vmul.f32 %v2865, %v521
        %v2870 = vmul.f32 %v2865, %v522
        %v2871 = vmul.f32 %v2865, %v523
        %v2872 = vmul.f32 %v2865, %v524
        %2880 = vrot.lane.b32.xlu0 %v2866, 126
        %v2881 = vpop.permute.xlu0 %2880
        %2882 = vrot.lane.b32.xlu0 %v2867, 126
        %v2883 = vpop.permute.xlu0 %2882
        %2884 = vrot.lane.b32.xlu0 %v2868, 126
        %v2885 = vpop.permute.xlu0 %2884
        %2886 = vrot.lane.b32.xlu0 %v2869, 126
        %v2887 = vpop.permute.xlu0 %2886
        %2888 = vrot.lane.b32.xlu0 %v2870, 126
        %v2889 = vpop.permute.xlu0 %2888
        %2890 = vrot.lane.b32.xlu0 %v2871, 126
        %v2891 = vpop.permute.xlu0 %2890
        %2892 = vrot.lane.b32.xlu0 %v2872, 126
        %v2893 = vpop.permute.xlu0 %2892
        %v2901 = vadd.f32 %v2856, %v2881
        %v2902 = vadd.f32 %v2857, %v2881
        %v2903 = vadd.f32 %v2858, %v2883
        %v2904 = vadd.f32 %v2859, %v2885
        %v2905 = vadd.f32 %v2860, %v2887
        %v2906 = vadd.f32 %v2861, %v2889
        %v2907 = vadd.f32 %v2862, %v2891
        %v2908 = vadd.f32 %v2863, %v2893
        %s2909 = sld [smem:[#allocation2 + $0x3b]]
        %v2910 = vstv %s2909
        %v2911 = vmul.f32 %v2910, %v470
        %v2912 = vmul.f32 %v2910, %v519
        %v2913 = vmul.f32 %v2910, %v520
        %v2914 = vmul.f32 %v2910, %v521
        %v2915 = vmul.f32 %v2910, %v522
        %v2916 = vmul.f32 %v2910, %v523
        %v2917 = vmul.f32 %v2910, %v524
        %2925 = vrot.lane.b32.xlu0 %v2911, 125
        %v2926 = vpop.permute.xlu0 %2925
        %2927 = vrot.lane.b32.xlu0 %v2912, 125
        %v2928 = vpop.permute.xlu0 %2927
        %2929 = vrot.lane.b32.xlu0 %v2913, 125
        %v2930 = vpop.permute.xlu0 %2929
        %2931 = vrot.lane.b32.xlu0 %v2914, 125
        %v2932 = vpop.permute.xlu0 %2931
        %2933 = vrot.lane.b32.xlu0 %v2915, 125
        %v2934 = vpop.permute.xlu0 %2933
        %2935 = vrot.lane.b32.xlu0 %v2916, 125
        %v2936 = vpop.permute.xlu0 %2935
        %2937 = vrot.lane.b32.xlu0 %v2917, 125
        %v2938 = vpop.permute.xlu0 %2937
        %v2946 = vadd.f32 %v2901, %v2926
        %v2947 = vadd.f32 %v2902, %v2926
        %v2948 = vadd.f32 %v2903, %v2928
        %v2949 = vadd.f32 %v2904, %v2930
        %v2950 = vadd.f32 %v2905, %v2932
        %v2951 = vadd.f32 %v2906, %v2934
        %v2952 = vadd.f32 %v2907, %v2936
        %v2953 = vadd.f32 %v2908, %v2938
        %s2954 = sld [smem:[#allocation2 + $0x3c]]
        %v2955 = vstv %s2954
        %v2956 = vmul.f32 %v2955, %v470
        %v2957 = vmul.f32 %v2955, %v519
        %v2958 = vmul.f32 %v2955, %v520
        %v2959 = vmul.f32 %v2955, %v521
        %v2960 = vmul.f32 %v2955, %v522
        %v2961 = vmul.f32 %v2955, %v523
        %v2962 = vmul.f32 %v2955, %v524
        %2970 = vrot.lane.b32.xlu0 %v2956, 124
        %v2971 = vpop.permute.xlu0 %2970
        %2972 = vrot.lane.b32.xlu0 %v2957, 124
        %v2973 = vpop.permute.xlu0 %2972
        %2974 = vrot.lane.b32.xlu0 %v2958, 124
        %v2975 = vpop.permute.xlu0 %2974
        %2976 = vrot.lane.b32.xlu0 %v2959, 124
        %v2977 = vpop.permute.xlu0 %2976
        %2978 = vrot.lane.b32.xlu0 %v2960, 124
        %v2979 = vpop.permute.xlu0 %2978
        %2980 = vrot.lane.b32.xlu0 %v2961, 124
        %v2981 = vpop.permute.xlu0 %2980
        %2982 = vrot.lane.b32.xlu0 %v2962, 124
        %v2983 = vpop.permute.xlu0 %2982
        %v2991 = vadd.f32 %v2946, %v2971
        %v2992 = vadd.f32 %v2947, %v2971
        %v2993 = vadd.f32 %v2948, %v2973
        %v2994 = vadd.f32 %v2949, %v2975
        %v2995 = vadd.f32 %v2950, %v2977
        %v2996 = vadd.f32 %v2951, %v2979
        %v2997 = vadd.f32 %v2952, %v2981
        %v2998 = vadd.f32 %v2953, %v2983
        %s2999 = sld [smem:[#allocation2 + $0x3d]]
        %v3000 = vstv %s2999
        %v3001 = vmul.f32 %v3000, %v470
        %v3002 = vmul.f32 %v3000, %v519
        %v3003 = vmul.f32 %v3000, %v520
        %v3004 = vmul.f32 %v3000, %v521
        %v3005 = vmul.f32 %v3000, %v522
        %v3006 = vmul.f32 %v3000, %v523
        %v3007 = vmul.f32 %v3000, %v524
        %3015 = vrot.lane.b32.xlu0 %v3001, 123
        %v3016 = vpop.permute.xlu0 %3015
        %3017 = vrot.lane.b32.xlu0 %v3002, 123
        %v3018 = vpop.permute.xlu0 %3017
        %3019 = vrot.lane.b32.xlu0 %v3003, 123
        %v3020 = vpop.permute.xlu0 %3019
        %3021 = vrot.lane.b32.xlu0 %v3004, 123
        %v3022 = vpop.permute.xlu0 %3021
        %3023 = vrot.lane.b32.xlu0 %v3005, 123
        %v3024 = vpop.permute.xlu0 %3023
        %3025 = vrot.lane.b32.xlu0 %v3006, 123
        %v3026 = vpop.permute.xlu0 %3025
        %3027 = vrot.lane.b32.xlu0 %v3007, 123
        %v3028 = vpop.permute.xlu0 %3027
        %v3036 = vadd.f32 %v2991, %v3016
        %v3037 = vadd.f32 %v2992, %v3016
        %v3038 = vadd.f32 %v2993, %v3018
        %v3039 = vadd.f32 %v2994, %v3020
        %v3040 = vadd.f32 %v2995, %v3022
        %v3041 = vadd.f32 %v2996, %v3024
        %v3042 = vadd.f32 %v2997, %v3026
        %v3043 = vadd.f32 %v2998, %v3028
        %s3044 = sld [smem:[#allocation2 + $0x3e]]
        %v3045 = vstv %s3044
        %v3046 = vmul.f32 %v3045, %v470
        %v3047 = vmul.f32 %v3045, %v519
        %v3048 = vmul.f32 %v3045, %v520
        %v3049 = vmul.f32 %v3045, %v521
        %v3050 = vmul.f32 %v3045, %v522
        %v3051 = vmul.f32 %v3045, %v523
        %v3052 = vmul.f32 %v3045, %v524
        %3060 = vrot.lane.b32.xlu0 %v3046, 122
        %v3061 = vpop.permute.xlu0 %3060
        %3062 = vrot.lane.b32.xlu0 %v3047, 122
        %v3063 = vpop.permute.xlu0 %3062
        %3064 = vrot.lane.b32.xlu0 %v3048, 122
        %v3065 = vpop.permute.xlu0 %3064
        %3066 = vrot.lane.b32.xlu0 %v3049, 122
        %v3067 = vpop.permute.xlu0 %3066
        %3068 = vrot.lane.b32.xlu0 %v3050, 122
        %v3069 = vpop.permute.xlu0 %3068
        %3070 = vrot.lane.b32.xlu0 %v3051, 122
        %v3071 = vpop.permute.xlu0 %3070
        %3072 = vrot.lane.b32.xlu0 %v3052, 122
        %v3073 = vpop.permute.xlu0 %3072
        %v3081 = vadd.f32 %v3036, %v3061
        %v3082 = vadd.f32 %v3037, %v3061
        %v3083 = vadd.f32 %v3038, %v3063
        %v3084 = vadd.f32 %v3039, %v3065
        %v3085 = vadd.f32 %v3040, %v3067
        %v3086 = vadd.f32 %v3041, %v3069
        %v3087 = vadd.f32 %v3042, %v3071
        %v3088 = vadd.f32 %v3043, %v3073
        %s3089 = sld [smem:[#allocation2 + $0x3f]]
        %v3090 = vstv %s3089
        %v3091 = vmul.f32 %v3090, %v470
        %v3092 = vmul.f32 %v3090, %v519
        %v3093 = vmul.f32 %v3090, %v520
        %v3094 = vmul.f32 %v3090, %v521
        %v3095 = vmul.f32 %v3090, %v522
        %v3096 = vmul.f32 %v3090, %v523
        %v3097 = vmul.f32 %v3090, %v524
        %v3098 = vmul.f32 %v3090, %v525
        %v3099 = vadd.f32 %v3081, %v3091
        %v3100 = vadd.f32 %v3082, %v3092
        %v3101 = vadd.f32 %v3083, %v3093
        %v3102 = vadd.f32 %v3084, %v3094
        %v3103 = vadd.f32 %v3085, %v3095
        %v3104 = vadd.f32 %v3086, %v3096
        %v3105 = vadd.f32 %v3087, %v3097
        %v3106 = vadd.f32 %v3088, %v3098
        %s3107 = sld [smem:[#allocation2 + $0x40]]
        %v3108 = vstv %s3107
        %v3109 = vmul.f32 %v3108, %v470
        %v3110 = vmul.f32 %v3108, %v519
        %v3111 = vmul.f32 %v3108, %v520
        %v3112 = vmul.f32 %v3108, %v521
        %v3113 = vmul.f32 %v3108, %v522
        %v3114 = vmul.f32 %v3108, %v523
        %v3115 = vmul.f32 %v3108, %v524
        %v3116 = vmul.f32 %v3108, %v525
        %3125 = vrot.lane.b32.xlu0 %v3109, 127
        %v3126 = vpop.permute.xlu0 %3125
        %3127 = vrot.lane.b32.xlu0 %v3110, 127
        %v3128 = vpop.permute.xlu0 %3127
        %3129 = vrot.lane.b32.xlu0 %v3111, 127
        %v3130 = vpop.permute.xlu0 %3129
        %3131 = vrot.lane.b32.xlu0 %v3112, 127
        %v3132 = vpop.permute.xlu0 %3131
        %3133 = vrot.lane.b32.xlu0 %v3113, 127
        %v3134 = vpop.permute.xlu0 %3133
        %3135 = vrot.lane.b32.xlu0 %v3114, 127
        %v3136 = vpop.permute.xlu0 %3135
        %3137 = vrot.lane.b32.xlu0 %v3115, 127
        %v3138 = vpop.permute.xlu0 %3137
        %3139 = vrot.lane.b32.xlu0 %v3116, 127
        %v3140 = vpop.permute.xlu0 %3139
        %v3149 = vadd.f32 %v3099, %v3126
        %v3150 = vadd.f32 %v3100, %v3128
        %v3151 = vadd.f32 %v3101, %v3130
        %v3152 = vadd.f32 %v3102, %v3132
        %v3153 = vadd.f32 %v3103, %v3134
        %v3154 = vadd.f32 %v3104, %v3136
        %v3155 = vadd.f32 %v3105, %v3138
        %v3156 = vadd.f32 %v3106, %v3140
        %s3157 = sld [smem:[#allocation2 + $0x41]]
        %v3158 = vstv %s3157
        %v3159 = vmul.f32 %v3158, %v470
        %v3160 = vmul.f32 %v3158, %v519
        %v3161 = vmul.f32 %v3158, %v520
        %v3162 = vmul.f32 %v3158, %v521
        %v3163 = vmul.f32 %v3158, %v522
        %v3164 = vmul.f32 %v3158, %v523
        %v3165 = vmul.f32 %v3158, %v524
        %v3166 = vmul.f32 %v3158, %v525
        %3175 = vrot.lane.b32.xlu0 %v3159, 126
        %v3176 = vpop.permute.xlu0 %3175
        %3177 = vrot.lane.b32.xlu0 %v3160, 126
        %v3178 = vpop.permute.xlu0 %3177
        %3179 = vrot.lane.b32.xlu0 %v3161, 126
        %v3180 = vpop.permute.xlu0 %3179
        %3181 = vrot.lane.b32.xlu0 %v3162, 126
        %v3182 = vpop.permute.xlu0 %3181
        %3183 = vrot.lane.b32.xlu0 %v3163, 126
        %v3184 = vpop.permute.xlu0 %3183
        %3185 = vrot.lane.b32.xlu0 %v3164, 126
        %v3186 = vpop.permute.xlu0 %3185
        %3187 = vrot.lane.b32.xlu0 %v3165, 126
        %v3188 = vpop.permute.xlu0 %3187
        %3189 = vrot.lane.b32.xlu0 %v3166, 126
        %v3190 = vpop.permute.xlu0 %3189
        %v3199 = vadd.f32 %v3149, %v3176
        %v3200 = vadd.f32 %v3150, %v3178
        %v3201 = vadd.f32 %v3151, %v3180
        %v3202 = vadd.f32 %v3152, %v3182
        %v3203 = vadd.f32 %v3153, %v3184
        %v3204 = vadd.f32 %v3154, %v3186
        %v3205 = vadd.f32 %v3155, %v3188
        %v3206 = vadd.f32 %v3156, %v3190
        %s3207 = sld [smem:[#allocation2 + $0x42]]
        %v3208 = vstv %s3207
        %v3209 = vmul.f32 %v3208, %v470
        %v3210 = vmul.f32 %v3208, %v519
        %v3211 = vmul.f32 %v3208, %v520
        %v3212 = vmul.f32 %v3208, %v521
        %v3213 = vmul.f32 %v3208, %v522
        %v3214 = vmul.f32 %v3208, %v523
        %v3215 = vmul.f32 %v3208, %v524
        %v3216 = vmul.f32 %v3208, %v525
        %3225 = vrot.lane.b32.xlu0 %v3209, 125
        %v3226 = vpop.permute.xlu0 %3225
        %3227 = vrot.lane.b32.xlu0 %v3210, 125
        %v3228 = vpop.permute.xlu0 %3227
        %3229 = vrot.lane.b32.xlu0 %v3211, 125
        %v3230 = vpop.permute.xlu0 %3229
        %3231 = vrot.lane.b32.xlu0 %v3212, 125
        %v3232 = vpop.permute.xlu0 %3231
        %3233 = vrot.lane.b32.xlu0 %v3213, 125
        %v3234 = vpop.permute.xlu0 %3233
        %3235 = vrot.lane.b32.xlu0 %v3214, 125
        %v3236 = vpop.permute.xlu0 %3235
        %3237 = vrot.lane.b32.xlu0 %v3215, 125
        %v3238 = vpop.permute.xlu0 %3237
        %3239 = vrot.lane.b32.xlu0 %v3216, 125
        %v3240 = vpop.permute.xlu0 %3239
        %v3249 = vadd.f32 %v3199, %v3226
        %v3250 = vadd.f32 %v3200, %v3228
        %v3251 = vadd.f32 %v3201, %v3230
        %v3252 = vadd.f32 %v3202, %v3232
        %v3253 = vadd.f32 %v3203, %v3234
        %v3254 = vadd.f32 %v3204, %v3236
        %v3255 = vadd.f32 %v3205, %v3238
        %v3256 = vadd.f32 %v3206, %v3240
        %s3257 = sld [smem:[#allocation2 + $0x43]]
        %v3258 = vstv %s3257
        %v3259 = vmul.f32 %v3258, %v470
        %v3260 = vmul.f32 %v3258, %v519
        %v3261 = vmul.f32 %v3258, %v520
        %v3262 = vmul.f32 %v3258, %v521
        %v3263 = vmul.f32 %v3258, %v522
        %v3264 = vmul.f32 %v3258, %v523
        %v3265 = vmul.f32 %v3258, %v524
        %v3266 = vmul.f32 %v3258, %v525
        %3275 = vrot.lane.b32.xlu0 %v3259, 124
        %v3276 = vpop.permute.xlu0 %3275
        %3277 = vrot.lane.b32.xlu0 %v3260, 124
        %v3278 = vpop.permute.xlu0 %3277
        %3279 = vrot.lane.b32.xlu0 %v3261, 124
        %v3280 = vpop.permute.xlu0 %3279
        %3281 = vrot.lane.b32.xlu0 %v3262, 124
        %v3282 = vpop.permute.xlu0 %3281
        %3283 = vrot.lane.b32.xlu0 %v3263, 124
        %v3284 = vpop.permute.xlu0 %3283
        %3285 = vrot.lane.b32.xlu0 %v3264, 124
        %v3286 = vpop.permute.xlu0 %3285
        %3287 = vrot.lane.b32.xlu0 %v3265, 124
        %v3288 = vpop.permute.xlu0 %3287
        %3289 = vrot.lane.b32.xlu0 %v3266, 124
        %v3290 = vpop.permute.xlu0 %3289
        %v3299 = vadd.f32 %v3249, %v3276
        %v3300 = vadd.f32 %v3250, %v3278
        %v3301 = vadd.f32 %v3251, %v3280
        %v3302 = vadd.f32 %v3252, %v3282
        %v3303 = vadd.f32 %v3253, %v3284
        %v3304 = vadd.f32 %v3254, %v3286
        %v3305 = vadd.f32 %v3255, %v3288
        %v3306 = vadd.f32 %v3256, %v3290
        %s3307 = sld [smem:[#allocation2 + $0x44]]
        %v3308 = vstv %s3307
        %v3309 = vmul.f32 %v3308, %v470
        %v3310 = vmul.f32 %v3308, %v519
        %v3311 = vmul.f32 %v3308, %v520
        %v3312 = vmul.f32 %v3308, %v521
        %v3313 = vmul.f32 %v3308, %v522
        %v3314 = vmul.f32 %v3308, %v523
        %v3315 = vmul.f32 %v3308, %v524
        %v3316 = vmul.f32 %v3308, %v525
        %3325 = vrot.lane.b32.xlu0 %v3309, 123
        %v3326 = vpop.permute.xlu0 %3325
        %3327 = vrot.lane.b32.xlu0 %v3310, 123
        %v3328 = vpop.permute.xlu0 %3327
        %3329 = vrot.lane.b32.xlu0 %v3311, 123
        %v3330 = vpop.permute.xlu0 %3329
        %3331 = vrot.lane.b32.xlu0 %v3312, 123
        %v3332 = vpop.permute.xlu0 %3331
        %3333 = vrot.lane.b32.xlu0 %v3313, 123
        %v3334 = vpop.permute.xlu0 %3333
        %3335 = vrot.lane.b32.xlu0 %v3314, 123
        %v3336 = vpop.permute.xlu0 %3335
        %3337 = vrot.lane.b32.xlu0 %v3315, 123
        %v3338 = vpop.permute.xlu0 %3337
        %3339 = vrot.lane.b32.xlu0 %v3316, 123
        %v3340 = vpop.permute.xlu0 %3339
        %v3349 = vadd.f32 %v3299, %v3326
        %v3350 = vadd.f32 %v3300, %v3328
        %v3351 = vadd.f32 %v3301, %v3330
        %v3352 = vadd.f32 %v3302, %v3332
        %v3353 = vadd.f32 %v3303, %v3334
        %v3354 = vadd.f32 %v3304, %v3336
        %v3355 = vadd.f32 %v3305, %v3338
        %v3356 = vadd.f32 %v3306, %v3340
        %s3357 = sld [smem:[#allocation2 + $0x45]]
        %v3358 = vstv %s3357
        %v3359 = vmul.f32 %v3358, %v470
        %v3360 = vmul.f32 %v3358, %v519
        %v3361 = vmul.f32 %v3358, %v520
        %v3362 = vmul.f32 %v3358, %v521
        %v3363 = vmul.f32 %v3358, %v522
        %v3364 = vmul.f32 %v3358, %v523
        %v3365 = vmul.f32 %v3358, %v524
        %v3366 = vmul.f32 %v3358, %v525
        %3375 = vrot.lane.b32.xlu0 %v3359, 122
        %v3376 = vpop.permute.xlu0 %3375
        %3377 = vrot.lane.b32.xlu0 %v3360, 122
        %v3378 = vpop.permute.xlu0 %3377
        %3379 = vrot.lane.b32.xlu0 %v3361, 122
        %v3380 = vpop.permute.xlu0 %3379
        %3381 = vrot.lane.b32.xlu0 %v3362, 122
        %v3382 = vpop.permute.xlu0 %3381
        %3383 = vrot.lane.b32.xlu0 %v3363, 122
        %v3384 = vpop.permute.xlu0 %3383
        %3385 = vrot.lane.b32.xlu0 %v3364, 122
        %v3386 = vpop.permute.xlu0 %3385
        %3387 = vrot.lane.b32.xlu0 %v3365, 122
        %v3388 = vpop.permute.xlu0 %3387
        %3389 = vrot.lane.b32.xlu0 %v3366, 122
        %v3390 = vpop.permute.xlu0 %3389
        %v3399 = vadd.f32 %v3349, %v3376
        %v3400 = vadd.f32 %v3350, %v3378
        %v3401 = vadd.f32 %v3351, %v3380
        %v3402 = vadd.f32 %v3352, %v3382
        %v3403 = vadd.f32 %v3353, %v3384
        %v3404 = vadd.f32 %v3354, %v3386
        %v3405 = vadd.f32 %v3355, %v3388
        %v3406 = vadd.f32 %v3356, %v3390
        %s3407 = sld [smem:[#allocation2 + $0x46]]
        %v3408 = vstv %s3407
        %v3409 = vmul.f32 %v3408, %v519
        %v3410 = vmul.f32 %v3408, %v520
        %v3411 = vmul.f32 %v3408, %v521
        %v3412 = vmul.f32 %v3408, %v522
        %v3413 = vmul.f32 %v3408, %v523
        %v3414 = vmul.f32 %v3408, %v524
        %v3415 = vmul.f32 %v3408, %v525
        %v3416 = vmul.f32 %v3408, %v526
        %v3417 = vadd.f32 %v3399, %v3409
        %v3418 = vadd.f32 %v3400, %v3410
        %v3419 = vadd.f32 %v3401, %v3411
        %v3420 = vadd.f32 %v3402, %v3412
        %v3421 = vadd.f32 %v3403, %v3413
        %v3422 = vadd.f32 %v3404, %v3414
        %v3423 = vadd.f32 %v3405, %v3415
        %v3424 = vadd.f32 %v3406, %v3416
        %s3425 = sld [smem:[#allocation2 + $0x47]]
        %v3426 = vstv %s3425
        %v3427 = vmul.f32 %v3426, %v519
        %v3428 = vmul.f32 %v3426, %v520
        %v3429 = vmul.f32 %v3426, %v521
        %v3430 = vmul.f32 %v3426, %v522
        %v3431 = vmul.f32 %v3426, %v523
        %v3432 = vmul.f32 %v3426, %v524
        %v3433 = vmul.f32 %v3426, %v525
        %v3434 = vmul.f32 %v3426, %v526
        %3443 = vrot.lane.b32.xlu0 %v3427, 127
        %v3444 = vpop.permute.xlu0 %3443
        %3445 = vrot.lane.b32.xlu0 %v3428, 127
        %v3446 = vpop.permute.xlu0 %3445
        %3447 = vrot.lane.b32.xlu0 %v3429, 127
        %v3448 = vpop.permute.xlu0 %3447
        %3449 = vrot.lane.b32.xlu0 %v3430, 127
        %v3450 = vpop.permute.xlu0 %3449
        %3451 = vrot.lane.b32.xlu0 %v3431, 127
        %v3452 = vpop.permute.xlu0 %3451
        %3453 = vrot.lane.b32.xlu0 %v3432, 127
        %v3454 = vpop.permute.xlu0 %3453
        %3455 = vrot.lane.b32.xlu0 %v3433, 127
        %v3456 = vpop.permute.xlu0 %3455
        %3457 = vrot.lane.b32.xlu0 %v3434, 127
        %v3458 = vpop.permute.xlu0 %3457
        %v3467 = vadd.f32 %v3417, %v3444
        %v3468 = vadd.f32 %v3418, %v3446
        %v3469 = vadd.f32 %v3419, %v3448
        %v3470 = vadd.f32 %v3420, %v3450
        %v3471 = vadd.f32 %v3421, %v3452
        %v3472 = vadd.f32 %v3422, %v3454
        %v3473 = vadd.f32 %v3423, %v3456
        %v3474 = vadd.f32 %v3424, %v3458
        %s3475 = sld [smem:[#allocation2 + $0x48]]
        %v3476 = vstv %s3475
        %v3477 = vmul.f32 %v3476, %v519
        %v3478 = vmul.f32 %v3476, %v520
        %v3479 = vmul.f32 %v3476, %v521
        %v3480 = vmul.f32 %v3476, %v522
        %v3481 = vmul.f32 %v3476, %v523
        %v3482 = vmul.f32 %v3476, %v524
        %v3483 = vmul.f32 %v3476, %v525
        %v3484 = vmul.f32 %v3476, %v526
        %3493 = vrot.lane.b32.xlu0 %v3477, 126
        %v3494 = vpop.permute.xlu0 %3493
        %3495 = vrot.lane.b32.xlu0 %v3478, 126
        %v3496 = vpop.permute.xlu0 %3495
        %3497 = vrot.lane.b32.xlu0 %v3479, 126
        %v3498 = vpop.permute.xlu0 %3497
        %3499 = vrot.lane.b32.xlu0 %v3480, 126
        %v3500 = vpop.permute.xlu0 %3499
        %3501 = vrot.lane.b32.xlu0 %v3481, 126
        %v3502 = vpop.permute.xlu0 %3501
        %3503 = vrot.lane.b32.xlu0 %v3482, 126
        %v3504 = vpop.permute.xlu0 %3503
        %3505 = vrot.lane.b32.xlu0 %v3483, 126
        %v3506 = vpop.permute.xlu0 %3505
        %3507 = vrot.lane.b32.xlu0 %v3484, 126
        %v3508 = vpop.permute.xlu0 %3507
        %v3517 = vadd.f32 %v3467, %v3494
        %v3518 = vadd.f32 %v3468, %v3496
        %v3519 = vadd.f32 %v3469, %v3498
        %v3520 = vadd.f32 %v3470, %v3500
        %v3521 = vadd.f32 %v3471, %v3502
        %v3522 = vadd.f32 %v3472, %v3504
        %v3523 = vadd.f32 %v3473, %v3506
        %v3524 = vadd.f32 %v3474, %v3508
        %s3525 = sld [smem:[#allocation2 + $0x49]]
        %v3526 = vstv %s3525
        %v3527 = vmul.f32 %v3526, %v519
        %v3528 = vmul.f32 %v3526, %v520
        %v3529 = vmul.f32 %v3526, %v521
        %v3530 = vmul.f32 %v3526, %v522
        %v3531 = vmul.f32 %v3526, %v523
        %v3532 = vmul.f32 %v3526, %v524
        %v3533 = vmul.f32 %v3526, %v525
        %v3534 = vmul.f32 %v3526, %v526
        %3543 = vrot.lane.b32.xlu0 %v3527, 125
        %v3544 = vpop.permute.xlu0 %3543
        %3545 = vrot.lane.b32.xlu0 %v3528, 125
        %v3546 = vpop.permute.xlu0 %3545
        %3547 = vrot.lane.b32.xlu0 %v3529, 125
        %v3548 = vpop.permute.xlu0 %3547
        %3549 = vrot.lane.b32.xlu0 %v3530, 125
        %v3550 = vpop.permute.xlu0 %3549
        %3551 = vrot.lane.b32.xlu0 %v3531, 125
        %v3552 = vpop.permute.xlu0 %3551
        %3553 = vrot.lane.b32.xlu0 %v3532, 125
        %v3554 = vpop.permute.xlu0 %3553
        %3555 = vrot.lane.b32.xlu0 %v3533, 125
        %v3556 = vpop.permute.xlu0 %3555
        %3557 = vrot.lane.b32.xlu0 %v3534, 125
        %v3558 = vpop.permute.xlu0 %3557
        %v3567 = vadd.f32 %v3517, %v3544
        %v3568 = vadd.f32 %v3518, %v3546
        %v3569 = vadd.f32 %v3519, %v3548
        %v3570 = vadd.f32 %v3520, %v3550
        %v3571 = vadd.f32 %v3521, %v3552
        %v3572 = vadd.f32 %v3522, %v3554
        %v3573 = vadd.f32 %v3523, %v3556
        %v3574 = vadd.f32 %v3524, %v3558
        %s3575 = sld [smem:[#allocation2 + $0x4a]]
        %v3576 = vstv %s3575
        %v3577 = vmul.f32 %v3576, %v519
        %v3578 = vmul.f32 %v3576, %v520
        %v3579 = vmul.f32 %v3576, %v521
        %v3580 = vmul.f32 %v3576, %v522
        %v3581 = vmul.f32 %v3576, %v523
        %v3582 = vmul.f32 %v3576, %v524
        %v3583 = vmul.f32 %v3576, %v525
        %v3584 = vmul.f32 %v3576, %v526
        %3593 = vrot.lane.b32.xlu0 %v3577, 124
        %v3594 = vpop.permute.xlu0 %3593
        %3595 = vrot.lane.b32.xlu0 %v3578, 124
        %v3596 = vpop.permute.xlu0 %3595
        %3597 = vrot.lane.b32.xlu0 %v3579, 124
        %v3598 = vpop.permute.xlu0 %3597
        %3599 = vrot.lane.b32.xlu0 %v3580, 124
        %v3600 = vpop.permute.xlu0 %3599
        %3601 = vrot.lane.b32.xlu0 %v3581, 124
        %v3602 = vpop.permute.xlu0 %3601
        %3603 = vrot.lane.b32.xlu0 %v3582, 124
        %v3604 = vpop.permute.xlu0 %3603
        %3605 = vrot.lane.b32.xlu0 %v3583, 124
        %v3606 = vpop.permute.xlu0 %3605
        %3607 = vrot.lane.b32.xlu0 %v3584, 124
        %v3608 = vpop.permute.xlu0 %3607
        %v3617 = vadd.f32 %v3567, %v3594
        %v3618 = vadd.f32 %v3568, %v3596
        %v3619 = vadd.f32 %v3569, %v3598
        %v3620 = vadd.f32 %v3570, %v3600
        %v3621 = vadd.f32 %v3571, %v3602
        %v3622 = vadd.f32 %v3572, %v3604
        %v3623 = vadd.f32 %v3573, %v3606
        %v3624 = vadd.f32 %v3574, %v3608
        %s3625 = sld [smem:[#allocation2 + $0x4b]]
        %v3626 = vstv %s3625
        %v3627 = vmul.f32 %v3626, %v519
        %v3628 = vmul.f32 %v3626, %v520
        %v3629 = vmul.f32 %v3626, %v521
        %v3630 = vmul.f32 %v3626, %v522
        %v3631 = vmul.f32 %v3626, %v523
        %v3632 = vmul.f32 %v3626, %v524
        %v3633 = vmul.f32 %v3626, %v525
        %v3634 = vmul.f32 %v3626, %v526
        %3643 = vrot.lane.b32.xlu0 %v3627, 123
        %v3644 = vpop.permute.xlu0 %3643
        %3645 = vrot.lane.b32.xlu0 %v3628, 123
        %v3646 = vpop.permute.xlu0 %3645
        %3647 = vrot.lane.b32.xlu0 %v3629, 123
        %v3648 = vpop.permute.xlu0 %3647
        %3649 = vrot.lane.b32.xlu0 %v3630, 123
        %v3650 = vpop.permute.xlu0 %3649
        %3651 = vrot.lane.b32.xlu0 %v3631, 123
        %v3652 = vpop.permute.xlu0 %3651
        %3653 = vrot.lane.b32.xlu0 %v3632, 123
        %v3654 = vpop.permute.xlu0 %3653
        %3655 = vrot.lane.b32.xlu0 %v3633, 123
        %v3656 = vpop.permute.xlu0 %3655
        %3657 = vrot.lane.b32.xlu0 %v3634, 123
        %v3658 = vpop.permute.xlu0 %3657
        %v3667 = vadd.f32 %v3617, %v3644
        %v3668 = vadd.f32 %v3618, %v3646
        %v3669 = vadd.f32 %v3619, %v3648
        %v3670 = vadd.f32 %v3620, %v3650
        %v3671 = vadd.f32 %v3621, %v3652
        %v3672 = vadd.f32 %v3622, %v3654
        %v3673 = vadd.f32 %v3623, %v3656
        %v3674 = vadd.f32 %v3624, %v3658
        %s3675 = sld [smem:[#allocation2 + $0x4c]]
        %v3676 = vstv %s3675
        %v3677 = vmul.f32 %v3676, %v519
        %v3678 = vmul.f32 %v3676, %v520
        %v3679 = vmul.f32 %v3676, %v521
        %v3680 = vmul.f32 %v3676, %v522
        %v3681 = vmul.f32 %v3676, %v523
        %v3682 = vmul.f32 %v3676, %v524
        %v3683 = vmul.f32 %v3676, %v525
        %v3684 = vmul.f32 %v3676, %v526
        %3693 = vrot.lane.b32.xlu0 %v3677, 122
        %v3694 = vpop.permute.xlu0 %3693
        %3695 = vrot.lane.b32.xlu0 %v3678, 122
        %v3696 = vpop.permute.xlu0 %3695
        %3697 = vrot.lane.b32.xlu0 %v3679, 122
        %v3698 = vpop.permute.xlu0 %3697
        %3699 = vrot.lane.b32.xlu0 %v3680, 122
        %v3700 = vpop.permute.xlu0 %3699
        %3701 = vrot.lane.b32.xlu0 %v3681, 122
        %v3702 = vpop.permute.xlu0 %3701
        %3703 = vrot.lane.b32.xlu0 %v3682, 122
        %v3704 = vpop.permute.xlu0 %3703
        %3705 = vrot.lane.b32.xlu0 %v3683, 122
        %v3706 = vpop.permute.xlu0 %3705
        %3707 = vrot.lane.b32.xlu0 %v3684, 122
        %v3708 = vpop.permute.xlu0 %3707
        %v3717 = vadd.f32 %v3667, %v3694
        %v3718 = vadd.f32 %v3668, %v3696
        %v3719 = vadd.f32 %v3669, %v3698
        %v3720 = vadd.f32 %v3670, %v3700
        %v3721 = vadd.f32 %v3671, %v3702
        %v3722 = vadd.f32 %v3672, %v3704
        %v3723 = vadd.f32 %v3673, %v3706
        %v3724 = vadd.f32 %v3674, %v3708
        %s3725 = sld [smem:[#allocation2 + $0x4d]]
        %v3726 = vstv %s3725
        %v3727 = vmul.f32 %v3726, %v520
        %v3728 = vmul.f32 %v3726, %v521
        %v3729 = vmul.f32 %v3726, %v522
        %v3730 = vmul.f32 %v3726, %v523
        %v3731 = vmul.f32 %v3726, %v524
        %v3732 = vmul.f32 %v3726, %v525
        %v3733 = vmul.f32 %v3726, %v526
        %v3734 = vmul.f32 %v3726, %v470
        %v3735 = vadd.f32 %v3717, %v3727
        %v3736 = vadd.f32 %v3718, %v3728
        %v3737 = vadd.f32 %v3719, %v3729
        %v3738 = vadd.f32 %v3720, %v3730
        %v3739 = vadd.f32 %v3721, %v3731
        %v3740 = vadd.f32 %v3722, %v3732
        %v3741 = vadd.f32 %v3723, %v3733
        %v3742 = vadd.f32 %v3724, %v3734
        %s3743 = sld [smem:[#allocation2 + $0x4e]]
        %v3744 = vstv %s3743
        %v3745 = vmul.f32 %v3744, %v520
        %v3746 = vmul.f32 %v3744, %v521
        %v3747 = vmul.f32 %v3744, %v522
        %v3748 = vmul.f32 %v3744, %v523
        %v3749 = vmul.f32 %v3744, %v524
        %v3750 = vmul.f32 %v3744, %v525
        %v3751 = vmul.f32 %v3744, %v526
        %v3752 = vmul.f32 %v3744, %v470
        %3761 = vrot.lane.b32.xlu0 %v3745, 127
        %v3762 = vpop.permute.xlu0 %3761
        %3763 = vrot.lane.b32.xlu0 %v3746, 127
        %v3764 = vpop.permute.xlu0 %3763
        %3765 = vrot.lane.b32.xlu0 %v3747, 127
        %v3766 = vpop.permute.xlu0 %3765
        %3767 = vrot.lane.b32.xlu0 %v3748, 127
        %v3768 = vpop.permute.xlu0 %3767
        %3769 = vrot.lane.b32.xlu0 %v3749, 127
        %v3770 = vpop.permute.xlu0 %3769
        %3771 = vrot.lane.b32.xlu0 %v3750, 127
        %v3772 = vpop.permute.xlu0 %3771
        %3773 = vrot.lane.b32.xlu0 %v3751, 127
        %v3774 = vpop.permute.xlu0 %3773
        %3775 = vrot.lane.b32.xlu0 %v3752, 127
        %v3776 = vpop.permute.xlu0 %3775
        %v3785 = vadd.f32 %v3735, %v3762
        %v3786 = vadd.f32 %v3736, %v3764
        %v3787 = vadd.f32 %v3737, %v3766
        %v3788 = vadd.f32 %v3738, %v3768
        %v3789 = vadd.f32 %v3739, %v3770
        %v3790 = vadd.f32 %v3740, %v3772
        %v3791 = vadd.f32 %v3741, %v3774
        %v3792 = vadd.f32 %v3742, %v3776
        %s3793 = sld [smem:[#allocation2 + $0x4f]]
        %v3794 = vstv %s3793
        %v3795 = vmul.f32 %v3794, %v520
        %v3796 = vmul.f32 %v3794, %v521
        %v3797 = vmul.f32 %v3794, %v522
        %v3798 = vmul.f32 %v3794, %v523
        %v3799 = vmul.f32 %v3794, %v524
        %v3800 = vmul.f32 %v3794, %v525
        %v3801 = vmul.f32 %v3794, %v526
        %v3802 = vmul.f32 %v3794, %v470
        %3811 = vrot.lane.b32.xlu0 %v3795, 126
        %v3812 = vpop.permute.xlu0 %3811
        %3813 = vrot.lane.b32.xlu0 %v3796, 126
        %v3814 = vpop.permute.xlu0 %3813
        %3815 = vrot.lane.b32.xlu0 %v3797, 126
        %v3816 = vpop.permute.xlu0 %3815
        %3817 = vrot.lane.b32.xlu0 %v3798, 126
        %v3818 = vpop.permute.xlu0 %3817
        %3819 = vrot.lane.b32.xlu0 %v3799, 126
        %v3820 = vpop.permute.xlu0 %3819
        %3821 = vrot.lane.b32.xlu0 %v3800, 126
        %v3822 = vpop.permute.xlu0 %3821
        %3823 = vrot.lane.b32.xlu0 %v3801, 126
        %v3824 = vpop.permute.xlu0 %3823
        %3825 = vrot.lane.b32.xlu0 %v3802, 126
        %v3826 = vpop.permute.xlu0 %3825
        %v3835 = vadd.f32 %v3785, %v3812
        %v3836 = vadd.f32 %v3786, %v3814
        %v3837 = vadd.f32 %v3787, %v3816
        %v3838 = vadd.f32 %v3788, %v3818
        %v3839 = vadd.f32 %v3789, %v3820
        %v3840 = vadd.f32 %v3790, %v3822
        %v3841 = vadd.f32 %v3791, %v3824
        %v3842 = vadd.f32 %v3792, %v3826
        %s3843 = sld [smem:[#allocation2 + $0x50]]
        %v3844 = vstv %s3843
        %v3845 = vmul.f32 %v3844, %v520
        %v3846 = vmul.f32 %v3844, %v521
        %v3847 = vmul.f32 %v3844, %v522
        %v3848 = vmul.f32 %v3844, %v523
        %v3849 = vmul.f32 %v3844, %v524
        %v3850 = vmul.f32 %v3844, %v525
        %v3851 = vmul.f32 %v3844, %v526
        %v3852 = vmul.f32 %v3844, %v470
        %3861 = vrot.lane.b32.xlu0 %v3845, 125
        %v3862 = vpop.permute.xlu0 %3861
        %3863 = vrot.lane.b32.xlu0 %v3846, 125
        %v3864 = vpop.permute.xlu0 %3863
        %3865 = vrot.lane.b32.xlu0 %v3847, 125
        %v3866 = vpop.permute.xlu0 %3865
        %3867 = vrot.lane.b32.xlu0 %v3848, 125
        %v3868 = vpop.permute.xlu0 %3867
        %3869 = vrot.lane.b32.xlu0 %v3849, 125
        %v3870 = vpop.permute.xlu0 %3869
        %3871 = vrot.lane.b32.xlu0 %v3850, 125
        %v3872 = vpop.permute.xlu0 %3871
        %3873 = vrot.lane.b32.xlu0 %v3851, 125
        %v3874 = vpop.permute.xlu0 %3873
        %3875 = vrot.lane.b32.xlu0 %v3852, 125
        %v3876 = vpop.permute.xlu0 %3875
        %v3885 = vadd.f32 %v3835, %v3862
        %v3886 = vadd.f32 %v3836, %v3864
        %v3887 = vadd.f32 %v3837, %v3866
        %v3888 = vadd.f32 %v3838, %v3868
        %v3889 = vadd.f32 %v3839, %v3870
        %v3890 = vadd.f32 %v3840, %v3872
        %v3891 = vadd.f32 %v3841, %v3874
        %v3892 = vadd.f32 %v3842, %v3876
        %s3893 = sld [smem:[#allocation2 + $0x51]]
        %v3894 = vstv %s3893
        %v3895 = vmul.f32 %v3894, %v520
        %v3896 = vmul.f32 %v3894, %v521
        %v3897 = vmul.f32 %v3894, %v522
        %v3898 = vmul.f32 %v3894, %v523
        %v3899 = vmul.f32 %v3894, %v524
        %v3900 = vmul.f32 %v3894, %v525
        %v3901 = vmul.f32 %v3894, %v526
        %v3902 = vmul.f32 %v3894, %v470
        %3911 = vrot.lane.b32.xlu0 %v3895, 124
        %v3912 = vpop.permute.xlu0 %3911
        %3913 = vrot.lane.b32.xlu0 %v3896, 124
        %v3914 = vpop.permute.xlu0 %3913
        %3915 = vrot.lane.b32.xlu0 %v3897, 124
        %v3916 = vpop.permute.xlu0 %3915
        %3917 = vrot.lane.b32.xlu0 %v3898, 124
        %v3918 = vpop.permute.xlu0 %3917
        %3919 = vrot.lane.b32.xlu0 %v3899, 124
        %v3920 = vpop.permute.xlu0 %3919
        %3921 = vrot.lane.b32.xlu0 %v3900, 124
        %v3922 = vpop.permute.xlu0 %3921
        %3923 = vrot.lane.b32.xlu0 %v3901, 124
        %v3924 = vpop.permute.xlu0 %3923
        %3925 = vrot.lane.b32.xlu0 %v3902, 124
        %v3926 = vpop.permute.xlu0 %3925
        %v3935 = vadd.f32 %v3885, %v3912
        %v3936 = vadd.f32 %v3886, %v3914
        %v3937 = vadd.f32 %v3887, %v3916
        %v3938 = vadd.f32 %v3888, %v3918
        %v3939 = vadd.f32 %v3889, %v3920
        %v3940 = vadd.f32 %v3890, %v3922
        %v3941 = vadd.f32 %v3891, %v3924
        %v3942 = vadd.f32 %v3892, %v3926
        %s3943 = sld [smem:[#allocation2 + $0x52]]
        %v3944 = vstv %s3943
        %v3945 = vmul.f32 %v3944, %v520
        %v3946 = vmul.f32 %v3944, %v521
        %v3947 = vmul.f32 %v3944, %v522
        %v3948 = vmul.f32 %v3944, %v523
        %v3949 = vmul.f32 %v3944, %v524
        %v3950 = vmul.f32 %v3944, %v525
        %v3951 = vmul.f32 %v3944, %v526
        %v3952 = vmul.f32 %v3944, %v470
        %3961 = vrot.lane.b32.xlu0 %v3945, 123
        %v3962 = vpop.permute.xlu0 %3961
        %3963 = vrot.lane.b32.xlu0 %v3946, 123
        %v3964 = vpop.permute.xlu0 %3963
        %3965 = vrot.lane.b32.xlu0 %v3947, 123
        %v3966 = vpop.permute.xlu0 %3965
        %3967 = vrot.lane.b32.xlu0 %v3948, 123
        %v3968 = vpop.permute.xlu0 %3967
        %3969 = vrot.lane.b32.xlu0 %v3949, 123
        %v3970 = vpop.permute.xlu0 %3969
        %3971 = vrot.lane.b32.xlu0 %v3950, 123
        %v3972 = vpop.permute.xlu0 %3971
        %3973 = vrot.lane.b32.xlu0 %v3951, 123
        %v3974 = vpop.permute.xlu0 %3973
        %3975 = vrot.lane.b32.xlu0 %v3952, 123
        %v3976 = vpop.permute.xlu0 %3975
        %v3985 = vadd.f32 %v3935, %v3962
        %v3986 = vadd.f32 %v3936, %v3964
        %v3987 = vadd.f32 %v3937, %v3966
        %v3988 = vadd.f32 %v3938, %v3968
        %v3989 = vadd.f32 %v3939, %v3970
        %v3990 = vadd.f32 %v3940, %v3972
        %v3991 = vadd.f32 %v3941, %v3974
        %v3992 = vadd.f32 %v3942, %v3976
        %s3993 = sld [smem:[#allocation2 + $0x53]]
        %v3994 = vstv %s3993
        %v3995 = vmul.f32 %v3994, %v520
        %v3996 = vmul.f32 %v3994, %v521
        %v3997 = vmul.f32 %v3994, %v522
        %v3998 = vmul.f32 %v3994, %v523
        %v3999 = vmul.f32 %v3994, %v524
        %v4000 = vmul.f32 %v3994, %v525
        %v4001 = vmul.f32 %v3994, %v526
        %v4002 = vmul.f32 %v3994, %v470
        %4011 = vrot.lane.b32.xlu0 %v3995, 122
        %v4012 = vpop.permute.xlu0 %4011
        %4013 = vrot.lane.b32.xlu0 %v3996, 122
        %v4014 = vpop.permute.xlu0 %4013
        %4015 = vrot.lane.b32.xlu0 %v3997, 122
        %v4016 = vpop.permute.xlu0 %4015
        %4017 = vrot.lane.b32.xlu0 %v3998, 122
        %v4018 = vpop.permute.xlu0 %4017
        %4019 = vrot.lane.b32.xlu0 %v3999, 122
        %v4020 = vpop.permute.xlu0 %4019
        %4021 = vrot.lane.b32.xlu0 %v4000, 122
        %v4022 = vpop.permute.xlu0 %4021
        %4023 = vrot.lane.b32.xlu0 %v4001, 122
        %v4024 = vpop.permute.xlu0 %4023
        %4025 = vrot.lane.b32.xlu0 %v4002, 122
        %v4026 = vpop.permute.xlu0 %4025
        %v4035 = vadd.f32 %v3985, %v4012
        %v4036 = vadd.f32 %v3986, %v4014
        %v4037 = vadd.f32 %v3987, %v4016
        %v4038 = vadd.f32 %v3988, %v4018
        %v4039 = vadd.f32 %v3989, %v4020
        %v4040 = vadd.f32 %v3990, %v4022
        %v4041 = vadd.f32 %v3991, %v4024
        %v4042 = vadd.f32 %v3992, %v4026
        %s4043 = sld [smem:[#allocation2 + $0x54]]
        %v4044 = vstv %s4043
        %v4045 = vmul.f32 %v4044, %v521
        %v4046 = vmul.f32 %v4044, %v522
        %v4047 = vmul.f32 %v4044, %v523
        %v4048 = vmul.f32 %v4044, %v524
        %v4049 = vmul.f32 %v4044, %v525
        %v4050 = vmul.f32 %v4044, %v526
        %v4051 = vmul.f32 %v4044, %v470
        %v4052 = vadd.f32 %v4035, %v4045
        %v4053 = vadd.f32 %v4036, %v4046
        %v4054 = vadd.f32 %v4037, %v4047
        %v4055 = vadd.f32 %v4038, %v4048
        %v4056 = vadd.f32 %v4039, %v4049
        %v4057 = vadd.f32 %v4040, %v4050
        %v4058 = vadd.f32 %v4041, %v4051
        %v4059 = vadd.f32 %v4042, %v4051
        %s4060 = sld [smem:[#allocation2 + $0x55]]
        %v4061 = vstv %s4060
        %v4062 = vmul.f32 %v4061, %v521
        %v4063 = vmul.f32 %v4061, %v522
        %v4064 = vmul.f32 %v4061, %v523
        %v4065 = vmul.f32 %v4061, %v524
        %v4066 = vmul.f32 %v4061, %v525
        %v4067 = vmul.f32 %v4061, %v526
        %v4068 = vmul.f32 %v4061, %v470
        %4076 = vrot.lane.b32.xlu0 %v4062, 127
        %v4077 = vpop.permute.xlu0 %4076
        %4078 = vrot.lane.b32.xlu0 %v4063, 127
        %v4079 = vpop.permute.xlu0 %4078
        %4080 = vrot.lane.b32.xlu0 %v4064, 127
        %v4081 = vpop.permute.xlu0 %4080
        %4082 = vrot.lane.b32.xlu0 %v4065, 127
        %v4083 = vpop.permute.xlu0 %4082
        %4084 = vrot.lane.b32.xlu0 %v4066, 127
        %v4085 = vpop.permute.xlu0 %4084
        %4086 = vrot.lane.b32.xlu0 %v4067, 127
        %v4087 = vpop.permute.xlu0 %4086
        %4088 = vrot.lane.b32.xlu0 %v4068, 127
        %v4089 = vpop.permute.xlu0 %4088
        %v4097 = vadd.f32 %v4052, %v4077
        %v4098 = vadd.f32 %v4053, %v4079
        %v4099 = vadd.f32 %v4054, %v4081
        %v4100 = vadd.f32 %v4055, %v4083
        %v4101 = vadd.f32 %v4056, %v4085
        %v4102 = vadd.f32 %v4057, %v4087
        %v4103 = vadd.f32 %v4058, %v4089
        %v4104 = vadd.f32 %v4059, %v4089
        %s4105 = sld [smem:[#allocation2 + $0x56]]
        %v4106 = vstv %s4105
        %v4107 = vmul.f32 %v4106, %v521
        %v4108 = vmul.f32 %v4106, %v522
        %v4109 = vmul.f32 %v4106, %v523
        %v4110 = vmul.f32 %v4106, %v524
        %v4111 = vmul.f32 %v4106, %v525
        %v4112 = vmul.f32 %v4106, %v526
        %v4113 = vmul.f32 %v4106, %v470
        %4121 = vrot.lane.b32.xlu0 %v4107, 126
        %v4122 = vpop.permute.xlu0 %4121
        %4123 = vrot.lane.b32.xlu0 %v4108, 126
        %v4124 = vpop.permute.xlu0 %4123
        %4125 = vrot.lane.b32.xlu0 %v4109, 126
        %v4126 = vpop.permute.xlu0 %4125
        %4127 = vrot.lane.b32.xlu0 %v4110, 126
        %v4128 = vpop.permute.xlu0 %4127
        %4129 = vrot.lane.b32.xlu0 %v4111, 126
        %v4130 = vpop.permute.xlu0 %4129
        %4131 = vrot.lane.b32.xlu0 %v4112, 126
        %v4132 = vpop.permute.xlu0 %4131
        %4133 = vrot.lane.b32.xlu0 %v4113, 126
        %v4134 = vpop.permute.xlu0 %4133
        %v4142 = vadd.f32 %v4097, %v4122
        %v4143 = vadd.f32 %v4098, %v4124
        %v4144 = vadd.f32 %v4099, %v4126
        %v4145 = vadd.f32 %v4100, %v4128
        %v4146 = vadd.f32 %v4101, %v4130
        %v4147 = vadd.f32 %v4102, %v4132
        %v4148 = vadd.f32 %v4103, %v4134
        %v4149 = vadd.f32 %v4104, %v4134
        %s4150 = sld [smem:[#allocation2 + $0x57]]
        %v4151 = vstv %s4150
        %v4152 = vmul.f32 %v4151, %v521
        %v4153 = vmul.f32 %v4151, %v522
        %v4154 = vmul.f32 %v4151, %v523
        %v4155 = vmul.f32 %v4151, %v524
        %v4156 = vmul.f32 %v4151, %v525
        %v4157 = vmul.f32 %v4151, %v526
        %v4158 = vmul.f32 %v4151, %v470
        %4166 = vrot.lane.b32.xlu0 %v4152, 125
        %v4167 = vpop.permute.xlu0 %4166
        %4168 = vrot.lane.b32.xlu0 %v4153, 125
        %v4169 = vpop.permute.xlu0 %4168
        %4170 = vrot.lane.b32.xlu0 %v4154, 125
        %v4171 = vpop.permute.xlu0 %4170
        %4172 = vrot.lane.b32.xlu0 %v4155, 125
        %v4173 = vpop.permute.xlu0 %4172
        %4174 = vrot.lane.b32.xlu0 %v4156, 125
        %v4175 = vpop.permute.xlu0 %4174
        %4176 = vrot.lane.b32.xlu0 %v4157, 125
        %v4177 = vpop.permute.xlu0 %4176
        %4178 = vrot.lane.b32.xlu0 %v4158, 125
        %v4179 = vpop.permute.xlu0 %4178
        %v4187 = vadd.f32 %v4142, %v4167
        %v4188 = vadd.f32 %v4143, %v4169
        %v4189 = vadd.f32 %v4144, %v4171
        %v4190 = vadd.f32 %v4145, %v4173
        %v4191 = vadd.f32 %v4146, %v4175
        %v4192 = vadd.f32 %v4147, %v4177
        %v4193 = vadd.f32 %v4148, %v4179
        %v4194 = vadd.f32 %v4149, %v4179
        %s4195 = sld [smem:[#allocation2 + $0x58]]
        %v4196 = vstv %s4195
        %v4197 = vmul.f32 %v4196, %v521
        %v4198 = vmul.f32 %v4196, %v522
        %v4199 = vmul.f32 %v4196, %v523
        %v4200 = vmul.f32 %v4196, %v524
        %v4201 = vmul.f32 %v4196, %v525
        %v4202 = vmul.f32 %v4196, %v526
        %v4203 = vmul.f32 %v4196, %v470
        %4211 = vrot.lane.b32.xlu0 %v4197, 124
        %v4212 = vpop.permute.xlu0 %4211
        %4213 = vrot.lane.b32.xlu0 %v4198, 124
        %v4214 = vpop.permute.xlu0 %4213
        %4215 = vrot.lane.b32.xlu0 %v4199, 124
        %v4216 = vpop.permute.xlu0 %4215
        %4217 = vrot.lane.b32.xlu0 %v4200, 124
        %v4218 = vpop.permute.xlu0 %4217
        %4219 = vrot.lane.b32.xlu0 %v4201, 124
        %v4220 = vpop.permute.xlu0 %4219
        %4221 = vrot.lane.b32.xlu0 %v4202, 124
        %v4222 = vpop.permute.xlu0 %4221
        %4223 = vrot.lane.b32.xlu0 %v4203, 124
        %v4224 = vpop.permute.xlu0 %4223
        %v4232 = vadd.f32 %v4187, %v4212
        %v4233 = vadd.f32 %v4188, %v4214
        %v4234 = vadd.f32 %v4189, %v4216
        %v4235 = vadd.f32 %v4190, %v4218
        %v4236 = vadd.f32 %v4191, %v4220
        %v4237 = vadd.f32 %v4192, %v4222
        %v4238 = vadd.f32 %v4193, %v4224
        %v4239 = vadd.f32 %v4194, %v4224
        %s4240 = sld [smem:[#allocation2 + $0x59]]
        %v4241 = vstv %s4240
        %v4242 = vmul.f32 %v4241, %v521
        %v4243 = vmul.f32 %v4241, %v522
        %v4244 = vmul.f32 %v4241, %v523
        %v4245 = vmul.f32 %v4241, %v524
        %v4246 = vmul.f32 %v4241, %v525
        %v4247 = vmul.f32 %v4241, %v526
        %v4248 = vmul.f32 %v4241, %v470
        %4256 = vrot.lane.b32.xlu0 %v4242, 123
        %v4257 = vpop.permute.xlu0 %4256
        %4258 = vrot.lane.b32.xlu0 %v4243, 123
        %v4259 = vpop.permute.xlu0 %4258
        %4260 = vrot.lane.b32.xlu0 %v4244, 123
        %v4261 = vpop.permute.xlu0 %4260
        %4262 = vrot.lane.b32.xlu0 %v4245, 123
        %v4263 = vpop.permute.xlu0 %4262
        %4264 = vrot.lane.b32.xlu0 %v4246, 123
        %v4265 = vpop.permute.xlu0 %4264
        %4266 = vrot.lane.b32.xlu0 %v4247, 123
        %v4267 = vpop.permute.xlu0 %4266
        %4268 = vrot.lane.b32.xlu0 %v4248, 123
        %v4269 = vpop.permute.xlu0 %4268
        %v4277 = vadd.f32 %v4232, %v4257
        %v4278 = vadd.f32 %v4233, %v4259
        %v4279 = vadd.f32 %v4234, %v4261
        %v4280 = vadd.f32 %v4235, %v4263
        %v4281 = vadd.f32 %v4236, %v4265
        %v4282 = vadd.f32 %v4237, %v4267
        %v4283 = vadd.f32 %v4238, %v4269
        %v4284 = vadd.f32 %v4239, %v4269
        %s4285 = sld [smem:[#allocation2 + $0x5a]]
        %v4286 = vstv %s4285
        %v4287 = vmul.f32 %v4286, %v521
        %v4288 = vmul.f32 %v4286, %v522
        %v4289 = vmul.f32 %v4286, %v523
        %v4290 = vmul.f32 %v4286, %v524
        %v4291 = vmul.f32 %v4286, %v525
        %v4292 = vmul.f32 %v4286, %v526
        %v4293 = vmul.f32 %v4286, %v470
        %4301 = vrot.lane.b32.xlu0 %v4287, 122
        %v4302 = vpop.permute.xlu0 %4301
        %4303 = vrot.lane.b32.xlu0 %v4288, 122
        %v4304 = vpop.permute.xlu0 %4303
        %4305 = vrot.lane.b32.xlu0 %v4289, 122
        %v4306 = vpop.permute.xlu0 %4305
        %4307 = vrot.lane.b32.xlu0 %v4290, 122
        %v4308 = vpop.permute.xlu0 %4307
        %4309 = vrot.lane.b32.xlu0 %v4291, 122
        %v4310 = vpop.permute.xlu0 %4309
        %4311 = vrot.lane.b32.xlu0 %v4292, 122
        %v4312 = vpop.permute.xlu0 %4311
        %4313 = vrot.lane.b32.xlu0 %v4293, 122
        %v4314 = vpop.permute.xlu0 %4313
        %v4322 = vadd.f32 %v4277, %v4302
        %v4323 = vadd.f32 %v4278, %v4304
        %v4324 = vadd.f32 %v4279, %v4306
        %v4325 = vadd.f32 %v4280, %v4308
        %v4326 = vadd.f32 %v4281, %v4310
        %v4327 = vadd.f32 %v4282, %v4312
        %v4328 = vadd.f32 %v4283, %v4314
        %v4329 = vadd.f32 %v4284, %v4314
        %s4330 = sld [smem:[#allocation2 + $0x5b]]
        %v4331 = vstv %s4330
        %v4332 = vmul.f32 %v4331, %v522
        %v4333 = vmul.f32 %v4331, %v523
        %v4334 = vmul.f32 %v4331, %v524
        %v4335 = vmul.f32 %v4331, %v525
        %v4336 = vmul.f32 %v4331, %v526
        %v4337 = vmul.f32 %v4331, %v470
        %v4338 = vadd.f32 %v4322, %v4332
        %v4339 = vadd.f32 %v4323, %v4333
        %v4340 = vadd.f32 %v4324, %v4334
        %v4341 = vadd.f32 %v4325, %v4335
        %v4342 = vadd.f32 %v4326, %v4336
        %v4343 = vadd.f32 %v4327, %v4337
        %v4344 = vadd.f32 %v4328, %v4337
        %v4345 = vadd.f32 %v4329, %v4337
        %s4346 = sld [smem:[#allocation2 + $0x5c]]
        %v4347 = vstv %s4346
        %v4348 = vmul.f32 %v4347, %v522
        %v4349 = vmul.f32 %v4347, %v523
        %v4350 = vmul.f32 %v4347, %v524
        %v4351 = vmul.f32 %v4347, %v525
        %v4352 = vmul.f32 %v4347, %v526
        %v4353 = vmul.f32 %v4347, %v470
        %4360 = vrot.lane.b32.xlu0 %v4348, 127
        %v4361 = vpop.permute.xlu0 %4360
        %4362 = vrot.lane.b32.xlu0 %v4349, 127
        %v4363 = vpop.permute.xlu0 %4362
        %4364 = vrot.lane.b32.xlu0 %v4350, 127
        %v4365 = vpop.permute.xlu0 %4364
        %4366 = vrot.lane.b32.xlu0 %v4351, 127
        %v4367 = vpop.permute.xlu0 %4366
        %4368 = vrot.lane.b32.xlu0 %v4352, 127
        %v4369 = vpop.permute.xlu0 %4368
        %4370 = vrot.lane.b32.xlu0 %v4353, 127
        %v4371 = vpop.permute.xlu0 %4370
        %v4378 = vadd.f32 %v4338, %v4361
        %v4379 = vadd.f32 %v4339, %v4363
        %v4380 = vadd.f32 %v4340, %v4365
        %v4381 = vadd.f32 %v4341, %v4367
        %v4382 = vadd.f32 %v4342, %v4369
        %v4383 = vadd.f32 %v4343, %v4371
        %v4384 = vadd.f32 %v4344, %v4371
        %v4385 = vadd.f32 %v4345, %v4371
        %s4386 = sld [smem:[#allocation2 + $0x5d]]
        %v4387 = vstv %s4386
        %v4388 = vmul.f32 %v4387, %v522
        %v4389 = vmul.f32 %v4387, %v523
        %v4390 = vmul.f32 %v4387, %v524
        %v4391 = vmul.f32 %v4387, %v525
        %v4392 = vmul.f32 %v4387, %v526
        %v4393 = vmul.f32 %v4387, %v470
        %4400 = vrot.lane.b32.xlu0 %v4388, 126
        %v4401 = vpop.permute.xlu0 %4400
        %4402 = vrot.lane.b32.xlu0 %v4389, 126
        %v4403 = vpop.permute.xlu0 %4402
        %4404 = vrot.lane.b32.xlu0 %v4390, 126
        %v4405 = vpop.permute.xlu0 %4404
        %4406 = vrot.lane.b32.xlu0 %v4391, 126
        %v4407 = vpop.permute.xlu0 %4406
        %4408 = vrot.lane.b32.xlu0 %v4392, 126
        %v4409 = vpop.permute.xlu0 %4408
        %4410 = vrot.lane.b32.xlu0 %v4393, 126
        %v4411 = vpop.permute.xlu0 %4410
        %v4418 = vadd.f32 %v4378, %v4401
        %v4419 = vadd.f32 %v4379, %v4403
        %v4420 = vadd.f32 %v4380, %v4405
        %v4421 = vadd.f32 %v4381, %v4407
        %v4422 = vadd.f32 %v4382, %v4409
        %v4423 = vadd.f32 %v4383, %v4411
        %v4424 = vadd.f32 %v4384, %v4411
        %v4425 = vadd.f32 %v4385, %v4411
        %s4426 = sld [smem:[#allocation2 + $0x5e]]
        %v4427 = vstv %s4426
        %v4428 = vmul.f32 %v4427, %v522
        %v4429 = vmul.f32 %v4427, %v523
        %v4430 = vmul.f32 %v4427, %v524
        %v4431 = vmul.f32 %v4427, %v525
        %v4432 = vmul.f32 %v4427, %v526
        %v4433 = vmul.f32 %v4427, %v470
        %4440 = vrot.lane.b32.xlu0 %v4428, 125
        %v4441 = vpop.permute.xlu0 %4440
        %4442 = vrot.lane.b32.xlu0 %v4429, 125
        %v4443 = vpop.permute.xlu0 %4442
        %4444 = vrot.lane.b32.xlu0 %v4430, 125
        %v4445 = vpop.permute.xlu0 %4444
        %4446 = vrot.lane.b32.xlu0 %v4431, 125
        %v4447 = vpop.permute.xlu0 %4446
        %4448 = vrot.lane.b32.xlu0 %v4432, 125
        %v4449 = vpop.permute.xlu0 %4448
        %4450 = vrot.lane.b32.xlu0 %v4433, 125
        %v4451 = vpop.permute.xlu0 %4450
        %v4458 = vadd.f32 %v4418, %v4441
        %v4459 = vadd.f32 %v4419, %v4443
        %v4460 = vadd.f32 %v4420, %v4445
        %v4461 = vadd.f32 %v4421, %v4447
        %v4462 = vadd.f32 %v4422, %v4449
        %v4463 = vadd.f32 %v4423, %v4451
        %v4464 = vadd.f32 %v4424, %v4451
        %v4465 = vadd.f32 %v4425, %v4451
        %s4466 = sld [smem:[#allocation2 + $0x5f]]
        %v4467 = vstv %s4466
        %v4468 = vmul.f32 %v4467, %v522
        %v4469 = vmul.f32 %v4467, %v523
        %v4470 = vmul.f32 %v4467, %v524
        %v4471 = vmul.f32 %v4467, %v525
        %v4472 = vmul.f32 %v4467, %v526
        %v4473 = vmul.f32 %v4467, %v470
        %4480 = vrot.lane.b32.xlu0 %v4468, 124
        %v4481 = vpop.permute.xlu0 %4480
        %4482 = vrot.lane.b32.xlu0 %v4469, 124
        %v4483 = vpop.permute.xlu0 %4482
        %4484 = vrot.lane.b32.xlu0 %v4470, 124
        %v4485 = vpop.permute.xlu0 %4484
        %4486 = vrot.lane.b32.xlu0 %v4471, 124
        %v4487 = vpop.permute.xlu0 %4486
        %4488 = vrot.lane.b32.xlu0 %v4472, 124
        %v4489 = vpop.permute.xlu0 %4488
        %4490 = vrot.lane.b32.xlu0 %v4473, 124
        %v4491 = vpop.permute.xlu0 %4490
        %v4498 = vadd.f32 %v4458, %v4481
        %v4499 = vadd.f32 %v4459, %v4483
        %v4500 = vadd.f32 %v4460, %v4485
        %v4501 = vadd.f32 %v4461, %v4487
        %v4502 = vadd.f32 %v4462, %v4489
        %v4503 = vadd.f32 %v4463, %v4491
        %v4504 = vadd.f32 %v4464, %v4491
        %v4505 = vadd.f32 %v4465, %v4491
        %s4506 = sld [smem:[#allocation2 + $0x60]]
        %v4507 = vstv %s4506
        %v4508 = vmul.f32 %v4507, %v522
        %v4509 = vmul.f32 %v4507, %v523
        %v4510 = vmul.f32 %v4507, %v524
        %v4511 = vmul.f32 %v4507, %v525
        %v4512 = vmul.f32 %v4507, %v526
        %v4513 = vmul.f32 %v4507, %v470
        %4520 = vrot.lane.b32.xlu0 %v4508, 123
        %v4521 = vpop.permute.xlu0 %4520
        %4522 = vrot.lane.b32.xlu0 %v4509, 123
        %v4523 = vpop.permute.xlu0 %4522
        %4524 = vrot.lane.b32.xlu0 %v4510, 123
        %v4525 = vpop.permute.xlu0 %4524
        %4526 = vrot.lane.b32.xlu0 %v4511, 123
        %v4527 = vpop.permute.xlu0 %4526
        %4528 = vrot.lane.b32.xlu0 %v4512, 123
        %v4529 = vpop.permute.xlu0 %4528
        %4530 = vrot.lane.b32.xlu0 %v4513, 123
        %v4531 = vpop.permute.xlu0 %4530
        %v4538 = vadd.f32 %v4498, %v4521
        %v4539 = vadd.f32 %v4499, %v4523
        %v4540 = vadd.f32 %v4500, %v4525
        %v4541 = vadd.f32 %v4501, %v4527
        %v4542 = vadd.f32 %v4502, %v4529
        %v4543 = vadd.f32 %v4503, %v4531
        %v4544 = vadd.f32 %v4504, %v4531
        %v4545 = vadd.f32 %v4505, %v4531
        %s4546 = sld [smem:[#allocation2 + $0x61]]
        %v4547 = vstv %s4546
        %v4548 = vmul.f32 %v4547, %v522
        %v4549 = vmul.f32 %v4547, %v523
        %v4550 = vmul.f32 %v4547, %v524
        %v4551 = vmul.f32 %v4547, %v525
        %v4552 = vmul.f32 %v4547, %v526
        %v4553 = vmul.f32 %v4547, %v470
        %4560 = vrot.lane.b32.xlu0 %v4548, 122
        %v4561 = vpop.permute.xlu0 %4560
        %4562 = vrot.lane.b32.xlu0 %v4549, 122
        %v4563 = vpop.permute.xlu0 %4562
        %4564 = vrot.lane.b32.xlu0 %v4550, 122
        %v4565 = vpop.permute.xlu0 %4564
        %4566 = vrot.lane.b32.xlu0 %v4551, 122
        %v4567 = vpop.permute.xlu0 %4566
        %4568 = vrot.lane.b32.xlu0 %v4552, 122
        %v4569 = vpop.permute.xlu0 %4568
        %4570 = vrot.lane.b32.xlu0 %v4553, 122
        %v4571 = vpop.permute.xlu0 %4570
        %v4578 = vadd.f32 %v4538, %v4561
        %v4579 = vadd.f32 %v4539, %v4563
        %v4580 = vadd.f32 %v4540, %v4565
        %v4581 = vadd.f32 %v4541, %v4567
        %v4582 = vadd.f32 %v4542, %v4569
        %v4583 = vadd.f32 %v4543, %v4571
        %v4584 = vadd.f32 %v4544, %v4571
        %v4585 = vadd.f32 %v4545, %v4571
        %s4586 = sld [smem:[#allocation8]]
        %v4587 = vstv %s4586
        %v4588 = vmul.f32 %v4578, %v4587
        %v4589 = vmul.f32 %v4579, %v4587
        %v4590 = vmul.f32 %v4580, %v4587
        %v4591 = vmul.f32 %v4581, %v4587
        %v4592 = vmul.f32 %v4582, %v4587
        %v4593 = vmul.f32 %v4583, %v4587
        %v4594 = vmul.f32 %v4584, %v4587
        %v4595 = vmul.f32 %v4585, %v4587
        %s4596 = sld [smem:[#allocation8 + $0x1]]
        %v4597 = vstv %s4596
        %v4598 = vadd.f32 %v4588, %v4597
        %v4599 = vadd.f32 %v4589, %v4597
        %v4600 = vadd.f32 %v4590, %v4597
        %v4601 = vadd.f32 %v4591, %v4597
        %v4602 = vadd.f32 %v4592, %v4597
        %v4603 = vadd.f32 %v4593, %v4597
        %v4604 = vadd.f32 %v4594, %v4597
        %v4605 = vadd.f32 %v4595, %v4597
        %v4606 = vxor.u32 %v4598, 2147483648
        %v4607 = vxor.u32 %v4599, 2147483648
        %v4608 = vxor.u32 %v4600, 2147483648
        %v4609 = vxor.u32 %v4601, 2147483648
        %v4610 = vxor.u32 %v4602, 2147483648
        %v4611 = vxor.u32 %v4603, 2147483648
        %v4612 = vxor.u32 %v4604, 2147483648
        %v4613 = vxor.u32 %v4605, 2147483648
        %v4614 = vmul.f32 %v4606, 1.442695
        %v4615 = vpow.pop %v4614
        %v4616 = vmul.f32 %v4607, 1.442695
        %v4617 = vpow.pop %v4616
        %v4618 = vmul.f32 %v4608, 1.442695
        %v4619 = vpow.pop %v4618
        %v4620 = vmul.f32 %v4609, 1.442695
        %v4621 = vpow.pop %v4620
        %v4622 = vmul.f32 %v4610, 1.442695
        %v4623 = vpow.pop %v4622
        %v4624 = vmul.f32 %v4611, 1.442695
        %v4625 = vpow.pop %v4624
        %v4626 = vmul.f32 %v4612, 1.442695
        %v4627 = vpow.pop %v4626
        %v4628 = vmul.f32 %v4613, 1.442695
        %v4629 = vpow.pop %v4628
        %v4630 = vadd.f32 %v4615, 1.0
        %v4631 = vadd.f32 %v4617, 1.0
        %v4632 = vadd.f32 %v4619, 1.0
        %v4633 = vadd.f32 %v4621, 1.0
        %v4634 = vadd.f32 %v4623, 1.0
        %v4635 = vadd.f32 %v4625, 1.0
        %v4636 = vadd.f32 %v4627, 1.0
        %v4637 = vadd.f32 %v4629, 1.0
        %v4638 = vrcp.pop %v4630
        %v4639 = vmul.f32 1.0, %v4638
        %v4640 = vrcp.pop %v4631
        %v4641 = vmul.f32 1.0, %v4640
        %v4642 = vrcp.pop %v4632
        %v4643 = vmul.f32 1.0, %v4642
        %v4644 = vrcp.pop %v4633
        %v4645 = vmul.f32 1.0, %v4644
        %v4646 = vrcp.pop %v4634
        %v4647 = vmul.f32 1.0, %v4646
        %v4648 = vrcp.pop %v4635
        %v4649 = vmul.f32 1.0, %v4648
        %v4650 = vrcp.pop %v4636
        %v4651 = vmul.f32 1.0, %v4650
        %v4652 = vrcp.pop %v4637
        %v4653 = vmul.f32 1.0, %v4652
        %v4654 = vmul.f32 %v4639, %v351
        %v4655 = vmul.f32 %v4641, %v360
        %v4656 = vmul.f32 %v4643, %v369
        %v4657 = vmul.f32 %v4645, %v378
        %v4658 = vmul.f32 %v4647, %v387
        %v4659 = vmul.f32 %v4649, %v396
        %v4660 = vmul.f32 %v4651, %v405
        %v4661 = vmul.f32 %v4653, %v414
        %vm4662 = vcmask 122880
        %v4663 = vsel %vm4662, %v4654, 0.0
        %4664 = vadd.xlane.f32.xlu0 %v4663
        %v4665 = vpop.xlane.xlu0 %4664
        %v4666 = vsel %vm4662, %v4655, 0.0
        %4667 = vadd.xlane.f32.xlu0 %v4666
        %v4668 = vpop.xlane.xlu0 %4667
        %v4669 = vsel %vm4662, %v4656, 0.0
        %4670 = vadd.xlane.f32.xlu0 %v4669
        %v4671 = vpop.xlane.xlu0 %4670
        %v4672 = vsel %vm4662, %v4657, 0.0
        %4673 = vadd.xlane.f32.xlu0 %v4672
        %v4674 = vpop.xlane.xlu0 %4673
        %v4675 = vsel %vm4662, %v4658, 0.0
        %4676 = vadd.xlane.f32.xlu0 %v4675
        %v4677 = vpop.xlane.xlu0 %4676
        %v4678 = vsel %vm4662, %v4659, 0.0
        %4679 = vadd.xlane.f32.xlu0 %v4678
        %v4680 = vpop.xlane.xlu0 %4679
        %v4681 = vsel %vm4662, %v4660, 0.0
        %4682 = vadd.xlane.f32.xlu0 %v4681
        %v4683 = vpop.xlane.xlu0 %4682
        %v4684 = vsel %vm4662, %v4661, 0.0
        %4685 = vadd.xlane.f32.xlu0 %v4684
        %v4686 = vpop.xlane.xlu0 %4685
        %v4687 = vmul.f32 %v4665, 0.00390625
        %v4688 = vmul.f32 %v4668, 0.00390625
        %v4689 = vmul.f32 %v4671, 0.00390625
        %v4690 = vmul.f32 %v4674, 0.00390625
        %v4691 = vmul.f32 %v4677, 0.00390625
        %v4692 = vmul.f32 %v4680, 0.00390625
        %v4693 = vmul.f32 %v4683, 0.00390625
        %v4694 = vmul.f32 %v4686, 0.00390625
        %s4695 = sld [smem:[#allocation7]]
        %v4696 = vstv %s4695
        %v4697 = vmul.f32 %v4696, 0.0
        %v4698 = vmul.f32 %v4696, %v4687
        %v4699 = vmul.f32 %v4696, %v4688
        %v4700 = vmul.f32 %v4696, %v4689
        %v4701 = vmul.f32 %v4696, %v4690
        %v4702 = vmul.f32 %v4696, %v4691
        %v4703 = vmul.f32 %v4696, %v4692
        %v4704 = vmul.f32 %v4696, %v4693
        %s4705 = sld [smem:[#allocation7 + $0x1]]
        %v4706 = vstv %s4705
        %v4707 = vmul.f32 %v4706, %v4687
        %v4708 = vmul.f32 %v4706, %v4688
        %v4709 = vmul.f32 %v4706, %v4689
        %v4710 = vmul.f32 %v4706, %v4690
        %v4711 = vmul.f32 %v4706, %v4691
        %v4712 = vmul.f32 %v4706, %v4692
        %v4713 = vmul.f32 %v4706, %v4693
        %v4714 = vmul.f32 %v4706, %v4694
        %v4715 = vadd.f32 %v4697, %v4707
        %v4716 = vadd.f32 %v4698, %v4708
        %v4717 = vadd.f32 %v4699, %v4709
        %v4718 = vadd.f32 %v4700, %v4710
        %v4719 = vadd.f32 %v4701, %v4711
        %v4720 = vadd.f32 %v4702, %v4712
        %v4721 = vadd.f32 %v4703, %v4713
        %v4722 = vadd.f32 %v4704, %v4714
        %s4723 = sld [smem:[#allocation7 + $0x2]]
        %v4724 = vstv %s4723
        %v4725 = vmul.f32 %v4724, %v4688
        %v4726 = vmul.f32 %v4724, %v4689
        %v4727 = vmul.f32 %v4724, %v4690
        %v4728 = vmul.f32 %v4724, %v4691
        %v4729 = vmul.f32 %v4724, %v4692
        %v4730 = vmul.f32 %v4724, %v4693
        %v4731 = vmul.f32 %v4724, %v4694
        %v4732 = vmul.f32 %v4724, 0.0
        %v4733 = vadd.f32 %v4715, %v4725
        %v4734 = vadd.f32 %v4716, %v4726
        %v4735 = vadd.f32 %v4717, %v4727
        %v4736 = vadd.f32 %v4718, %v4728
        %v4737 = vadd.f32 %v4719, %v4729
        %v4738 = vadd.f32 %v4720, %v4730
        %v4739 = vadd.f32 %v4721, %v4731
        %v4740 = vadd.f32 %v4722, %v4732
        %v4741 = vxor.u32 %v4733, 2147483648
        %v4742 = vxor.u32 %v4734, 2147483648
        %v4743 = vxor.u32 %v4735, 2147483648
        %v4744 = vxor.u32 %v4736, 2147483648
        %v4745 = vxor.u32 %v4737, 2147483648
        %v4746 = vxor.u32 %v4738, 2147483648
        %v4747 = vxor.u32 %v4739, 2147483648
        %v4748 = vxor.u32 %v4740, 2147483648
        %v4749 = vmul.f32 %v4741, 1.442695
        %v4750 = vpow.pop %v4749
        %v4751 = vmul.f32 %v4742, 1.442695
        %v4752 = vpow.pop %v4751
        %v4753 = vmul.f32 %v4743, 1.442695
        %v4754 = vpow.pop %v4753
        %v4755 = vmul.f32 %v4744, 1.442695
        %v4756 = vpow.pop %v4755
        %v4757 = vmul.f32 %v4745, 1.442695
        %v4758 = vpow.pop %v4757
        %v4759 = vmul.f32 %v4746, 1.442695
        %v4760 = vpow.pop %v4759
        %v4761 = vmul.f32 %v4747, 1.442695
        %v4762 = vpow.pop %v4761
        %v4763 = vmul.f32 %v4748, 1.442695
        %v4764 = vpow.pop %v4763
        %v4765 = vadd.f32 %v4750, 1.0
        %v4766 = vadd.f32 %v4752, 1.0
        %v4767 = vadd.f32 %v4754, 1.0
        %v4768 = vadd.f32 %v4756, 1.0
        %v4769 = vadd.f32 %v4758, 1.0
        %v4770 = vadd.f32 %v4760, 1.0
        %v4771 = vadd.f32 %v4762, 1.0
        %v4772 = vadd.f32 %v4764, 1.0
        %v4773 = vrcp.pop %v4765
        %v4774 = vmul.f32 1.0, %v4773
        %v4775 = vrcp.pop %v4766
        %v4776 = vmul.f32 1.0, %v4775
        %v4777 = vrcp.pop %v4767
        %v4778 = vmul.f32 1.0, %v4777
        %v4779 = vrcp.pop %v4768
        %v4780 = vmul.f32 1.0, %v4779
        %v4781 = vrcp.pop %v4769
        %v4782 = vmul.f32 1.0, %v4781
        %v4783 = vrcp.pop %v4770
        %v4784 = vmul.f32 1.0, %v4783
        %v4785 = vrcp.pop %v4771
        %v4786 = vmul.f32 1.0, %v4785
        %v4787 = vrcp.pop %v4772
        %v4788 = vmul.f32 1.0, %v4787
        %4790 = vset.pattern.permute.xlu0 0
        %4791 = vperm.xlu0 %4790, %v4774
        %v4792 = vpop.permute.xlu0 %4791
        %4795 = vset.pattern.permute.xlu0 0
        %4796 = vperm.xlu0 %4795, %v4776
        %v4797 = vpop.permute.xlu0 %4796
        %4800 = vset.pattern.permute.xlu0 0
        %4801 = vperm.xlu0 %4800, %v4778
        %v4802 = vpop.permute.xlu0 %4801
        %4805 = vset.pattern.permute.xlu0 0
        %4806 = vperm.xlu0 %4805, %v4780
        %v4807 = vpop.permute.xlu0 %4806
        %4810 = vset.pattern.permute.xlu0 0
        %4811 = vperm.xlu0 %4810, %v4782
        %v4812 = vpop.permute.xlu0 %4811
        %4815 = vset.pattern.permute.xlu0 0
        %4816 = vperm.xlu0 %4815, %v4784
        %v4817 = vpop.permute.xlu0 %4816
        %4820 = vset.pattern.permute.xlu0 0
        %4821 = vperm.xlu0 %4820, %v4786
        %v4822 = vpop.permute.xlu0 %4821
        %4825 = vset.pattern.permute.xlu0 0
        %4826 = vperm.xlu0 %4825, %v4788
        %v4827 = vpop.permute.xlu0 %4826
        %v4829 = vmul.f32 %v4639, %v4792
        %v4830 = vmul.f32 %v4641, %v4797
        %v4831 = vmul.f32 %v4643, %v4802
        %v4832 = vmul.f32 %v4645, %v4807
        %v4833 = vmul.f32 %v4647, %v4812
        %v4834 = vmul.f32 %v4649, %v4817
        %v4835 = vmul.f32 %v4651, %v4822
        %v4836 = vmul.f32 %v4653, %v4827
        %v4837 = vlaneseq
        %v4838 = vshrl.u32 %v4837, 7
        %v4839 = vsub.s32 0, %v4838
        %v4840 = vrot.slane %v4829, %v4839
        %v4841 = vlaneseq
        %v4842 = vshrl.u32 %v4841, 7
        %v4843 = vsub.s32 0, %v4842
        %v4844 = vrot.slane %v4830, %v4843
        %v4845 = vlaneseq
        %v4846 = vshrl.u32 %v4845, 7
        %v4847 = vsub.s32 0, %v4846
        %v4848 = vrot.slane %v4831, %v4847
        %v4849 = vlaneseq
        %v4850 = vshrl.u32 %v4849, 7
        %v4851 = vsub.s32 0, %v4850
        %v4852 = vrot.slane %v4832, %v4851
        %v4853 = vlaneseq
        %v4854 = vshrl.u32 %v4853, 7
        %v4855 = vsub.s32 0, %v4854
        %v4856 = vrot.slane %v4833, %v4855
        %v4857 = vlaneseq
        %v4858 = vshrl.u32 %v4857, 7
        %v4859 = vsub.s32 0, %v4858
        %v4860 = vrot.slane %v4834, %v4859
        %v4861 = vlaneseq
        %v4862 = vshrl.u32 %v4861, 7
        %v4863 = vsub.s32 0, %v4862
        %v4864 = vrot.slane %v4835, %v4863
        %v4865 = vlaneseq
        %v4866 = vshrl.u32 %v4865, 7
        %v4867 = vsub.s32 0, %v4866
        %v4868 = vrot.slane %v4836, %v4867
        %v4869 = vmul.f32 %v254, %v4840
        %v4870 = vmul.f32 %v255, %v4840
        %v4871 = vmul.f32 %v256, %v4844
        %v4872 = vmul.f32 %v257, %v4844
        %v4873 = vmul.f32 %v258, %v4848
        %v4874 = vmul.f32 %v259, %v4848
        %v4875 = vmul.f32 %v260, %v4852
        %v4876 = vmul.f32 %v261, %v4852
        %v4877 = vmul.f32 %v262, %v4856
        %v4878 = vmul.f32 %v263, %v4856
        %v4879 = vmul.f32 %v264, %v4860
        %v4880 = vmul.f32 %v265, %v4860
        %v4881 = vmul.f32 %v266, %v4864
        %v4882 = vmul.f32 %v267, %v4864
        %v4883 = vmul.f32 %v268, %v4868
        %v4884 = vmul.f32 %v269, %v4868
        %4885 = vst.msk [vmem:[%s253] sm:$0xff] %vm270, %v4869
        %4886 = vst.msk [vmem:[%s253 + $0x8] sm:$0xff] %vm270, %v4870
        %4887 = vst.msk [vmem:[%s253 + $0x10] sm:$0xff] %vm270, %v4871
        %4888 = vst.msk [vmem:[%s253 + $0x18] sm:$0xff] %vm270, %v4872
        %4889 = vst.msk [vmem:[%s253 + $0x20] sm:$0xff] %vm270, %v4873
        %4890 = vst.msk [vmem:[%s253 + $0x28] sm:$0xff] %vm270, %v4874
        %4891 = vst.msk [vmem:[%s253 + $0x30] sm:$0xff] %vm270, %v4875
        %4892 = vst.msk [vmem:[%s253 + $0x38] sm:$0xff] %vm270, %v4876
        %4893 = vst.msk [vmem:[%s253 + $0x40] sm:$0xff] %vm270, %v4877
        %4894 = vst.msk [vmem:[%s253 + $0x48] sm:$0xff] %vm270, %v4878
        %4895 = vst.msk [vmem:[%s253 + $0x50] sm:$0xff] %vm270, %v4879
        %4896 = vst.msk [vmem:[%s253 + $0x58] sm:$0xff] %vm270, %v4880
        %4897 = vst.msk [vmem:[%s253 + $0x60] sm:$0xff] %vm270, %v4881
        %4898 = vst.msk [vmem:[%s253 + $0x68] sm:$0xff] %vm270, %v4882
        %4899 = vst.msk [vmem:[%s253 + $0x70] sm:$0xff] %vm270, %v4883
        %4900 = vst.msk [vmem:[%s253 + $0x78] sm:$0xff] %vm270, %v4884
        %s4901 = sand.u32 %s121, 1
        %s4902 = scalar_lea.sflag [#allocation4], %s4901
        %s4903 = sand.u32 %s121, 1
        %s4904 = smul.addr %s4903, 128
        %s4905 = scalar_lea.vmem [#allocation11], %s4904
        // Predicated region
        $region53: #{tpu_custom_call.1} parent=35 // pred_check
          %p4906 = pneg %p131
        $region54: #{tpu_custom_call.1} parent=35 // pred_check_branch
          %4908 = sbr.rel (%p4906) target = $region56
        $region55: #{tpu_custom_call.1} parent=35 // pred_region
          %s4910 = ssub.s32 2048, 2048
          %4911 = vsyncadd %s4902, %s4910
          %s4912 = smul.addr %s24, 16
          %s4913 = smul.addr %s4912, 128
          %s4914 = scalar_lea.hbm %s4, %s4913
          %s4915 = sshll.u32 %s4905, 4
          %s4916 = int_to_ptr.vmem [resolvable:$true] %s4915
          %4921 = dma.vmem_to_hbm [thread:$0]  %s4916, 2048, %s4914, %s4902, 128, 128, 8
        $region56: #{tpu_custom_call.1} parent=35 // pred_fallthru
          _
      $region36: #{tpu_custom_call.1} parent=5 // pred_fallthru
        _
      %p4922 = scmp.le.s32.totalorder 2, %s19
      // Predicated region
      $region57: #{tpu_custom_call.1} parent=5 // pred_check
        %p4923 = pneg %p4922
      $region58: #{tpu_custom_call.1} parent=5 // pred_check_branch
        %4925 = sbr.rel (%p4923) target = $region60
      $region59: #{tpu_custom_call.1} parent=5 // pred_region
        %s4926 = ssub.s32 %s19, 2
        // Predicated region
        $region61: #{tpu_custom_call.1} parent=59 // pred_check
          %p4927 = pneg %p137
        $region62: #{tpu_custom_call.1} parent=59 // pred_check_branch
          %4929 = sbr.rel (%p4927) target = $region64
        $region63: #{tpu_custom_call.1} parent=59 // pred_region
          %s4930 = sand.u32 %s122, 1
          %s4931 = scalar_lea.sflag [#allocation4], %s4930
          %s4932 = sand.u32 %s122, 1
          %s4933 = smul.addr %s4932, 128
          %s4934 = scalar_lea.vmem [#allocation11], %s4933
          %4935 = dma.done %s4931, 2048
        $region64: #{tpu_custom_call.1} parent=59 // pred_fallthru
          _
      $region60: #{tpu_custom_call.1} parent=5 // pred_fallthru
        _
    $region6: #{tpu_custom_call.1} parent=1 // loop_footer
      %s23 = sadd.s32 1, %s19
    $region7: #{tpu_custom_call.1} parent=1 // loop_footer_branch
      %18 = sbr.rel target = $region3
    $region8: #{tpu_custom_call.1} parent=1 // loop_exit
      _
    %4936 = vsyncpa [#allocation3], 1
    %s4937 = scalar_lea.sflag [#allocation3], 1
    %4938 = vsyncpa %s4937, 1
    %4939 = vsyncpa [#allocation4], 1
    %s4940 = scalar_lea.sflag [#allocation4], 1
    %4941 = vsyncpa %s4940, 1
    %4942 = vsyncpa [#allocation5], 1
    %s4943 = scalar_lea.sflag [#allocation5], 1
    %4944 = vsyncpa %s4943, 1
    %4945 = vsyncpa [#allocation6], 1
    %s4946 = scalar_lea.sflag [#allocation6], 1
    %4947 = vsyncpa %s4946, 1
    %4948 = vsyncpa [#allocation9], 1

</llo_original>
